<compile_context>
chip_gen: v7x
topology: tpu7x:2x2x1
jax: 0.10.0
libtpu: 0.0.40
codegen_flags: <defaults>
</compile_context>

<pallas_src>
import functools

import jax
import jax.numpy as jnp
import numpy as np
from jax.experimental import pallas as pl
from jax.experimental.pallas import tpu as pltpu

# Logical sizes (match the PyTorch module).
N_IN = 836      # flattened input size (steps * features)
H1 = 400
H2 = 200
LAT = 64

# Lane-padded sizes (multiples of 128) for weight columns / decoder output.
N_INP = 896
H1P = 512
H2P = 256
MLP = 2 * LAT   # packed mu|logvar width = 128


def _round_up(x, m):
    return (x + m - 1) // m * m


def vae_kernel(x_ref, eps_ref,
               w1_ref, b1_ref, w2_ref, b2_ref,
               wh_ref, bh_ref,
               wd1_ref, bd1_ref, wd2_ref, bd2_ref, wd3_ref, bd3_ref,
               out_ref, ml_ref):
    # x tile arrives as raw f32 (TB, 836); cast to bf16 in VMEM.
    x = x_ref[...].astype(jnp.bfloat16)                               # (TB, 836)

    # ---- encoder ----
    h = jnp.dot(x, w1_ref[...], preferred_element_type=jnp.float32) + b1_ref[...]
    h = jnp.maximum(h, 0.0).astype(jnp.bfloat16)                      # (TB, 512)
    h = jnp.dot(h, w2_ref[...], preferred_element_type=jnp.float32) + b2_ref[...]
    h = jnp.maximum(h, 0.0).astype(jnp.bfloat16)                      # (TB, 256)

    # ---- fused latent heads (mu | logvar packed into 128 lanes, f32) ----
    ml = jnp.dot(h, wh_ref[...], preferred_element_type=jnp.float32) + bh_ref[...]
    ml_ref[...] = ml                                                  # (TB, 128) f32

    mu = ml[:, :LAT]
    logvar = ml[:, LAT:]

    # ---- reparameterize (kept in f32; bf16 here would amplify exp error) ----
    std = jnp.exp(0.5 * logvar)
    z = (mu + eps_ref[...] * std).astype(jnp.bfloat16)                # (TB, 64)

    # ---- decoder ----
    d = jnp.dot(z, wd1_ref[...], preferred_element_type=jnp.float32) + bd1_ref[...]
    d = jnp.maximum(d, 0.0).astype(jnp.bfloat16)                      # (TB, 256)
    d = jnp.dot(d, wd2_ref[...], preferred_element_type=jnp.float32) + bd2_ref[...]
    d = jnp.maximum(d, 0.0).astype(jnp.bfloat16)                      # (TB, 512)
    d = jnp.dot(d, wd3_ref[...], preferred_element_type=jnp.float32) + bd3_ref[...]

    # sigmoid(x) == 0.5*tanh(0.5*x)+0.5 : single EUP op, no exp+divide pair.
    out_ref[...] = (0.5 * jnp.tanh(0.5 * d) + 0.5).astype(jnp.bfloat16)   # (TB, 896)


def init_params(key):
    """PyTorch-style uniform(+-1/sqrt(fan_in)) init, zero-padded to lane-dense
    output dims.  Weights are bf16, biases stay f32 (shape (1, out))."""
    def linear(key, fan_in, fan_out, pad_in, pad_out):
        kw, kb = jax.random.split(key)
        bound = 1.0 / float(np.sqrt(fan_in))
        w = jax.random.uniform(kw, (fan_in, fan_out), jnp.float32, -bound, bound)
        b = jax.random.uniform(kb, (fan_out,), jnp.float32, -bound, bound)
        wp = jnp.zeros((pad_in, pad_out), jnp.float32).at[:fan_in, :fan_out].set(w)
        bp = jnp.zeros((1, pad_out), jnp.float32).at[0, :fan_out].set(b)
        return wp.astype(jnp.bfloat16), bp

    keys = jax.random.split(key, 7)
    w1, b1 = linear(keys[0], N_IN, H1, N_IN, H1P)      # enc[0]  (K unpadded: 836)
    w2, b2 = linear(keys[1], H1, H2, H1P, H2P)         # enc[2]
    wmu, bmu = linear(keys[2], H2, LAT, H2P, LAT)      # mu head
    wvar, bvar = linear(keys[3], H2, LAT, H2P, LAT)    # var head
    wh = jnp.concatenate([wmu, wvar], axis=1)          # fused (256, 128)
    bh = jnp.concatenate([bmu, bvar], axis=1)          # (1, 128)
    wd1, bd1 = linear(keys[4], LAT, H2, LAT, H2P)      # dec[0]
    wd2, bd2 = linear(keys[5], H2, H1, H2P, H1P)       # dec[2]
    wd3, bd3 = linear(keys[6], H1, N_IN, H1P, N_INP)   # dec[4] (out padded: 896)
    return (w1, b1, w2, b2, wh, bh, wd1, bd1, wd2, bd2, wd3, bd3)


@functools.partial(jax.jit, static_argnames=("tb",))
def vae_forward(x, eps, params, *, tb=512):
    """x: (B, steps, features) with steps*features == 836; eps: (B, 64) f32.

    Returns (out_bf16 (B, 836), mu_f32 (B, 64), logvar_f32 (B, 64)).
    Reconstruction is returned in bf16 (sigmoid outputs in [0,1]); cast to
    f32 downstream if required."""
    B = x.shape[0]
    x_flat = x.reshape(B, -1).astype(jnp.float32)
    assert x_flat.shape[1] == N_IN, f"steps*features must be {N_IN}"

    # >= 2 grid steps (megacore on v7x), minimal batch padding, tb_eff % 16 == 0.
    n_steps = max(2, pl.cdiv(B, tb))
    tb_eff = min(max(tb, 16), _round_up(pl.cdiv(B, n_steps), 16))
    b_pad = tb_eff * n_steps

    # Only batch-dim padding (no feature pad / cast pass over x in HBM).
    x_p = jnp.pad(x_flat, ((0, b_pad - B), (0, 0)))
    eps_p = jnp.pad(eps.astype(jnp.float32), ((0, b_pad - B), (0, 0)))

    grid = (n_steps,)

    def act_spec(d):
        return pl.BlockSpec((tb_eff, d), lambda i: (i, 0))

    def const_spec(shape):
        # Weight/bias blocks never change index -> keep a single VMEM buffer.
        return pl.BlockSpec(shape, lambda i: (0, 0), pipeline_mode=pl.Buffered(1))

    in_specs = [act_spec(N_IN), act_spec(LAT)]
    in_specs += [const_spec(p.shape) for p in params]

    flops = 2 * b_pad * (N_IN * H1P + H1P * H2P + H2P * MLP
                         + LAT * H2P + H2P * H1P + H1P * N_INP)
    bytes_accessed = (sum(int(p.size) * p.dtype.itemsize for p in params)
                      + x_p.size * 4 + eps_p.size * 4
                      + b_pad * N_INP * 2 + b_pad * MLP * 4)
    cost = pl.CostEstimate(flops=int(flops),
                           transcendentals=int(b_pad * (LAT + N_INP)),
                           bytes_accessed=int(bytes_accessed))

    out_p, ml_p = pl.pallas_call(
        vae_kernel,
        grid=grid,
        out_shape=(
            jax.ShapeDtypeStruct((b_pad, N_INP), jnp.bfloat16),
            jax.ShapeDtypeStruct((b_pad, MLP), jnp.float32),
        ),
        in_specs=in_specs,
        out_specs=(act_spec(N_INP), act_spec(MLP)),
        compiler_params=pltpu.CompilerParams(
            dimension_semantics=("parallel",),
            vmem_limit_bytes=40 * 1024 * 1024),
        cost_estimate=cost,
    )(x_p, eps_p, *params)

    out = out_p[:B, :N_IN]      # PyTorch returns the flattened-shape output
    mu = ml_p[:B, :LAT]
    logvar = ml_p[:B, LAT:]
    return out, mu, logvar


def vae_reference(x, eps, params):
    """Pure-JAX reference with identical (padded, bf16) numerics."""
    (w1, b1, w2, b2, wh, bh, wd1, bd1, wd2, bd2, wd3, bd3) = params
    B = x.shape[0]
    xb = x.reshape(B, -1).astype(jnp.bfloat16)
    h = jnp.maximum(jnp.dot(xb, w1, preferred_element_type=jnp.float32) + b1, 0.0)
    h = h.astype(jnp.bfloat16)
    h = jnp.maximum(jnp.dot(h, w2, preferred_element_type=jnp.float32) + b2, 0.0)
    h = h.astype(jnp.bfloat16)
    ml = jnp.dot(h, wh, preferred_element_type=jnp.float32) + bh
    mu, logvar = ml[:, :LAT], ml[:, LAT:]
    z = (mu + eps * jnp.exp(0.5 * logvar)).astype(jnp.bfloat16)
    d = jnp.maximum(jnp.dot(z, wd1, preferred_element_type=jnp.float32) + bd1, 0.0)
    d = d.astype(jnp.bfloat16)
    d = jnp.maximum(jnp.dot(d, wd2, preferred_element_type=jnp.float32) + bd2, 0.0)
    d = d.astype(jnp.bfloat16)
    d = jnp.dot(d, wd3, preferred_element_type=jnp.float32) + bd3
    out = (0.5 * jnp.tanh(0.5 * d) + 0.5).astype(jnp.bfloat16)
    return out[:, :N_IN], mu, logvar


if __name__ == "__main__":
    key = jax.random.PRNGKey(0)
    k_param, k_x, k_eps = jax.random.split(key, 3)

    B, STEPS, FEATS = 2, 4, 209            # 4 * 209 == 836
    x = jax.random.normal(k_x, (B, STEPS, FEATS), jnp.float32)
    # TODO(synk): torch.randn_like is drawn outside the kernel with jax.random.
    eps = jax.random.normal(k_eps, (B, LAT), jnp.float32)

    params = init_params(k_param)

    out, mu, logvar = vae_forward(x, eps, params)
    jax.block_until_ready((out, mu, logvar))

    ref_out, ref_mu, ref_lv = vae_reference(x, eps, params)
    assert out.shape == (B, N_IN) and mu.shape == (B, LAT) and logvar.shape == (B, LAT)
    assert jnp.allclose(out.astype(jnp.float32), ref_out.astype(jnp.float32),
                        atol=2e-2, rtol=2e-2), \
        float(jnp.max(jnp.abs(out.astype(jnp.float32) - ref_out.astype(jnp.float32))))
    assert jnp.allclose(mu, ref_mu, atol=5e-3, rtol=5e-3), \
        float(jnp.max(jnp.abs(mu - ref_mu)))
    assert jnp.allclose(logvar, ref_lv, atol=5e-3, rtol=5e-3), \
        float(jnp.max(jnp.abs(logvar - ref_lv)))

    print("KERNEL_OK")
</pallas_src>

<mosaic_0001>
module attributes {stable_mosaic.version = 11 : i64} {
  func.func @vae_kernel(%arg0: i32, %arg1: memref<16x836xf32, #tpu.memory_space<vmem>>, %arg2: memref<16x64xf32, #tpu.memory_space<vmem>>, %arg3: memref<836x512xbf16, #tpu.memory_space<vmem>>, %arg4: memref<1x512xf32, #tpu.memory_space<vmem>>, %arg5: memref<512x256xbf16, #tpu.memory_space<vmem>>, %arg6: memref<1x256xf32, #tpu.memory_space<vmem>>, %arg7: memref<256x128xbf16, #tpu.memory_space<vmem>>, %arg8: memref<1x128xf32, #tpu.memory_space<vmem>>, %arg9: memref<64x256xbf16, #tpu.memory_space<vmem>>, %arg10: memref<1x256xf32, #tpu.memory_space<vmem>>, %arg11: memref<256x512xbf16, #tpu.memory_space<vmem>>, %arg12: memref<1x512xf32, #tpu.memory_space<vmem>>, %arg13: memref<512x896xbf16, #tpu.memory_space<vmem>>, %arg14: memref<1x896xf32, #tpu.memory_space<vmem>>, %arg15: memref<16x896xbf16, #tpu.memory_space<vmem>>, %arg16: memref<16x128xf32, #tpu.memory_space<vmem>>) attributes {dimension_semantics = [#tpu.dimension_semantics<parallel>], iteration_bounds = array<i64: 2>, scalar_prefetch = 0 : i64, scratch_operands = 0 : i64, tpu.core_type = #tpu.core_type<tc>, window_params = [{transform_indices = @transform_0, window_bounds = array<i64: 16, 836>}, {transform_indices = @transform_1, window_bounds = array<i64: 16, 64>}, {pipeline_mode = #tpu.pipeline_mode<synchronous>, transform_indices = @transform_2, window_bounds = array<i64: 836, 512>}, {pipeline_mode = #tpu.pipeline_mode<synchronous>, transform_indices = @transform_3, window_bounds = array<i64: 1, 512>}, {pipeline_mode = #tpu.pipeline_mode<synchronous>, transform_indices = @transform_4, window_bounds = array<i64: 512, 256>}, {pipeline_mode = #tpu.pipeline_mode<synchronous>, transform_indices = @transform_5, window_bounds = array<i64: 1, 256>}, {pipeline_mode = #tpu.pipeline_mode<synchronous>, transform_indices = @transform_6, window_bounds = array<i64: 256, 128>}, {pipeline_mode = #tpu.pipeline_mode<synchronous>, transform_indices = @transform_7, window_bounds = array<i64: 1, 128>}, {pipeline_mode = #tpu.pipeline_mode<synchronous>, transform_indices = @transform_8, window_bounds = array<i64: 64, 256>}, {pipeline_mode = #tpu.pipeline_mode<synchronous>, transform_indices = @transform_9, window_bounds = array<i64: 1, 256>}, {pipeline_mode = #tpu.pipeline_mode<synchronous>, transform_indices = @transform_10, window_bounds = array<i64: 256, 512>}, {pipeline_mode = #tpu.pipeline_mode<synchronous>, transform_indices = @transform_11, window_bounds = array<i64: 1, 512>}, {pipeline_mode = #tpu.pipeline_mode<synchronous>, transform_indices = @transform_12, window_bounds = array<i64: 512, 896>}, {pipeline_mode = #tpu.pipeline_mode<synchronous>, transform_indices = @transform_13, window_bounds = array<i64: 1, 896>}, {transform_indices = @transform_14, window_bounds = array<i64: 16, 896>}, {transform_indices = @transform_15, window_bounds = array<i64: 16, 128>}]} {
    %c0 = arith.constant 0 : index
    %c0_0 = arith.constant 0 : index
    %0 = vector.load %arg1[%c0, %c0_0] : memref<16x836xf32, #tpu.memory_space<vmem>>, vector<16x836xf32>
    %1 = arith.truncf %0 : vector<16x836xf32> to vector<16x836xbf16>
    %c0_1 = arith.constant 0 : index
    %c0_2 = arith.constant 0 : index
    %2 = vector.load %arg3[%c0_1, %c0_2] : memref<836x512xbf16, #tpu.memory_space<vmem>>, vector<836x512xbf16>
    %cst = arith.constant dense<0.000000e+00> : vector<16x512xf32>
    %3 = tpu.matmul %1, %2, %cst {dimension_numbers = #tpu.dot_dimension_numbers<[1], [0], [0], [1], [0, 0, 1, 1], [], []>} : vector<16x836xbf16>, vector<836x512xbf16>, vector<16x512xf32> -> vector<16x512xf32>
    %c0_3 = arith.constant 0 : index
    %c0_4 = arith.constant 0 : index
    %4 = vector.load %arg4[%c0_3, %c0_4] : memref<1x512xf32, #tpu.memory_space<vmem>>, vector<1x512xf32>
    %5 = vector.broadcast %4 : vector<1x512xf32> to vector<16x512xf32>
    %6 = arith.addf %3, %5 : vector<16x512xf32>
    %cst_5 = arith.constant 0.000000e+00 : f32
    %7 = vector.broadcast %cst_5 : f32 to vector<16x512xf32>
    %8 = arith.maximumf %6, %7 : vector<16x512xf32>
    %9 = arith.truncf %8 : vector<16x512xf32> to vector<16x512xbf16>
    %c0_6 = arith.constant 0 : index
    %c0_7 = arith.constant 0 : index
    %10 = vector.load %arg5[%c0_6, %c0_7] : memref<512x256xbf16, #tpu.memory_space<vmem>>, vector<512x256xbf16>
    %cst_8 = arith.constant dense<0.000000e+00> : vector<16x256xf32>
    %11 = tpu.matmul %9, %10, %cst_8 {dimension_numbers = #tpu.dot_dimension_numbers<[1], [0], [0], [1], [0, 0, 1, 1], [], []>} : vector<16x512xbf16>, vector<512x256xbf16>, vector<16x256xf32> -> vector<16x256xf32>
    %c0_9 = arith.constant 0 : index
    %c0_10 = arith.constant 0 : index
    %12 = vector.load %arg6[%c0_9, %c0_10] : memref<1x256xf32, #tpu.memory_space<vmem>>, vector<1x256xf32>
    %13 = vector.broadcast %12 : vector<1x256xf32> to vector<16x256xf32>
    %14 = arith.addf %11, %13 : vector<16x256xf32>
    %cst_11 = arith.constant 0.000000e+00 : f32
    %15 = vector.broadcast %cst_11 : f32 to vector<16x256xf32>
    %16 = arith.maximumf %14, %15 : vector<16x256xf32>
    %17 = arith.truncf %16 : vector<16x256xf32> to vector<16x256xbf16>
    %c0_12 = arith.constant 0 : index
    %c0_13 = arith.constant 0 : index
    %18 = vector.load %arg7[%c0_12, %c0_13] : memref<256x128xbf16, #tpu.memory_space<vmem>>, vector<256x128xbf16>
    %cst_14 = arith.constant dense<0.000000e+00> : vector<16x128xf32>
    %19 = tpu.matmul %17, %18, %cst_14 {dimension_numbers = #tpu.dot_dimension_numbers<[1], [0], [0], [1], [0, 0, 1, 1], [], []>} : vector<16x256xbf16>, vector<256x128xbf16>, vector<16x128xf32> -> vector<16x128xf32>
    %c0_15 = arith.constant 0 : index
    %c0_16 = arith.constant 0 : index
    %20 = vector.load %arg8[%c0_15, %c0_16] : memref<1x128xf32, #tpu.memory_space<vmem>>, vector<1x128xf32>
    %21 = vector.broadcast %20 : vector<1x128xf32> to vector<16x128xf32>
    %22 = arith.addf %19, %21 : vector<16x128xf32>
    %c0_17 = arith.constant 0 : index
    %c0_18 = arith.constant 0 : index
    %23 = vector.load %arg16[%c0_17, %c0_18] : memref<16x128xf32, #tpu.memory_space<vmem>>, vector<16x128xf32>
    tpu.vector_store %arg16[%c0_17, %c0_18], %22 {strides = array<i32>} : memref<16x128xf32, #tpu.memory_space<vmem>>, vector<16x128xf32>,
    %24 = vector.extract_strided_slice %22 {offsets = [0, 0], sizes = [16, 64], strides = [1, 1]} : vector<16x128xf32> to vector<16x64xf32>
    %25 = vector.extract_strided_slice %22 {offsets = [0, 64], sizes = [16, 64], strides = [1, 1]} : vector<16x128xf32> to vector<16x64xf32>
    %cst_19 = arith.constant 5.000000e-01 : f32
    %26 = vector.broadcast %cst_19 : f32 to vector<16x64xf32>
    %27 = arith.mulf %26, %25 : vector<16x64xf32>
    %28 = math.exp %27 : vector<16x64xf32>
    %c0_20 = arith.constant 0 : index
    %c0_21 = arith.constant 0 : index
    %29 = vector.load %arg2[%c0_20, %c0_21] : memref<16x64xf32, #tpu.memory_space<vmem>>, vector<16x64xf32>
    %30 = arith.mulf %29, %28 : vector<16x64xf32>
    %31 = arith.addf %24, %30 : vector<16x64xf32>
    %32 = arith.truncf %31 : vector<16x64xf32> to vector<16x64xbf16>
    %c0_22 = arith.constant 0 : index
    %c0_23 = arith.constant 0 : index
    %33 = vector.load %arg9[%c0_22, %c0_23] : memref<64x256xbf16, #tpu.memory_space<vmem>>, vector<64x256xbf16>
    %cst_24 = arith.constant dense<0.000000e+00> : vector<16x256xf32>
    %34 = tpu.matmul %32, %33, %cst_24 {dimension_numbers = #tpu.dot_dimension_numbers<[1], [0], [0], [1], [0, 0, 1, 1], [], []>} : vector<16x64xbf16>, vector<64x256xbf16>, vector<16x256xf32> -> vector<16x256xf32>
    %c0_25 = arith.constant 0 : index
    %c0_26 = arith.constant 0 : index
    %35 = vector.load %arg10[%c0_25, %c0_26] : memref<1x256xf32, #tpu.memory_space<vmem>>, vector<1x256xf32>
    %36 = vector.broadcast %35 : vector<1x256xf32> to vector<16x256xf32>
    %37 = arith.addf %34, %36 : vector<16x256xf32>
    %cst_27 = arith.constant 0.000000e+00 : f32
    %38 = vector.broadcast %cst_27 : f32 to vector<16x256xf32>
    %39 = arith.maximumf %37, %38 : vector<16x256xf32>
    %40 = arith.truncf %39 : vector<16x256xf32> to vector<16x256xbf16>
    %c0_28 = arith.constant 0 : index
    %c0_29 = arith.constant 0 : index
    %41 = vector.load %arg11[%c0_28, %c0_29] : memref<256x512xbf16, #tpu.memory_space<vmem>>, vector<256x512xbf16>
    %cst_30 = arith.constant dense<0.000000e+00> : vector<16x512xf32>
    %42 = tpu.matmul %40, %41, %cst_30 {dimension_numbers = #tpu.dot_dimension_numbers<[1], [0], [0], [1], [0, 0, 1, 1], [], []>} : vector<16x256xbf16>, vector<256x512xbf16>, vector<16x512xf32> -> vector<16x512xf32>
    %c0_31 = arith.constant 0 : index
    %c0_32 = arith.constant 0 : index
    %43 = vector.load %arg12[%c0_31, %c0_32] : memref<1x512xf32, #tpu.memory_space<vmem>>, vector<1x512xf32>
    %44 = vector.broadcast %43 : vector<1x512xf32> to vector<16x512xf32>
    %45 = arith.addf %42, %44 : vector<16x512xf32>
    %cst_33 = arith.constant 0.000000e+00 : f32
    %46 = vector.broadcast %cst_33 : f32 to vector<16x512xf32>
    %47 = arith.maximumf %45, %46 : vector<16x512xf32>
    %48 = arith.truncf %47 : vector<16x512xf32> to vector<16x512xbf16>
    %c0_34 = arith.constant 0 : index
    %c0_35 = arith.constant 0 : index
    %49 = vector.load %arg13[%c0_34, %c0_35] : memref<512x896xbf16, #tpu.memory_space<vmem>>, vector<512x896xbf16>
    %cst_36 = arith.constant dense<0.000000e+00> : vector<16x896xf32>
    %50 = tpu.matmul %48, %49, %cst_36 {dimension_numbers = #tpu.dot_dimension_numbers<[1], [0], [0], [1], [0, 0, 1, 1], [], []>} : vector<16x512xbf16>, vector<512x896xbf16>, vector<16x896xf32> -> vector<16x896xf32>
    %c0_37 = arith.constant 0 : index
    %c0_38 = arith.constant 0 : index
    %51 = vector.load %arg14[%c0_37, %c0_38] : memref<1x896xf32, #tpu.memory_space<vmem>>, vector<1x896xf32>
    %52 = vector.broadcast %51 : vector<1x896xf32> to vector<16x896xf32>
    %53 = arith.addf %50, %52 : vector<16x896xf32>
    %cst_39 = arith.constant 5.000000e-01 : f32
    %54 = vector.broadcast %cst_39 : f32 to vector<16x896xf32>
    %55 = arith.mulf %54, %53 : vector<16x896xf32>
    %56 = math.tanh %55 : vector<16x896xf32>
    %cst_40 = arith.constant 5.000000e-01 : f32
    %57 = vector.broadcast %cst_40 : f32 to vector<16x896xf32>
    %58 = arith.mulf %57, %56 : vector<16x896xf32>
    %cst_41 = arith.constant 5.000000e-01 : f32
    %59 = vector.broadcast %cst_41 : f32 to vector<16x896xf32>
    %60 = arith.addf %58, %59 : vector<16x896xf32>
    %61 = arith.truncf %60 : vector<16x896xf32> to vector<16x896xbf16>
    %c0_42 = arith.constant 0 : index
    %c0_43 = arith.constant 0 : index
    %62 = vector.load %arg15[%c0_42, %c0_43] : memref<16x896xbf16, #tpu.memory_space<vmem>>, vector<16x896xbf16>
    tpu.vector_store %arg15[%c0_42, %c0_43], %61 {strides = array<i32>} : memref<16x896xbf16, #tpu.memory_space<vmem>>, vector<16x896xbf16>,
    return
  }
  func.func @transform_0(%arg0: i32) -> (i32, i32) {
    %c0_i32 = arith.constant 0 : i32
    %c0_i32_0 = arith.constant 0 : i32
    return %arg0, %c0_i32 : i32, i32
  }
  func.func @transform_1(%arg0: i32) -> (i32, i32) {
    %c0_i32 = arith.constant 0 : i32
    %c0_i32_0 = arith.constant 0 : i32
    return %arg0, %c0_i32 : i32, i32
  }
  func.func @transform_2(%arg0: i32) -> (i32, i32) {
    %c0_i32 = arith.constant 0 : i32
    %c0_i32_0 = arith.constant 0 : i32
    %c0_i32_1 = arith.constant 0 : i32
    return %c0_i32, %c0_i32_0 : i32, i32
  }
  func.func @transform_3(%arg0: i32) -> (i32, i32) {
    %c0_i32 = arith.constant 0 : i32
    %c0_i32_0 = arith.constant 0 : i32
    %c0_i32_1 = arith.constant 0 : i32
    return %c0_i32, %c0_i32_0 : i32, i32
  }
  func.func @transform_4(%arg0: i32) -> (i32, i32) {
    %c0_i32 = arith.constant 0 : i32
    %c0_i32_0 = arith.constant 0 : i32
    %c0_i32_1 = arith.constant 0 : i32
    return %c0_i32, %c0_i32_0 : i32, i32
  }
  func.func @transform_5(%arg0: i32) -> (i32, i32) {
    %c0_i32 = arith.constant 0 : i32
    %c0_i32_0 = arith.constant 0 : i32
    %c0_i32_1 = arith.constant 0 : i32
    return %c0_i32, %c0_i32_0 : i32, i32
  }
  func.func @transform_6(%arg0: i32) -> (i32, i32) {
    %c0_i32 = arith.constant 0 : i32
    %c0_i32_0 = arith.constant 0 : i32
    %c0_i32_1 = arith.constant 0 : i32
    return %c0_i32, %c0_i32_0 : i32, i32
  }
  func.func @transform_7(%arg0: i32) -> (i32, i32) {
    %c0_i32 = arith.constant 0 : i32
    %c0_i32_0 = arith.constant 0 : i32
    %c0_i32_1 = arith.constant 0 : i32
    return %c0_i32, %c0_i32_0 : i32, i32
  }
  func.func @transform_8(%arg0: i32) -> (i32, i32) {
    %c0_i32 = arith.constant 0 : i32
    %c0_i32_0 = arith.constant 0 : i32
    %c0_i32_1 = arith.constant 0 : i32
    return %c0_i32, %c0_i32_0 : i32, i32
  }
  func.func @transform_9(%arg0: i32) -> (i32, i32) {
    %c0_i32 = arith.constant 0 : i32
    %c0_i32_0 = arith.constant 0 : i32
    %c0_i32_1 = arith.constant 0 : i32
    return %c0_i32, %c0_i32_0 : i32, i32
  }
  func.func @transform_10(%arg0: i32) -> (i32, i32) {
    %c0_i32 = arith.constant 0 : i32
    %c0_i32_0 = arith.constant 0 : i32
    %c0_i32_1 = arith.constant 0 : i32
    return %c0_i32, %c0_i32_0 : i32, i32
  }
  func.func @transform_11(%arg0: i32) -> (i32, i32) {
    %c0_i32 = arith.constant 0 : i32
    %c0_i32_0 = arith.constant 0 : i32
    %c0_i32_1 = arith.constant 0 : i32
    return %c0_i32, %c0_i32_0 : i32, i32
  }
  func.func @transform_12(%arg0: i32) -> (i32, i32) {
    %c0_i32 = arith.constant 0 : i32
    %c0_i32_0 = arith.constant 0 : i32
    %c0_i32_1 = arith.constant 0 : i32
    return %c0_i32, %c0_i32_0 : i32, i32
  }
  func.func @transform_13(%arg0: i32) -> (i32, i32) {
    %c0_i32 = arith.constant 0 : i32
    %c0_i32_0 = arith.constant 0 : i32
    %c0_i32_1 = arith.constant 0 : i32
    return %c0_i32, %c0_i32_0 : i32, i32
  }
  func.func @transform_14(%arg0: i32) -> (i32, i32) {
    %c0_i32 = arith.constant 0 : i32
    %c0_i32_0 = arith.constant 0 : i32
    return %arg0, %c0_i32 : i32, i32
  }
  func.func @transform_15(%arg0: i32) -> (i32, i32) {
    %c0_i32 = arith.constant 0 : i32
    %c0_i32_0 = arith.constant 0 : i32
    return %arg0, %c0_i32 : i32, i32
  }
}

</mosaic_0001>

<llo_original>
// kernel: vae_forward.1
$region0: #{vae_forward.1}
  #allocation0 [shape = 'u32[]', space=smem, size = 0x4, offset = 0x4, fixed_abs, tag = 'smem constant byte address 0x4 - core index']
  #allocation1 [shape = 'u32[144,128]{1,0:T(1,128)}', space=vmem, size = 0x12000, scoped, tag = 'internal scratch']
  %s0 = inlined_call_operand.vmem [shape: f32[32,836], index: 0, kind: input, shape index: {}]
  %s1 = inlined_call_operand.vmem [shape: f32[32,64], index: 1, kind: input, shape index: {}]
  %s2 = inlined_call_operand.hbm [shape: bf16[836,512], index: 2, kind: input, shape index: {}]
  %s3 = inlined_call_operand.vmem [shape: f32[1,512], index: 3, kind: input, shape index: {}]
  %s4 = inlined_call_operand.hbm [shape: bf16[512,256], index: 4, kind: input, shape index: {}]
  %s5 = inlined_call_operand.vmem [shape: f32[1,256], index: 5, kind: input, shape index: {}]
  %s6 = inlined_call_operand.vmem [shape: bf16[256,128], index: 6, kind: input, shape index: {}]
  %s7 = inlined_call_operand.vmem [shape: f32[1,128], index: 7, kind: input, shape index: {}]
  %s8 = inlined_call_operand.vmem [shape: bf16[64,256], index: 8, kind: input, shape index: {}]
  %s9 = inlined_call_operand.vmem [shape: f32[1,256], index: 9, kind: input, shape index: {}]
  %s10 = inlined_call_operand.hbm [shape: bf16[256,512], index: 10, kind: input, shape index: {}]
  %s11 = inlined_call_operand.vmem [shape: f32[1,512], index: 11, kind: input, shape index: {}]
  %s12 = inlined_call_operand.hbm [shape: bf16[512,896], index: 12, kind: input, shape index: {}]
  %s13 = inlined_call_operand.vmem [shape: f32[1,896], index: 13, kind: input, shape index: {}]
  %s14 = inlined_call_operand.vmem [shape: bf16[32,896], index: 14, kind: output, shape index: {0}]
  %s15 = inlined_call_operand.vmem [shape: f32[32,128], index: 15, kind: output, shape index: {1}]
  %16 = xla_tuple %s14, %s15
  %s17 = sld [smem:[#allocation0]]
  $region113: #{vae_forward.1} parent=0
    _
  %s19 = ssub.s32 1, %s17
  %s20 = scalar_select 0, %s19, %s17
  $region1: #{vae_forward.1} parent=0
    #allocation2 [shape = 'u8[860160]{0}', space=vmem, size = 0xd2000, scoped, tag = 'input window, operand 2, single buffered']
    #allocation3 [shape = 's32[2]{0}', space=sflag, size = 0x8, scoped, tag = 'scoped memory for vae_forward.1']
    #allocation4 [shape = 'u8[262144]{0}', space=vmem, size = 0x40000, scoped, tag = 'input window, operand 4, single buffered']
    #allocation5 [shape = 's32[1]{0}', space=sflag, size = 0x4, scoped, tag = 'scoped memory for vae_forward.1']
    #allocation6 [shape = 'u8[262144]{0}', space=vmem, size = 0x40000, scoped, tag = 'input window, operand 10, single buffered']
    #allocation7 [shape = 'u8[917504]{0}', space=vmem, size = 0xe0000, scoped, tag = 'input window, operand 12, single buffered']
    #allocation8 [shape = 's32[1]{0}', space=sflag, size = 0x4, scoped, tag = 'scoped memory for vae_forward.1']
    %21 = vsyncpa [#allocation3], 0
    %22 = vsyncpa [#allocation5], 0
    %23 = vsyncpa [#allocation8], 0
    loop: start=0, step=1, limit=4
    $region2: #{vae_forward.1} parent=1 // loop_pre_header
      _
    $region3: #{vae_forward.1} parent=1 // loop_header
      %s25 = sphi 0, %s29
      %p26 = scmp.ge.s32.totalorder %s25, 4
      %s35 = sphi 0, %s37
      %s38 = sphi 0, %s35
      %s39 = sphi 0, %s38
      %s55 = sphi 0, %s39
      %s61 = sphi 0, %s63
      %s64 = sphi 0, %s61
      %s65 = sphi 0, %s64
      %s81 = sphi 0, %s65
      %s85 = sphi 0, %s85
      %s87 = sphi 0, %s85
      %s88 = sphi 0, %s87
      %s102 = sphi 0, %s88
      %s106 = sphi 0, %s106
      %s108 = sphi 0, %s106
      %s109 = sphi 0, %s108
      %s123 = sphi 0, %s109
      %s127 = sphi 0, %s127
      %s129 = sphi 0, %s127
      %s130 = sphi 0, %s129
      %s144 = sphi 0, %s130
      %s148 = sphi 0, %s148
      %s150 = sphi 0, %s148
      %s151 = sphi 0, %s150
      %s165 = sphi 0, %s151
      %s169 = sphi 0, %s169
      %s171 = sphi 0, %s169
      %s172 = sphi 0, %s171
      %s186 = sphi 0, %s172
      %s190 = sphi 0, %s190
      %s192 = sphi 0, %s190
      %s193 = sphi 0, %s192
      %s207 = sphi 0, %s193
      %s211 = sphi 0, %s211
      %s213 = sphi 0, %s211
      %s214 = sphi 0, %s213
      %s228 = sphi 0, %s214
      %s232 = sphi 0, %s232
      %s234 = sphi 0, %s232
      %s235 = sphi 0, %s234
      %s249 = sphi 0, %s235
      %s253 = sphi 0, %s253
      %s255 = sphi 0, %s253
      %s256 = sphi 0, %s255
      %s270 = sphi 0, %s256
      %s274 = sphi 0, %s274
      %s276 = sphi 0, %s274
      %s277 = sphi 0, %s276
      %s291 = sphi 0, %s277
      %s295 = sphi 0, %s295
      %s297 = sphi 0, %s295
      %s298 = sphi 0, %s297
      %s312 = sphi 0, %s298
      %s316 = sphi 0, %s316
      %s318 = sphi 0, %s316
      %s319 = sphi 0, %s318
      %s333 = sphi 0, %s319
      %s339 = sphi 0, %s341
      %s342 = sphi 0, %s339
      %s343 = sphi 0, %s342
      %s359 = sphi 0, %s343
      %s365 = sphi 0, %s367
      %s368 = sphi 0, %s365
      %s369 = sphi 0, %s368
      %s385 = sphi 0, %s369
    $region4: #{vae_forward.1} parent=1 // loop_header_branch
      %28 = sbr.rel (%p26) target = $region8
    $region5: #{vae_forward.1} parent=1 // loop_body
      %s30 = ssub.s32 %s25, 1
      %s31 = ssub.s32 %s25, 2
      %s32 = sadd.s32 %s25, 1
      %s33 = ssub.s32 %s25, %s32
      %p34 = scmp.eq.s32.totalorder %s33, 0
      %s36 = sadd.s32 %s35, 1
      %s37 = scalar_select %p34, %s35, %s36
      %p40 = pneg %p34
      %p41 = scmp.eq.s32.totalorder %s25, 1
      %p42 = por %p40, %p41
      %p43 = scmp.ne.s32.totalorder %s35, %s38
      %p44 = scmp.eq.s32.totalorder %s25, 0
      %p45 = por %p43, %p44
      %p46 = scmp.ne.s32.totalorder %s35, %s38
      %p47 = scmp.eq.s32.totalorder %s30, 1
      %p48 = por %p46, %p47
      %p49 = scmp.ne.s32.totalorder %s38, %s39
      %p50 = scmp.eq.s32.totalorder %s30, 0
      %p51 = por %p49, %p50
      %p52 = scmp.ne.s32.totalorder %s38, %s39
      %p53 = scmp.eq.s32.totalorder %s31, 1
      %p54 = por %p52, %p53
      %p56 = scmp.ne.s32.totalorder %s39, %s55
      %p57 = scmp.eq.s32.totalorder %s31, 0
      %p58 = por %p56, %p57
      %s59 = ssub.s32 %s25, %s32
      %p60 = scmp.eq.s32.totalorder %s59, 0
      %s62 = sadd.s32 %s61, 1
      %s63 = scalar_select %p60, %s61, %s62
      %p66 = pneg %p60
      %p67 = scmp.eq.s32.totalorder %s25, 1
      %p68 = por %p66, %p67
      %p69 = scmp.ne.s32.totalorder %s61, %s64
      %p70 = scmp.eq.s32.totalorder %s25, 0
      %p71 = por %p69, %p70
      %p72 = scmp.ne.s32.totalorder %s61, %s64
      %p73 = scmp.eq.s32.totalorder %s30, 1
      %p74 = por %p72, %p73
      %p75 = scmp.ne.s32.totalorder %s64, %s65
      %p76 = scmp.eq.s32.totalorder %s30, 0
      %p77 = por %p75, %p76
      %p78 = scmp.ne.s32.totalorder %s64, %s65
      %p79 = scmp.eq.s32.totalorder %s31, 1
      %p80 = por %p78, %p79
      %p82 = scmp.ne.s32.totalorder %s65, %s81
      %p83 = scmp.eq.s32.totalorder %s31, 0
      %p84 = por %p82, %p83
      %s86 = sadd.s32 %s85, 1
      %p89 = scmp.eq.s32.totalorder %s25, 1
      %p90 = scmp.ne.s32.totalorder %s85, %s87
      %p91 = scmp.eq.s32.totalorder %s25, 0
      %p92 = por %p90, %p91
      %p93 = scmp.ne.s32.totalorder %s85, %s87
      %p94 = scmp.eq.s32.totalorder %s30, 1
      %p95 = por %p93, %p94
      %p96 = scmp.ne.s32.totalorder %s87, %s88
      %p97 = scmp.eq.s32.totalorder %s30, 0
      %p98 = por %p96, %p97
      %p99 = scmp.ne.s32.totalorder %s87, %s88
      %p100 = scmp.eq.s32.totalorder %s31, 1
      %p101 = por %p99, %p100
      %p103 = scmp.ne.s32.totalorder %s88, %s102
      %p104 = scmp.eq.s32.totalorder %s31, 0
      %p105 = por %p103, %p104
      %s107 = sadd.s32 %s106, 1
      %p110 = scmp.eq.s32.totalorder %s25, 1
      %p111 = scmp.ne.s32.totalorder %s106, %s108
      %p112 = scmp.eq.s32.totalorder %s25, 0
      %p113 = por %p111, %p112
      %p114 = scmp.ne.s32.totalorder %s106, %s108
      %p115 = scmp.eq.s32.totalorder %s30, 1
      %p116 = por %p114, %p115
      %p117 = scmp.ne.s32.totalorder %s108, %s109
      %p118 = scmp.eq.s32.totalorder %s30, 0
      %p119 = por %p117, %p118
      %p120 = scmp.ne.s32.totalorder %s108, %s109
      %p121 = scmp.eq.s32.totalorder %s31, 1
      %p122 = por %p120, %p121
      %p124 = scmp.ne.s32.totalorder %s109, %s123
      %p125 = scmp.eq.s32.totalorder %s31, 0
      %p126 = por %p124, %p125
      %s128 = sadd.s32 %s127, 1
      %p131 = scmp.eq.s32.totalorder %s25, 1
      %p132 = scmp.ne.s32.totalorder %s127, %s129
      %p133 = scmp.eq.s32.totalorder %s25, 0
      %p134 = por %p132, %p133
      %p135 = scmp.ne.s32.totalorder %s127, %s129
      %p136 = scmp.eq.s32.totalorder %s30, 1
      %p137 = por %p135, %p136
      %p138 = scmp.ne.s32.totalorder %s129, %s130
      %p139 = scmp.eq.s32.totalorder %s30, 0
      %p140 = por %p138, %p139
      %p141 = scmp.ne.s32.totalorder %s129, %s130
      %p142 = scmp.eq.s32.totalorder %s31, 1
      %p143 = por %p141, %p142
      %p145 = scmp.ne.s32.totalorder %s130, %s144
      %p146 = scmp.eq.s32.totalorder %s31, 0
      %p147 = por %p145, %p146
      %s149 = sadd.s32 %s148, 1
      %p152 = scmp.eq.s32.totalorder %s25, 1
      %p153 = scmp.ne.s32.totalorder %s148, %s150
      %p154 = scmp.eq.s32.totalorder %s25, 0
      %p155 = por %p153, %p154
      %p156 = scmp.ne.s32.totalorder %s148, %s150
      %p157 = scmp.eq.s32.totalorder %s30, 1
      %p158 = por %p156, %p157
      %p159 = scmp.ne.s32.totalorder %s150, %s151
      %p160 = scmp.eq.s32.totalorder %s30, 0
      %p161 = por %p159, %p160
      %p162 = scmp.ne.s32.totalorder %s150, %s151
      %p163 = scmp.eq.s32.totalorder %s31, 1
      %p164 = por %p162, %p163
      %p166 = scmp.ne.s32.totalorder %s151, %s165
      %p167 = scmp.eq.s32.totalorder %s31, 0
      %p168 = por %p166, %p167
      %s170 = sadd.s32 %s169, 1
      %p173 = scmp.eq.s32.totalorder %s25, 1
      %p174 = scmp.ne.s32.totalorder %s169, %s171
      %p175 = scmp.eq.s32.totalorder %s25, 0
      %p176 = por %p174, %p175
      %p177 = scmp.ne.s32.totalorder %s169, %s171
      %p178 = scmp.eq.s32.totalorder %s30, 1
      %p179 = por %p177, %p178
      %p180 = scmp.ne.s32.totalorder %s171, %s172
      %p181 = scmp.eq.s32.totalorder %s30, 0
      %p182 = por %p180, %p181
      %p183 = scmp.ne.s32.totalorder %s171, %s172
      %p184 = scmp.eq.s32.totalorder %s31, 1
      %p185 = por %p183, %p184
      %p187 = scmp.ne.s32.totalorder %s172, %s186
      %p188 = scmp.eq.s32.totalorder %s31, 0
      %p189 = por %p187, %p188
      %s191 = sadd.s32 %s190, 1
      %p194 = scmp.eq.s32.totalorder %s25, 1
      %p195 = scmp.ne.s32.totalorder %s190, %s192
      %p196 = scmp.eq.s32.totalorder %s25, 0
      %p197 = por %p195, %p196
      %p198 = scmp.ne.s32.totalorder %s190, %s192
      %p199 = scmp.eq.s32.totalorder %s30, 1
      %p200 = por %p198, %p199
      %p201 = scmp.ne.s32.totalorder %s192, %s193
      %p202 = scmp.eq.s32.totalorder %s30, 0
      %p203 = por %p201, %p202
      %p204 = scmp.ne.s32.totalorder %s192, %s193
      %p205 = scmp.eq.s32.totalorder %s31, 1
      %p206 = por %p204, %p205
      %p208 = scmp.ne.s32.totalorder %s193, %s207
      %p209 = scmp.eq.s32.totalorder %s31, 0
      %p210 = por %p208, %p209
      %s212 = sadd.s32 %s211, 1
      %p215 = scmp.eq.s32.totalorder %s25, 1
      %p216 = scmp.ne.s32.totalorder %s211, %s213
      %p217 = scmp.eq.s32.totalorder %s25, 0
      %p218 = por %p216, %p217
      %p219 = scmp.ne.s32.totalorder %s211, %s213
      %p220 = scmp.eq.s32.totalorder %s30, 1
      %p221 = por %p219, %p220
      %p222 = scmp.ne.s32.totalorder %s213, %s214
      %p223 = scmp.eq.s32.totalorder %s30, 0
      %p224 = por %p222, %p223
      %p225 = scmp.ne.s32.totalorder %s213, %s214
      %p226 = scmp.eq.s32.totalorder %s31, 1
      %p227 = por %p225, %p226
      %p229 = scmp.ne.s32.totalorder %s214, %s228
      %p230 = scmp.eq.s32.totalorder %s31, 0
      %p231 = por %p229, %p230
      %s233 = sadd.s32 %s232, 1
      %p236 = scmp.eq.s32.totalorder %s25, 1
      %p237 = scmp.ne.s32.totalorder %s232, %s234
      %p238 = scmp.eq.s32.totalorder %s25, 0
      %p239 = por %p237, %p238
      %p240 = scmp.ne.s32.totalorder %s232, %s234
      %p241 = scmp.eq.s32.totalorder %s30, 1
      %p242 = por %p240, %p241
      %p243 = scmp.ne.s32.totalorder %s234, %s235
      %p244 = scmp.eq.s32.totalorder %s30, 0
      %p245 = por %p243, %p244
      %p246 = scmp.ne.s32.totalorder %s234, %s235
      %p247 = scmp.eq.s32.totalorder %s31, 1
      %p248 = por %p246, %p247
      %p250 = scmp.ne.s32.totalorder %s235, %s249
      %p251 = scmp.eq.s32.totalorder %s31, 0
      %p252 = por %p250, %p251
      %s254 = sadd.s32 %s253, 1
      %p257 = scmp.eq.s32.totalorder %s25, 1
      %p258 = scmp.ne.s32.totalorder %s253, %s255
      %p259 = scmp.eq.s32.totalorder %s25, 0
      %p260 = por %p258, %p259
      %p261 = scmp.ne.s32.totalorder %s253, %s255
      %p262 = scmp.eq.s32.totalorder %s30, 1
      %p263 = por %p261, %p262
      %p264 = scmp.ne.s32.totalorder %s255, %s256
      %p265 = scmp.eq.s32.totalorder %s30, 0
      %p266 = por %p264, %p265
      %p267 = scmp.ne.s32.totalorder %s255, %s256
      %p268 = scmp.eq.s32.totalorder %s31, 1
      %p269 = por %p267, %p268
      %p271 = scmp.ne.s32.totalorder %s256, %s270
      %p272 = scmp.eq.s32.totalorder %s31, 0
      %p273 = por %p271, %p272
      %s275 = sadd.s32 %s274, 1
      %p278 = scmp.eq.s32.totalorder %s25, 1
      %p279 = scmp.ne.s32.totalorder %s274, %s276
      %p280 = scmp.eq.s32.totalorder %s25, 0
      %p281 = por %p279, %p280
      %p282 = scmp.ne.s32.totalorder %s274, %s276
      %p283 = scmp.eq.s32.totalorder %s30, 1
      %p284 = por %p282, %p283
      %p285 = scmp.ne.s32.totalorder %s276, %s277
      %p286 = scmp.eq.s32.totalorder %s30, 0
      %p287 = por %p285, %p286
      %p288 = scmp.ne.s32.totalorder %s276, %s277
      %p289 = scmp.eq.s32.totalorder %s31, 1
      %p290 = por %p288, %p289
      %p292 = scmp.ne.s32.totalorder %s277, %s291
      %p293 = scmp.eq.s32.totalorder %s31, 0
      %p294 = por %p292, %p293
      %s296 = sadd.s32 %s295, 1
      %p299 = scmp.eq.s32.totalorder %s25, 1
      %p300 = scmp.ne.s32.totalorder %s295, %s297
      %p301 = scmp.eq.s32.totalorder %s25, 0
      %p302 = por %p300, %p301
      %p303 = scmp.ne.s32.totalorder %s295, %s297
      %p304 = scmp.eq.s32.totalorder %s30, 1
      %p305 = por %p303, %p304
      %p306 = scmp.ne.s32.totalorder %s297, %s298
      %p307 = scmp.eq.s32.totalorder %s30, 0
      %p308 = por %p306, %p307
      %p309 = scmp.ne.s32.totalorder %s297, %s298
      %p310 = scmp.eq.s32.totalorder %s31, 1
      %p311 = por %p309, %p310
      %p313 = scmp.ne.s32.totalorder %s298, %s312
      %p314 = scmp.eq.s32.totalorder %s31, 0
      %p315 = por %p313, %p314
      %s317 = sadd.s32 %s316, 1
      %p320 = scmp.eq.s32.totalorder %s25, 1
      %p321 = scmp.ne.s32.totalorder %s316, %s318
      %p322 = scmp.eq.s32.totalorder %s25, 0
      %p323 = por %p321, %p322
      %p324 = scmp.ne.s32.totalorder %s316, %s318
      %p325 = scmp.eq.s32.totalorder %s30, 1
      %p326 = por %p324, %p325
      %p327 = scmp.ne.s32.totalorder %s318, %s319
      %p328 = scmp.eq.s32.totalorder %s30, 0
      %p329 = por %p327, %p328
      %p330 = scmp.ne.s32.totalorder %s318, %s319
      %p331 = scmp.eq.s32.totalorder %s31, 1
      %p332 = por %p330, %p331
      %p334 = scmp.ne.s32.totalorder %s319, %s333
      %p335 = scmp.eq.s32.totalorder %s31, 0
      %p336 = por %p334, %p335
      %s337 = ssub.s32 %s25, %s32
      %p338 = scmp.eq.s32.totalorder %s337, 0
      %s340 = sadd.s32 %s339, 1
      %s341 = scalar_select %p338, %s339, %s340
      %p344 = pneg %p338
      %p345 = scmp.eq.s32.totalorder %s25, 1
      %p346 = por %p344, %p345
      %p347 = scmp.ne.s32.totalorder %s339, %s342
      %p348 = scmp.eq.s32.totalorder %s25, 0
      %p349 = por %p347, %p348
      %p350 = scmp.ne.s32.totalorder %s339, %s342
      %p351 = scmp.eq.s32.totalorder %s30, 1
      %p352 = por %p350, %p351
      %p353 = scmp.ne.s32.totalorder %s342, %s343
      %p354 = scmp.eq.s32.totalorder %s30, 0
      %p355 = por %p353, %p354
      %p356 = scmp.ne.s32.totalorder %s342, %s343
      %p357 = scmp.eq.s32.totalorder %s31, 1
      %p358 = por %p356, %p357
      %p360 = scmp.ne.s32.totalorder %s343, %s359
      %p361 = scmp.eq.s32.totalorder %s31, 0
      %p362 = por %p360, %p361
      %s363 = ssub.s32 %s25, %s32
      %p364 = scmp.eq.s32.totalorder %s363, 0
      %s366 = sadd.s32 %s365, 1
      %s367 = scalar_select %p364, %s365, %s366
      %p370 = pneg %p364
      %p371 = scmp.eq.s32.totalorder %s25, 1
      %p372 = por %p370, %p371
      %p373 = scmp.ne.s32.totalorder %s365, %s368
      %p374 = scmp.eq.s32.totalorder %s25, 0
      %p375 = por %p373, %p374
      %p376 = scmp.ne.s32.totalorder %s365, %s368
      %p377 = scmp.eq.s32.totalorder %s30, 1
      %p378 = por %p376, %p377
      %p379 = scmp.ne.s32.totalorder %s368, %s369
      %p380 = scmp.eq.s32.totalorder %s30, 0
      %p381 = por %p379, %p380
      %p382 = scmp.ne.s32.totalorder %s368, %s369
      %p383 = scmp.eq.s32.totalorder %s31, 1
      %p384 = por %p382, %p383
      %p386 = scmp.ne.s32.totalorder %s369, %s385
      %p387 = scmp.eq.s32.totalorder %s31, 0
      %p388 = por %p386, %p387
      %p389 = scmp.le.s32.totalorder 1, %s25
      %p390 = scmp.lt.s32.totalorder %s25, 3
      %p391 = pnand %p389, %p390
      %p392 = pneg %p391
      // Predicated region
      $region9: #{vae_forward.1} parent=5 // pred_check
        _
      $region10: #{vae_forward.1} parent=5 // pred_check_branch
        %394 = sbr.rel (%p391) target = $region12
      $region11: #{vae_forward.1} parent=5 // pred_region
        %s395 = ssub.s32 %s25, 1
        // Predicated region
        $region13: #{vae_forward.1} parent=11 // pred_check
          %p396 = pneg %p98
        $region14: #{vae_forward.1} parent=11 // pred_check_branch
          %398 = sbr.rel (%p396) target = $region16
        $region15: #{vae_forward.1} parent=11 // pred_region
          %s400 = ssub.s32 26880, 26880
          %401 = vsyncadd [#allocation3], %s400
          %s402 = sshll.u32 [#allocation2], 4
          %s403 = int_to_ptr.vmem [resolvable:$true] %s402
          %408 = dma.hbm_to_vmem [thread:$0]  %s2, 26880, %s403, [#allocation3], 256, 256, 16
        $region16: #{vae_forward.1} parent=11 // pred_fallthru
          _
        // Predicated region
        $region17: #{vae_forward.1} parent=11 // pred_check
          %p409 = pneg %p119
        $region18: #{vae_forward.1} parent=11 // pred_check_branch
          %411 = sbr.rel (%p409) target = $region20
        $region19: #{vae_forward.1} parent=11 // pred_region
          _
        $region20: #{vae_forward.1} parent=11 // pred_fallthru
          _
        // Predicated region
        $region21: #{vae_forward.1} parent=11 // pred_check
          %p412 = pneg %p140
        $region22: #{vae_forward.1} parent=11 // pred_check_branch
          %414 = sbr.rel (%p412) target = $region24
        $region23: #{vae_forward.1} parent=11 // pred_region
          %s416 = ssub.s32 8192, 8192
          %417 = vsyncadd [#allocation5], %s416
          %s418 = sshll.u32 [#allocation4], 4
          %s419 = int_to_ptr.vmem [resolvable:$true] %s418
          %424 = dma.hbm_to_vmem [thread:$0]  %s4, 8192, %s419, [#allocation5], 128, 128, 8
        $region24: #{vae_forward.1} parent=11 // pred_fallthru
          _
        // Predicated region
        $region25: #{vae_forward.1} parent=11 // pred_check
          %p425 = pneg %p161
        $region26: #{vae_forward.1} parent=11 // pred_check_branch
          %427 = sbr.rel (%p425) target = $region28
        $region27: #{vae_forward.1} parent=11 // pred_region
          _
        $region28: #{vae_forward.1} parent=11 // pred_fallthru
          _
        // Predicated region
        $region29: #{vae_forward.1} parent=11 // pred_check
          %p428 = pneg %p182
        $region30: #{vae_forward.1} parent=11 // pred_check_branch
          %430 = sbr.rel (%p428) target = $region32
        $region31: #{vae_forward.1} parent=11 // pred_region
          _
        $region32: #{vae_forward.1} parent=11 // pred_fallthru
          _
        // Predicated region
        $region33: #{vae_forward.1} parent=11 // pred_check
          %p431 = pneg %p203
        $region34: #{vae_forward.1} parent=11 // pred_check_branch
          %433 = sbr.rel (%p431) target = $region36
        $region35: #{vae_forward.1} parent=11 // pred_region
          _
        $region36: #{vae_forward.1} parent=11 // pred_fallthru
          _
        // Predicated region
        $region37: #{vae_forward.1} parent=11 // pred_check
          %p434 = pneg %p224
        $region38: #{vae_forward.1} parent=11 // pred_check_branch
          %436 = sbr.rel (%p434) target = $region40
        $region39: #{vae_forward.1} parent=11 // pred_region
          _
        $region40: #{vae_forward.1} parent=11 // pred_fallthru
          _
        // Predicated region
        $region41: #{vae_forward.1} parent=11 // pred_check
          %p437 = pneg %p245
        $region42: #{vae_forward.1} parent=11 // pred_check_branch
          %439 = sbr.rel (%p437) target = $region44
        $region43: #{vae_forward.1} parent=11 // pred_region
          _
        $region44: #{vae_forward.1} parent=11 // pred_fallthru
          _
        // Predicated region
        $region45: #{vae_forward.1} parent=11 // pred_check
          %p440 = pneg %p266
        $region46: #{vae_forward.1} parent=11 // pred_check_branch
          %442 = sbr.rel (%p440) target = $region48
        $region47: #{vae_forward.1} parent=11 // pred_region
          %s444 = ssub.s32 8192, 8192
          %445 = vsyncadd [#allocation5], %s444
          %s446 = sshll.u32 [#allocation6], 4
          %s447 = int_to_ptr.vmem [resolvable:$true] %s446
          %452 = dma.hbm_to_vmem [thread:$0]  %s10, 8192, %s447, [#allocation5], 256, 256, 16
        $region48: #{vae_forward.1} parent=11 // pred_fallthru
          _
        // Predicated region
        $region49: #{vae_forward.1} parent=11 // pred_check
          %p453 = pneg %p287
        $region50: #{vae_forward.1} parent=11 // pred_check_branch
          %455 = sbr.rel (%p453) target = $region52
        $region51: #{vae_forward.1} parent=11 // pred_region
          _
        $region52: #{vae_forward.1} parent=11 // pred_fallthru
          _
        // Predicated region
        $region53: #{vae_forward.1} parent=11 // pred_check
          %p456 = pneg %p308
        $region54: #{vae_forward.1} parent=11 // pred_check_branch
          %458 = sbr.rel (%p456) target = $region56
        $region55: #{vae_forward.1} parent=11 // pred_region
          %s460 = ssub.s32 28672, 28672
          %461 = vsyncadd [#allocation8], %s460
          %s462 = sshll.u32 [#allocation7], 4
          %s463 = int_to_ptr.vmem [resolvable:$true] %s462
          %468 = dma.hbm_to_vmem [thread:$0]  %s12, 28672, %s463, [#allocation8], 448, 448, 28
        $region56: #{vae_forward.1} parent=11 // pred_fallthru
          _
        // Predicated region
        $region57: #{vae_forward.1} parent=11 // pred_check
          %p469 = pneg %p329
        $region58: #{vae_forward.1} parent=11 // pred_check_branch
          %471 = sbr.rel (%p469) target = $region60
        $region59: #{vae_forward.1} parent=11 // pred_region
          _
        $region60: #{vae_forward.1} parent=11 // pred_fallthru
          _
      $region12: #{vae_forward.1} parent=5 // pred_fallthru
        _
      %p472 = scmp.lt.s32.totalorder %s25, 2
      // Predicated region
      $region61: #{vae_forward.1} parent=5 // pred_check
        %p473 = pneg %p472
      $region62: #{vae_forward.1} parent=5 // pred_check_branch
        %475 = sbr.rel (%p473) target = $region64
      $region63: #{vae_forward.1} parent=5 // pred_region
        // Predicated region
        $region65: #{vae_forward.1} parent=63 // pred_check
          %p476 = pneg %p45
        $region66: #{vae_forward.1} parent=63 // pred_check_branch
          %478 = sbr.rel (%p476) target = $region68
        $region67: #{vae_forward.1} parent=63 // pred_region
          %s479 = smul.u32 2, %s25
          %p480 = scmp.lt.s32.totalorder %s479, 3
          %s481 = scalar_select %p480, %s479, 3
          %s482 = smul.addr %s481, 7
          %s483 = smul.addr %s482, 8
          %s484 = scalar_lea.vmem %s0, %s483
          %s485 = smul.u32 2, %s25
        $region68: #{vae_forward.1} parent=63 // pred_fallthru
          _
        // Predicated region
        $region69: #{vae_forward.1} parent=63 // pred_check
          %p486 = pneg %p71
        $region70: #{vae_forward.1} parent=63 // pred_check_branch
          %488 = sbr.rel (%p486) target = $region72
        $region71: #{vae_forward.1} parent=63 // pred_region
          %s489 = smul.u32 2, %s25
          %p490 = scmp.lt.s32.totalorder %s489, 3
          %s491 = scalar_select %p490, %s489, 3
          %s492 = smul.addr %s491, 8
          %s493 = scalar_lea.vmem %s1, %s492
          %s494 = smul.u32 2, %s25
        $region72: #{vae_forward.1} parent=63 // pred_fallthru
          _
      $region64: #{vae_forward.1} parent=5 // pred_fallthru
        _
      %p495 = scmp.le.s32.totalorder 1, %s25
      %p496 = scmp.lt.s32.totalorder %s25, 3
      %p497 = pnand %p495, %p496
      %p498 = pneg %p497
      // Predicated region
      $region73: #{vae_forward.1} parent=5 // pred_check
        _
      $region74: #{vae_forward.1} parent=5 // pred_check_branch
        %500 = sbr.rel (%p497) target = $region76
      $region75: #{vae_forward.1} parent=5 // pred_region
        %s501 = ssub.s32 %s25, 1
        // Predicated region
        $region77: #{vae_forward.1} parent=75 // pred_check
          %p502 = pneg %p98
        $region78: #{vae_forward.1} parent=75 // pred_check_branch
          %504 = sbr.rel (%p502) target = $region80
        $region79: #{vae_forward.1} parent=75 // pred_region
          %505 = dma.done [#allocation3], 26880
        $region80: #{vae_forward.1} parent=75 // pred_fallthru
          _
        // Predicated region
        $region81: #{vae_forward.1} parent=75 // pred_check
          %p506 = pneg %p140
        $region82: #{vae_forward.1} parent=75 // pred_check_branch
          %508 = sbr.rel (%p506) target = $region84
        $region83: #{vae_forward.1} parent=75 // pred_region
          %509 = dma.done [#allocation5], 8192
        $region84: #{vae_forward.1} parent=75 // pred_fallthru
          _
        // Predicated region
        $region85: #{vae_forward.1} parent=75 // pred_check
          %p510 = pneg %p266
        $region86: #{vae_forward.1} parent=75 // pred_check_branch
          %512 = sbr.rel (%p510) target = $region88
        $region87: #{vae_forward.1} parent=75 // pred_region
          %513 = dma.done [#allocation5], 8192
        $region88: #{vae_forward.1} parent=75 // pred_fallthru
          _
        // Predicated region
        $region89: #{vae_forward.1} parent=75 // pred_check
          %p514 = pneg %p308
        $region90: #{vae_forward.1} parent=75 // pred_check_branch
          %516 = sbr.rel (%p514) target = $region92
        $region91: #{vae_forward.1} parent=75 // pred_region
          %517 = dma.done [#allocation8], 28672
        $region92: #{vae_forward.1} parent=75 // pred_fallthru
          _
        %s518 = smul.u32 2, %s30
        %p519 = scmp.lt.s32.totalorder %s518, 3
        %s520 = scalar_select %p519, %s518, 3
        %s521 = smul.addr %s520, 7
        %s522 = smul.addr %s521, 8
        %s523 = scalar_lea.vmem %s0, %s522
        %p524 = pneg %p51
        %p525 = pneg %p48
        %s526 = smul.u32 2, %s30
        %p527 = scmp.lt.s32.totalorder %s526, 3
        %s528 = scalar_select %p527, %s526, 3
        %s529 = smul.addr %s528, 8
        %s530 = scalar_lea.vmem %s1, %s529
        %p531 = pneg %p77
        %p532 = pneg %p74
        %p533 = pneg %p98
        %p534 = pneg %p95
        %p535 = pneg %p119
        %p536 = pneg %p116
        %p537 = pneg %p140
        %p538 = pneg %p137
        %p539 = pneg %p161
        %p540 = pneg %p158
        %p541 = pneg %p182
        %p542 = pneg %p179
        %p543 = pneg %p203
        %p544 = pneg %p200
        %p545 = pneg %p224
        %p546 = pneg %p221
        %p547 = pneg %p245
        %p548 = pneg %p242
        %p549 = pneg %p266
        %p550 = pneg %p263
        %p551 = pneg %p287
        %p552 = pneg %p284
        %p553 = pneg %p308
        %p554 = pneg %p305
        %p555 = pneg %p329
        %p556 = pneg %p326
        %p557 = pneg %p355
        %p558 = pneg %p352
        %s559 = smul.u32 2, %s30
        %p560 = scmp.lt.s32.totalorder %s559, 3
        %s561 = scalar_select %p560, %s559, 3
        %s562 = smul.addr %s561, 7
        %s563 = smul.addr %s562, 4
        %s564 = scalar_lea.vmem %s14, %s563
        %p565 = pneg %p381
        %p566 = pneg %p378
        %s567 = smul.u32 2, %s30
        %p568 = scmp.lt.s32.totalorder %s567, 3
        %s569 = scalar_select %p568, %s567, 3
        %s570 = smul.addr %s569, 8
        %s571 = scalar_lea.vmem %s15, %s570
        %s572 = smul.u32 2, %s30
        %p573 = scmp.lt.s32.totalorder %s572, 3
        %s574 = scalar_select %p573, %s572, 3
        %s575 = smul.addr %s574, 7
        %s576 = smul.addr %s575, 8
        %s577 = scalar_lea.vmem %s0, %s576
        %s578 = smul.u32 2, %s30
        %s579 = smul.u32 2, %s30
        %p580 = scmp.lt.s32.totalorder %s579, 3
        %s581 = scalar_select %p580, %s579, 3
        %s582 = smul.addr %s581, 8
        %s583 = scalar_lea.vmem %s1, %s582
        %s584 = smul.u32 2, %s30
        %s585 = smul.u32 2, %s30
        %p586 = scmp.lt.s32.totalorder %s585, 3
        %s587 = scalar_select %p586, %s585, 3
        %s588 = smul.addr %s587, 7
        %s589 = smul.addr %s588, 4
        %s590 = scalar_lea.vmem %s14, %s589
        %s591 = smul.u32 2, %s30
        %s592 = smul.u32 2, %s30
        %p593 = scmp.lt.s32.totalorder %s592, 3
        %s594 = scalar_select %p593, %s592, 3
        %s595 = smul.addr %s594, 8
        %s596 = scalar_lea.vmem %s15, %s595
        %s597 = smul.u32 2, %s30
        %v599 = vld [vmem:[%s577] sm:$0xff]
        %v600 = vld [vmem:[%s577 + $0x8] sm:$0xff]
        %v601 = vld [vmem:[%s577 + $0x10] sm:$0xff]
        %v602 = vld [vmem:[%s577 + $0x18] sm:$0xff]
        %v603 = vld [vmem:[%s577 + $0x20] sm:$0xff]
        %v604 = vld [vmem:[%s577 + $0x28] sm:$0xff]
        %v605 = vld [vmem:[%s577 + $0x30] sm:$0xff]
        %v606 = vld [vmem:[%s577 + $0x38] sm:$0xff]
        %v607 = vld [vmem:[%s577 + $0x40] sm:$0xff]
        %v608 = vld [vmem:[%s577 + $0x48] sm:$0xff]
        %v609 = vld [vmem:[%s577 + $0x50] sm:$0xff]
        %v610 = vld [vmem:[%s577 + $0x58] sm:$0xff]
        %v611 = vld [vmem:[%s577 + $0x60] sm:$0xff]
        %v612 = vld [vmem:[%s577 + $0x68] sm:$0xff]
        %v613 = vpack.c.bf16 %v606, %v599
        %v614 = vpack.c.bf16 %v607, %v600
        %v615 = vpack.c.bf16 %v608, %v601
        %v616 = vpack.c.bf16 %v609, %v602
        %v617 = vpack.c.bf16 %v610, %v603
        %v618 = vpack.c.bf16 %v611, %v604
        %v619 = vpack.c.bf16 %v612, %v605
        %v620 = vld [vmem:[#allocation2] sm:$0xff]
        %v621 = vld [vmem:[#allocation2 + $0x8] sm:$0xff]
        %v622 = vld [vmem:[#allocation2 + $0x10] sm:$0xff]
        %v623 = vld [vmem:[#allocation2 + $0x18] sm:$0xff]
        %v624 = vld [vmem:[#allocation2 + $0x20] sm:$0xff]
        %v625 = vld [vmem:[#allocation2 + $0x28] sm:$0xff]
        %v626 = vld [vmem:[#allocation2 + $0x30] sm:$0xff]
        %v627 = vld [vmem:[#allocation2 + $0x38] sm:$0xff]
        %v628 = vld [vmem:[#allocation2 + $0x40] sm:$0xff]
        %v629 = vld [vmem:[#allocation2 + $0x48] sm:$0xff]
        %v630 = vld [vmem:[#allocation2 + $0x50] sm:$0xff]
        %v631 = vld [vmem:[#allocation2 + $0x58] sm:$0xff]
        %v632 = vld [vmem:[#allocation2 + $0x60] sm:$0xff]
        %v633 = vld [vmem:[#allocation2 + $0x68] sm:$0xff]
        %v634 = vld [vmem:[#allocation2 + $0x70] sm:$0xff]
        %v635 = vld [vmem:[#allocation2 + $0x78] sm:$0xff]
        %v636 = vld [vmem:[#allocation2 + $0x80] sm:$0xff]
        %v637 = vld [vmem:[#allocation2 + $0x88] sm:$0xff]
        %v638 = vld [vmem:[#allocation2 + $0x90] sm:$0xff]
        %v639 = vld [vmem:[#allocation2 + $0x98] sm:$0xff]
        %v640 = vld [vmem:[#allocation2 + $0xa0] sm:$0xff]
        %v641 = vld [vmem:[#allocation2 + $0xa8] sm:$0xff]
        %v642 = vld [vmem:[#allocation2 + $0xb0] sm:$0xff]
        %v643 = vld [vmem:[#allocation2 + $0xb8] sm:$0xff]
        %v644 = vld [vmem:[#allocation2 + $0xc0] sm:$0xff]
        %v645 = vld [vmem:[#allocation2 + $0xc8] sm:$0xff]
        %v646 = vld [vmem:[#allocation2 + $0xd0] sm:$0xff]
        %v647 = vld [vmem:[#allocation2 + $0xd8] sm:$0xff]
        %v648 = vld [vmem:[#allocation2 + $0xe0] sm:$0xff]
        %v649 = vld [vmem:[#allocation2 + $0xe8] sm:$0xff]
        %v650 = vld [vmem:[#allocation2 + $0xf0] sm:$0xff]
        %v651 = vld [vmem:[#allocation2 + $0xf8] sm:$0xff]
        %v652 = vld [vmem:[#allocation2 + $0x100] sm:$0xff]
        %v653 = vld [vmem:[#allocation2 + $0x108] sm:$0xff]
        %v654 = vld [vmem:[#allocation2 + $0x110] sm:$0xff]
        %v655 = vld [vmem:[#allocation2 + $0x118] sm:$0xff]
        %v656 = vld [vmem:[#allocation2 + $0x120] sm:$0xff]
        %v657 = vld [vmem:[#allocation2 + $0x128] sm:$0xff]
        %v658 = vld [vmem:[#allocation2 + $0x130] sm:$0xff]
        %v659 = vld [vmem:[#allocation2 + $0x138] sm:$0xff]
        %v660 = vld [vmem:[#allocation2 + $0x140] sm:$0xff]
        %v661 = vld [vmem:[#allocation2 + $0x148] sm:$0xff]
        %v662 = vld [vmem:[#allocation2 + $0x150] sm:$0xff]
        %v663 = vld [vmem:[#allocation2 + $0x158] sm:$0xff]
        %v664 = vld [vmem:[#allocation2 + $0x160] sm:$0xff]
        %v665 = vld [vmem:[#allocation2 + $0x168] sm:$0xff]
        %v666 = vld [vmem:[#allocation2 + $0x170] sm:$0xff]
        %v667 = vld [vmem:[#allocation2 + $0x178] sm:$0xff]
        %v668 = vld [vmem:[#allocation2 + $0x180] sm:$0xff]
        %v669 = vld [vmem:[#allocation2 + $0x188] sm:$0xff]
        %v670 = vld [vmem:[#allocation2 + $0x190] sm:$0xff]
        %v671 = vld [vmem:[#allocation2 + $0x198] sm:$0xff]
        %v672 = vld [vmem:[#allocation2 + $0x1a0] sm:$0xff]
        %v673 = vld [vmem:[#allocation2 + $0x1a8] sm:$0xff]
        %v674 = vld [vmem:[#allocation2 + $0x1b0] sm:$0xff]
        %v675 = vld [vmem:[#allocation2 + $0x1b8] sm:$0xff]
        %v676 = vld [vmem:[#allocation2 + $0x1c0] sm:$0xff]
        %v677 = vld [vmem:[#allocation2 + $0x1c8] sm:$0xff]
        %v678 = vld [vmem:[#allocation2 + $0x1d0] sm:$0xff]
        %v679 = vld [vmem:[#allocation2 + $0x1d8] sm:$0xff]
        %v680 = vld [vmem:[#allocation2 + $0x1e0] sm:$0xff]
        %v681 = vld [vmem:[#allocation2 + $0x1e8] sm:$0xff]
        %v682 = vld [vmem:[#allocation2 + $0x1f0] sm:$0xff]
        %v683 = vld [vmem:[#allocation2 + $0x1f8] sm:$0xff]
        %v684 = vld [vmem:[#allocation2 + $0x200] sm:$0xff]
        %v685 = vld [vmem:[#allocation2 + $0x208] sm:$0xff]
        %v686 = vld [vmem:[#allocation2 + $0x210] sm:$0xff]
        %v687 = vld [vmem:[#allocation2 + $0x218] sm:$0xff]
        %v688 = vld [vmem:[#allocation2 + $0x220] sm:$0xff]
        %v689 = vld [vmem:[#allocation2 + $0x228] sm:$0xff]
        %v690 = vld [vmem:[#allocation2 + $0x230] sm:$0xff]
        %v691 = vld [vmem:[#allocation2 + $0x238] sm:$0xff]
        %v692 = vld [vmem:[#allocation2 + $0x240] sm:$0xff]
        %v693 = vld [vmem:[#allocation2 + $0x248] sm:$0xff]
        %v694 = vld [vmem:[#allocation2 + $0x250] sm:$0xff]
        %v695 = vld [vmem:[#allocation2 + $0x258] sm:$0xff]
        %v696 = vld [vmem:[#allocation2 + $0x260] sm:$0xff]
        %v697 = vld [vmem:[#allocation2 + $0x268] sm:$0xff]
        %v698 = vld [vmem:[#allocation2 + $0x270] sm:$0xff]
        %v699 = vld [vmem:[#allocation2 + $0x278] sm:$0xff]
        %v700 = vld [vmem:[#allocation2 + $0x280] sm:$0xff]
        %v701 = vld [vmem:[#allocation2 + $0x288] sm:$0xff]
        %v702 = vld [vmem:[#allocation2 + $0x290] sm:$0xff]
        %v703 = vld [vmem:[#allocation2 + $0x298] sm:$0xff]
        %v704 = vld [vmem:[#allocation2 + $0x2a0] sm:$0xff]
        %v705 = vld [vmem:[#allocation2 + $0x2a8] sm:$0xff]
        %v706 = vld [vmem:[#allocation2 + $0x2b0] sm:$0xff]
        %v707 = vld [vmem:[#allocation2 + $0x2b8] sm:$0xff]
        %v708 = vld [vmem:[#allocation2 + $0x2c0] sm:$0xff]
        %v709 = vld [vmem:[#allocation2 + $0x2c8] sm:$0xff]
        %v710 = vld [vmem:[#allocation2 + $0x2d0] sm:$0xff]
        %v711 = vld [vmem:[#allocation2 + $0x2d8] sm:$0xff]
        %v712 = vld [vmem:[#allocation2 + $0x2e0] sm:$0xff]
        %v713 = vld [vmem:[#allocation2 + $0x2e8] sm:$0xff]
        %v714 = vld [vmem:[#allocation2 + $0x2f0] sm:$0xff]
        %v715 = vld [vmem:[#allocation2 + $0x2f8] sm:$0xff]
        %v716 = vld [vmem:[#allocation2 + $0x300] sm:$0xff]
        %v717 = vld [vmem:[#allocation2 + $0x308] sm:$0xff]
        %v718 = vld [vmem:[#allocation2 + $0x310] sm:$0xff]
        %v719 = vld [vmem:[#allocation2 + $0x318] sm:$0xff]
        %v720 = vld [vmem:[#allocation2 + $0x320] sm:$0xff]
        %v721 = vld [vmem:[#allocation2 + $0x328] sm:$0xff]
        %v722 = vld [vmem:[#allocation2 + $0x330] sm:$0xff]
        %v723 = vld [vmem:[#allocation2 + $0x338] sm:$0xff]
        %v724 = vld [vmem:[#allocation2 + $0x340] sm:$0xff]
        %v725 = vld [vmem:[#allocation2 + $0x348] sm:$0xff]
        %v726 = vld [vmem:[#allocation2 + $0x350] sm:$0xff]
        %v727 = vld [vmem:[#allocation2 + $0x358] sm:$0xff]
        %v728 = vld [vmem:[#allocation2 + $0x360] sm:$0xff]
        %v729 = vld [vmem:[#allocation2 + $0x368] sm:$0xff]
        %v730 = vld [vmem:[#allocation2 + $0x370] sm:$0xff]
        %v731 = vld [vmem:[#allocation2 + $0x378] sm:$0xff]
        %v732 = vld [vmem:[#allocation2 + $0x380] sm:$0xff]
        %v733 = vld [vmem:[#allocation2 + $0x388] sm:$0xff]
        %v734 = vld [vmem:[#allocation2 + $0x390] sm:$0xff]
        %v735 = vld [vmem:[#allocation2 + $0x398] sm:$0xff]
        %v736 = vld [vmem:[#allocation2 + $0x3a0] sm:$0xff]
        %v737 = vld [vmem:[#allocation2 + $0x3a8] sm:$0xff]
        %v738 = vld [vmem:[#allocation2 + $0x3b0] sm:$0xff]
        %v739 = vld [vmem:[#allocation2 + $0x3b8] sm:$0xff]
        %v740 = vld [vmem:[#allocation2 + $0x3c0] sm:$0xff]
        %v741 = vld [vmem:[#allocation2 + $0x3c8] sm:$0xff]
        %v742 = vld [vmem:[#allocation2 + $0x3d0] sm:$0xff]
        %v743 = vld [vmem:[#allocation2 + $0x3d8] sm:$0xff]
        %v744 = vld [vmem:[#allocation2 + $0x3e0] sm:$0xff]
        %v745 = vld [vmem:[#allocation2 + $0x3e8] sm:$0xff]
        %v746 = vld [vmem:[#allocation2 + $0x3f0] sm:$0xff]
        %v747 = vld [vmem:[#allocation2 + $0x3f8] sm:$0xff]
        %v748 = vld [vmem:[#allocation2 + $0x400] sm:$0xff]
        %v749 = vld [vmem:[#allocation2 + $0x408] sm:$0xff]
        %v750 = vld [vmem:[#allocation2 + $0x410] sm:$0xff]
        %v751 = vld [vmem:[#allocation2 + $0x418] sm:$0xff]
        %v752 = vld [vmem:[#allocation2 + $0x420] sm:$0xff]
        %v753 = vld [vmem:[#allocation2 + $0x428] sm:$0xff]
        %v754 = vld [vmem:[#allocation2 + $0x430] sm:$0xff]
        %v755 = vld [vmem:[#allocation2 + $0x438] sm:$0xff]
        %v756 = vld [vmem:[#allocation2 + $0x440] sm:$0xff]
        %v757 = vld [vmem:[#allocation2 + $0x448] sm:$0xff]
        %v758 = vld [vmem:[#allocation2 + $0x450] sm:$0xff]
        %v759 = vld [vmem:[#allocation2 + $0x458] sm:$0xff]
        %v760 = vld [vmem:[#allocation2 + $0x460] sm:$0xff]
        %v761 = vld [vmem:[#allocation2 + $0x468] sm:$0xff]
        %v762 = vld [vmem:[#allocation2 + $0x470] sm:$0xff]
        %v763 = vld [vmem:[#allocation2 + $0x478] sm:$0xff]
        %v764 = vld [vmem:[#allocation2 + $0x480] sm:$0xff]
        %v765 = vld [vmem:[#allocation2 + $0x488] sm:$0xff]
        %v766 = vld [vmem:[#allocation2 + $0x490] sm:$0xff]
        %v767 = vld [vmem:[#allocation2 + $0x498] sm:$0xff]
        %v768 = vld [vmem:[#allocation2 + $0x4a0] sm:$0xff]
        %v769 = vld [vmem:[#allocation2 + $0x4a8] sm:$0xff]
        %v770 = vld [vmem:[#allocation2 + $0x4b0] sm:$0xff]
        %v771 = vld [vmem:[#allocation2 + $0x4b8] sm:$0xff]
        %v772 = vld [vmem:[#allocation2 + $0x4c0] sm:$0xff]
        %v773 = vld [vmem:[#allocation2 + $0x4c8] sm:$0xff]
        %v774 = vld [vmem:[#allocation2 + $0x4d0] sm:$0xff]
        %v775 = vld [vmem:[#allocation2 + $0x4d8] sm:$0xff]
        %v776 = vld [vmem:[#allocation2 + $0x4e0] sm:$0xff]
        %v777 = vld [vmem:[#allocation2 + $0x4e8] sm:$0xff]
        %v778 = vld [vmem:[#allocation2 + $0x4f0] sm:$0xff]
        %v779 = vld [vmem:[#allocation2 + $0x4f8] sm:$0xff]
        %v780 = vld [vmem:[#allocation2 + $0x500] sm:$0xff]
        %v781 = vld [vmem:[#allocation2 + $0x508] sm:$0xff]
        %v782 = vld [vmem:[#allocation2 + $0x510] sm:$0xff]
        %v783 = vld [vmem:[#allocation2 + $0x518] sm:$0xff]
        %v784 = vld [vmem:[#allocation2 + $0x520] sm:$0xff]
        %v785 = vld [vmem:[#allocation2 + $0x528] sm:$0xff]
        %v786 = vld [vmem:[#allocation2 + $0x530] sm:$0xff]
        %v787 = vld [vmem:[#allocation2 + $0x538] sm:$0xff]
        %v788 = vld [vmem:[#allocation2 + $0x540] sm:$0xff]
        %v789 = vld [vmem:[#allocation2 + $0x548] sm:$0xff]
        %v790 = vld [vmem:[#allocation2 + $0x550] sm:$0xff]
        %v791 = vld [vmem:[#allocation2 + $0x558] sm:$0xff]
        %v792 = vld [vmem:[#allocation2 + $0x560] sm:$0xff]
        %v793 = vld [vmem:[#allocation2 + $0x568] sm:$0xff]
        %v794 = vld [vmem:[#allocation2 + $0x570] sm:$0xff]
        %v795 = vld [vmem:[#allocation2 + $0x578] sm:$0xff]
        %v796 = vld [vmem:[#allocation2 + $0x580] sm:$0xff]
        %v797 = vld [vmem:[#allocation2 + $0x588] sm:$0xff]
        %v798 = vld [vmem:[#allocation2 + $0x590] sm:$0xff]
        %v799 = vld [vmem:[#allocation2 + $0x598] sm:$0xff]
        %v800 = vld [vmem:[#allocation2 + $0x5a0] sm:$0xff]
        %v801 = vld [vmem:[#allocation2 + $0x5a8] sm:$0xff]
        %v802 = vld [vmem:[#allocation2 + $0x5b0] sm:$0xff]
        %v803 = vld [vmem:[#allocation2 + $0x5b8] sm:$0xff]
        %v804 = vld [vmem:[#allocation2 + $0x5c0] sm:$0xff]
        %v805 = vld [vmem:[#allocation2 + $0x5c8] sm:$0xff]
        %v806 = vld [vmem:[#allocation2 + $0x5d0] sm:$0xff]
        %v807 = vld [vmem:[#allocation2 + $0x5d8] sm:$0xff]
        %v808 = vld [vmem:[#allocation2 + $0x5e0] sm:$0xff]
        %v809 = vld [vmem:[#allocation2 + $0x5e8] sm:$0xff]
        %v810 = vld [vmem:[#allocation2 + $0x5f0] sm:$0xff]
        %v811 = vld [vmem:[#allocation2 + $0x5f8] sm:$0xff]
        %v812 = vld [vmem:[#allocation2 + $0x600] sm:$0xff]
        %v813 = vld [vmem:[#allocation2 + $0x608] sm:$0xff]
        %v814 = vld [vmem:[#allocation2 + $0x610] sm:$0xff]
        %v815 = vld [vmem:[#allocation2 + $0x618] sm:$0xff]
        %v816 = vld [vmem:[#allocation2 + $0x620] sm:$0xff]
        %v817 = vld [vmem:[#allocation2 + $0x628] sm:$0xff]
        %v818 = vld [vmem:[#allocation2 + $0x630] sm:$0xff]
        %v819 = vld [vmem:[#allocation2 + $0x638] sm:$0xff]
        %v820 = vld [vmem:[#allocation2 + $0x640] sm:$0xff]
        %v821 = vld [vmem:[#allocation2 + $0x648] sm:$0xff]
        %v822 = vld [vmem:[#allocation2 + $0x650] sm:$0xff]
        %v823 = vld [vmem:[#allocation2 + $0x658] sm:$0xff]
        %v824 = vld [vmem:[#allocation2 + $0x660] sm:$0xff]
        %v825 = vld [vmem:[#allocation2 + $0x668] sm:$0xff]
        %v826 = vld [vmem:[#allocation2 + $0x670] sm:$0xff]
        %v827 = vld [vmem:[#allocation2 + $0x678] sm:$0xff]
        %v828 = vld [vmem:[#allocation2 + $0x680] sm:$0x33]
        %v829 = vld [vmem:[#allocation2 + $0x688] sm:$0x33]
        %v830 = vld [vmem:[%s3] sm:$0xf]
        %v832 = vlaneseq
        %v833 = vshrl.u32 %v832, 7
        %v834 = vsub.s32 0, %v833
        %v835 = vrot.slane %v830, %v834
        %v836 = vlaneseq
        %v837 = vshrl.u32 %v836, 7
        %v838 = vsub.s32 1, %v837
        %v839 = vrot.slane %v830, %v838
        %v840 = vlaneseq
        %v841 = vshrl.u32 %v840, 7
        %v842 = vsub.s32 2, %v841
        %v843 = vrot.slane %v830, %v842
        %v844 = vlaneseq
        %v845 = vshrl.u32 %v844, 7
        %v846 = vsub.s32 3, %v845
        %v847 = vrot.slane %v830, %v846
        %v1062 = vunpack.c.l.b16 %v620
        %v1063 = vunpack.c.h.b16 %v620
        %v1064 = vunpack.c.l.b16 %v621
        %v1065 = vunpack.c.h.b16 %v621
        %v1066 = vunpack.c.l.b16 %v622
        %v1067 = vunpack.c.h.b16 %v622
        %v1068 = vunpack.c.l.b16 %v623
        %v1069 = vunpack.c.h.b16 %v623
        %v1070 = vunpack.c.l.b16 %v624
        %v1071 = vunpack.c.h.b16 %v624
        %v1072 = vunpack.c.l.b16 %v625
        %v1073 = vunpack.c.h.b16 %v625
        %v1074 = vunpack.c.l.b16 %v626
        %v1075 = vunpack.c.h.b16 %v626
        %v1076 = vunpack.c.l.b16 %v627
        %v1077 = vunpack.c.h.b16 %v627
        %v1078 = vunpack.c.l.b16 %v628
        %v1079 = vunpack.c.h.b16 %v628
        %v1080 = vunpack.c.l.b16 %v629
        %v1081 = vunpack.c.h.b16 %v629
        %v1082 = vunpack.c.l.b16 %v630
        %v1083 = vunpack.c.h.b16 %v630
        %v1084 = vunpack.c.l.b16 %v631
        %v1085 = vunpack.c.h.b16 %v631
        %v1086 = vunpack.c.l.b16 %v632
        %v1087 = vunpack.c.h.b16 %v632
        %v1088 = vunpack.c.l.b16 %v633
        %v1089 = vunpack.c.h.b16 %v633
        %v1090 = vunpack.c.l.b16 %v634
        %v1091 = vunpack.c.h.b16 %v634
        %v1092 = vunpack.c.l.b16 %v635
        %v1093 = vunpack.c.h.b16 %v635
        %v1094 = vunpack.c.l.b16 %v636
        %v1095 = vunpack.c.h.b16 %v636
        %v1096 = vunpack.c.l.b16 %v637
        %v1097 = vunpack.c.h.b16 %v637
        %v1098 = vunpack.c.l.b16 %v638
        %v1099 = vunpack.c.h.b16 %v638
        %v1100 = vunpack.c.l.b16 %v639
        %v1101 = vunpack.c.h.b16 %v639
        %v1102 = vunpack.c.l.b16 %v640
        %v1103 = vunpack.c.h.b16 %v640
        %v1104 = vunpack.c.l.b16 %v641
        %v1105 = vunpack.c.h.b16 %v641
        %v1106 = vunpack.c.l.b16 %v642
        %v1107 = vunpack.c.h.b16 %v642
        %v1108 = vunpack.c.l.b16 %v643
        %v1109 = vunpack.c.h.b16 %v643
        %v1110 = vunpack.c.l.b16 %v644
        %v1111 = vunpack.c.h.b16 %v644
        %v1112 = vunpack.c.l.b16 %v645
        %v1113 = vunpack.c.h.b16 %v645
        %v1114 = vunpack.c.l.b16 %v646
        %v1115 = vunpack.c.h.b16 %v646
        %v1116 = vunpack.c.l.b16 %v647
        %v1117 = vunpack.c.h.b16 %v647
        %v1118 = vunpack.c.l.b16 %v648
        %v1119 = vunpack.c.h.b16 %v648
        %v1120 = vunpack.c.l.b16 %v649
        %v1121 = vunpack.c.h.b16 %v649
        %v1122 = vunpack.c.l.b16 %v650
        %v1123 = vunpack.c.h.b16 %v650
        %v1124 = vunpack.c.l.b16 %v651
        %v1125 = vunpack.c.h.b16 %v651
        %v1126 = vunpack.c.l.b16 %v652
        %v1127 = vunpack.c.h.b16 %v652
        %v1128 = vunpack.c.l.b16 %v653
        %v1129 = vunpack.c.h.b16 %v653
        %v1130 = vunpack.c.l.b16 %v654
        %v1131 = vunpack.c.h.b16 %v654
        %v1132 = vunpack.c.l.b16 %v655
        %v1133 = vunpack.c.h.b16 %v655
        %v1134 = vunpack.c.l.b16 %v656
        %v1135 = vunpack.c.h.b16 %v656
        %v1136 = vunpack.c.l.b16 %v657
        %v1137 = vunpack.c.h.b16 %v657
        %v1138 = vunpack.c.l.b16 %v658
        %v1139 = vunpack.c.h.b16 %v658
        %v1140 = vunpack.c.l.b16 %v659
        %v1141 = vunpack.c.h.b16 %v659
        %v1142 = vunpack.c.l.b16 %v660
        %v1143 = vunpack.c.h.b16 %v660
        %v1144 = vunpack.c.l.b16 %v661
        %v1145 = vunpack.c.h.b16 %v661
        %v1146 = vunpack.c.l.b16 %v662
        %v1147 = vunpack.c.h.b16 %v662
        %v1148 = vunpack.c.l.b16 %v663
        %v1149 = vunpack.c.h.b16 %v663
        %v1150 = vunpack.c.l.b16 %v664
        %v1151 = vunpack.c.h.b16 %v664
        %v1152 = vunpack.c.l.b16 %v665
        %v1153 = vunpack.c.h.b16 %v665
        %v1154 = vunpack.c.l.b16 %v666
        %v1155 = vunpack.c.h.b16 %v666
        %v1156 = vunpack.c.l.b16 %v667
        %v1157 = vunpack.c.h.b16 %v667
        %v1158 = vunpack.c.l.b16 %v668
        %v1159 = vunpack.c.h.b16 %v668
        %v1160 = vunpack.c.l.b16 %v669
        %v1161 = vunpack.c.h.b16 %v669
        %v1162 = vunpack.c.l.b16 %v670
        %v1163 = vunpack.c.h.b16 %v670
        %v1164 = vunpack.c.l.b16 %v671
        %v1165 = vunpack.c.h.b16 %v671
        %v1166 = vunpack.c.l.b16 %v672
        %v1167 = vunpack.c.h.b16 %v672
        %v1168 = vunpack.c.l.b16 %v673
        %v1169 = vunpack.c.h.b16 %v673
        %v1170 = vunpack.c.l.b16 %v674
        %v1171 = vunpack.c.h.b16 %v674
        %v1172 = vunpack.c.l.b16 %v675
        %v1173 = vunpack.c.h.b16 %v675
        %v1174 = vunpack.c.l.b16 %v676
        %v1175 = vunpack.c.h.b16 %v676
        %v1176 = vunpack.c.l.b16 %v677
        %v1177 = vunpack.c.h.b16 %v677
        %v1178 = vunpack.c.l.b16 %v678
        %v1179 = vunpack.c.h.b16 %v678
        %v1180 = vunpack.c.l.b16 %v679
        %v1181 = vunpack.c.h.b16 %v679
        %v1182 = vunpack.c.l.b16 %v680
        %v1183 = vunpack.c.h.b16 %v680
        %v1184 = vunpack.c.l.b16 %v681
        %v1185 = vunpack.c.h.b16 %v681
        %v1186 = vunpack.c.l.b16 %v682
        %v1187 = vunpack.c.h.b16 %v682
        %v1188 = vunpack.c.l.b16 %v683
        %v1189 = vunpack.c.h.b16 %v683
        %v1190 = vunpack.c.l.b16 %v684
        %v1191 = vunpack.c.h.b16 %v684
        %v1192 = vunpack.c.l.b16 %v685
        %v1193 = vunpack.c.h.b16 %v685
        %v1194 = vunpack.c.l.b16 %v686
        %v1195 = vunpack.c.h.b16 %v686
        %v1196 = vunpack.c.l.b16 %v687
        %v1197 = vunpack.c.h.b16 %v687
        %v1198 = vunpack.c.l.b16 %v688
        %v1199 = vunpack.c.h.b16 %v688
        %v1200 = vunpack.c.l.b16 %v689
        %v1201 = vunpack.c.h.b16 %v689
        %v1202 = vunpack.c.l.b16 %v690
        %v1203 = vunpack.c.h.b16 %v690
        %v1204 = vunpack.c.l.b16 %v691
        %v1205 = vunpack.c.h.b16 %v691
        %v1206 = vunpack.c.l.b16 %v692
        %v1207 = vunpack.c.h.b16 %v692
        %v1208 = vunpack.c.l.b16 %v693
        %v1209 = vunpack.c.h.b16 %v693
        %v1210 = vunpack.c.l.b16 %v694
        %v1211 = vunpack.c.h.b16 %v694
        %v1212 = vunpack.c.l.b16 %v695
        %v1213 = vunpack.c.h.b16 %v695
        %v1214 = vunpack.c.l.b16 %v696
        %v1215 = vunpack.c.h.b16 %v696
        %v1216 = vunpack.c.l.b16 %v697
        %v1217 = vunpack.c.h.b16 %v697
        %v1218 = vunpack.c.l.b16 %v698
        %v1219 = vunpack.c.h.b16 %v698
        %v1220 = vunpack.c.l.b16 %v699
        %v1221 = vunpack.c.h.b16 %v699
        %v1222 = vunpack.c.l.b16 %v700
        %v1223 = vunpack.c.h.b16 %v700
        %v1224 = vunpack.c.l.b16 %v701
        %v1225 = vunpack.c.h.b16 %v701
        %v1226 = vunpack.c.l.b16 %v702
        %v1227 = vunpack.c.h.b16 %v702
        %v1228 = vunpack.c.l.b16 %v703
        %v1229 = vunpack.c.h.b16 %v703
        %v1230 = vunpack.c.l.b16 %v704
        %v1231 = vunpack.c.h.b16 %v704
        %v1232 = vunpack.c.l.b16 %v705
        %v1233 = vunpack.c.h.b16 %v705
        %v1234 = vunpack.c.l.b16 %v706
        %v1235 = vunpack.c.h.b16 %v706
        %v1236 = vunpack.c.l.b16 %v707
        %v1237 = vunpack.c.h.b16 %v707
        %v1238 = vunpack.c.l.b16 %v708
        %v1239 = vunpack.c.h.b16 %v708
        %v1240 = vunpack.c.l.b16 %v709
        %v1241 = vunpack.c.h.b16 %v709
        %v1242 = vunpack.c.l.b16 %v710
        %v1243 = vunpack.c.h.b16 %v710
        %v1244 = vunpack.c.l.b16 %v711
        %v1245 = vunpack.c.h.b16 %v711
        %v1246 = vunpack.c.l.b16 %v712
        %v1247 = vunpack.c.h.b16 %v712
        %v1248 = vunpack.c.l.b16 %v713
        %v1249 = vunpack.c.h.b16 %v713
        %v1250 = vunpack.c.l.b16 %v714
        %v1251 = vunpack.c.h.b16 %v714
        %v1252 = vunpack.c.l.b16 %v715
        %v1253 = vunpack.c.h.b16 %v715
        %v1254 = vunpack.c.l.b16 %v716
        %v1255 = vunpack.c.h.b16 %v716
        %v1256 = vunpack.c.l.b16 %v717
        %v1257 = vunpack.c.h.b16 %v717
        %v1258 = vunpack.c.l.b16 %v718
        %v1259 = vunpack.c.h.b16 %v718
        %v1260 = vunpack.c.l.b16 %v719
        %v1261 = vunpack.c.h.b16 %v719
        %v1262 = vunpack.c.l.b16 %v720
        %v1263 = vunpack.c.h.b16 %v720
        %v1264 = vunpack.c.l.b16 %v721
        %v1265 = vunpack.c.h.b16 %v721
        %v1266 = vunpack.c.l.b16 %v722
        %v1267 = vunpack.c.h.b16 %v722
        %v1268 = vunpack.c.l.b16 %v723
        %v1269 = vunpack.c.h.b16 %v723
        %v1270 = vunpack.c.l.b16 %v724
        %v1271 = vunpack.c.h.b16 %v724
        %v1272 = vunpack.c.l.b16 %v725
        %v1273 = vunpack.c.h.b16 %v725
        %v1274 = vunpack.c.l.b16 %v726
        %v1275 = vunpack.c.h.b16 %v726
        %v1276 = vunpack.c.l.b16 %v727
        %v1277 = vunpack.c.h.b16 %v727
        %v1278 = vunpack.c.l.b16 %v728
        %v1279 = vunpack.c.h.b16 %v728
        %v1280 = vunpack.c.l.b16 %v729
        %v1281 = vunpack.c.h.b16 %v729
        %v1282 = vunpack.c.l.b16 %v730
        %v1283 = vunpack.c.h.b16 %v730
        %v1284 = vunpack.c.l.b16 %v731
        %v1285 = vunpack.c.h.b16 %v731
        %v1286 = vunpack.c.l.b16 %v732
        %v1287 = vunpack.c.h.b16 %v732
        %v1288 = vunpack.c.l.b16 %v733
        %v1289 = vunpack.c.h.b16 %v733
        %v1290 = vunpack.c.l.b16 %v734
        %v1291 = vunpack.c.h.b16 %v734
        %v1292 = vunpack.c.l.b16 %v735
        %v1293 = vunpack.c.h.b16 %v735
        %v1294 = vunpack.c.l.b16 %v736
        %v1295 = vunpack.c.h.b16 %v736
        %v1296 = vunpack.c.l.b16 %v737
        %v1297 = vunpack.c.h.b16 %v737
        %v1298 = vunpack.c.l.b16 %v738
        %v1299 = vunpack.c.h.b16 %v738
        %v1300 = vunpack.c.l.b16 %v739
        %v1301 = vunpack.c.h.b16 %v739
        %v1302 = vunpack.c.l.b16 %v740
        %v1303 = vunpack.c.h.b16 %v740
        %v1304 = vunpack.c.l.b16 %v741
        %v1305 = vunpack.c.h.b16 %v741
        %v1306 = vunpack.c.l.b16 %v742
        %v1307 = vunpack.c.h.b16 %v742
        %v1308 = vunpack.c.l.b16 %v743
        %v1309 = vunpack.c.h.b16 %v743
        %v1310 = vunpack.c.l.b16 %v744
        %v1311 = vunpack.c.h.b16 %v744
        %v1312 = vunpack.c.l.b16 %v745
        %v1313 = vunpack.c.h.b16 %v745
        %v1314 = vunpack.c.l.b16 %v746
        %v1315 = vunpack.c.h.b16 %v746
        %v1316 = vunpack.c.l.b16 %v747
        %v1317 = vunpack.c.h.b16 %v747
        %v1318 = vunpack.c.l.b16 %v748
        %v1319 = vunpack.c.h.b16 %v748
        %v1320 = vunpack.c.l.b16 %v749
        %v1321 = vunpack.c.h.b16 %v749
        %v1322 = vunpack.c.l.b16 %v750
        %v1323 = vunpack.c.h.b16 %v750
        %v1324 = vunpack.c.l.b16 %v751
        %v1325 = vunpack.c.h.b16 %v751
        %v1326 = vunpack.c.l.b16 %v752
        %v1327 = vunpack.c.h.b16 %v752
        %v1328 = vunpack.c.l.b16 %v753
        %v1329 = vunpack.c.h.b16 %v753
        %v1330 = vunpack.c.l.b16 %v754
        %v1331 = vunpack.c.h.b16 %v754
        %v1332 = vunpack.c.l.b16 %v755
        %v1333 = vunpack.c.h.b16 %v755
        %v1334 = vunpack.c.l.b16 %v756
        %v1335 = vunpack.c.h.b16 %v756
        %v1336 = vunpack.c.l.b16 %v757
        %v1337 = vunpack.c.h.b16 %v757
        %v1338 = vunpack.c.l.b16 %v758
        %v1339 = vunpack.c.h.b16 %v758
        %v1340 = vunpack.c.l.b16 %v759
        %v1341 = vunpack.c.h.b16 %v759
        %v1342 = vunpack.c.l.b16 %v760
        %v1343 = vunpack.c.h.b16 %v760
        %v1344 = vunpack.c.l.b16 %v761
        %v1345 = vunpack.c.h.b16 %v761
        %v1346 = vunpack.c.l.b16 %v762
        %v1347 = vunpack.c.h.b16 %v762
        %v1348 = vunpack.c.l.b16 %v763
        %v1349 = vunpack.c.h.b16 %v763
        %v1350 = vunpack.c.l.b16 %v764
        %v1351 = vunpack.c.h.b16 %v764
        %v1352 = vunpack.c.l.b16 %v765
        %v1353 = vunpack.c.h.b16 %v765
        %v1354 = vunpack.c.l.b16 %v766
        %v1355 = vunpack.c.h.b16 %v766
        %v1356 = vunpack.c.l.b16 %v767
        %v1357 = vunpack.c.h.b16 %v767
        %v1358 = vunpack.c.l.b16 %v768
        %v1359 = vunpack.c.h.b16 %v768
        %v1360 = vunpack.c.l.b16 %v769
        %v1361 = vunpack.c.h.b16 %v769
        %v1362 = vunpack.c.l.b16 %v770
        %v1363 = vunpack.c.h.b16 %v770
        %v1364 = vunpack.c.l.b16 %v771
        %v1365 = vunpack.c.h.b16 %v771
        %v1366 = vunpack.c.l.b16 %v772
        %v1367 = vunpack.c.h.b16 %v772
        %v1368 = vunpack.c.l.b16 %v773
        %v1369 = vunpack.c.h.b16 %v773
        %v1370 = vunpack.c.l.b16 %v774
        %v1371 = vunpack.c.h.b16 %v774
        %v1372 = vunpack.c.l.b16 %v775
        %v1373 = vunpack.c.h.b16 %v775
        %v1374 = vunpack.c.l.b16 %v776
        %v1375 = vunpack.c.h.b16 %v776
        %v1376 = vunpack.c.l.b16 %v777
        %v1377 = vunpack.c.h.b16 %v777
        %v1378 = vunpack.c.l.b16 %v778
        %v1379 = vunpack.c.h.b16 %v778
        %v1380 = vunpack.c.l.b16 %v779
        %v1381 = vunpack.c.h.b16 %v779
        %v1382 = vunpack.c.l.b16 %v780
        %v1383 = vunpack.c.h.b16 %v780
        %v1384 = vunpack.c.l.b16 %v781
        %v1385 = vunpack.c.h.b16 %v781
        %v1386 = vunpack.c.l.b16 %v782
        %v1387 = vunpack.c.h.b16 %v782
        %v1388 = vunpack.c.l.b16 %v783
        %v1389 = vunpack.c.h.b16 %v783
        %v1390 = vunpack.c.l.b16 %v784
        %v1391 = vunpack.c.h.b16 %v784
        %v1392 = vunpack.c.l.b16 %v785
        %v1393 = vunpack.c.h.b16 %v785
        %v1394 = vunpack.c.l.b16 %v786
        %v1395 = vunpack.c.h.b16 %v786
        %v1396 = vunpack.c.l.b16 %v787
        %v1397 = vunpack.c.h.b16 %v787
        %v1398 = vunpack.c.l.b16 %v788
        %v1399 = vunpack.c.h.b16 %v788
        %v1400 = vunpack.c.l.b16 %v789
        %v1401 = vunpack.c.h.b16 %v789
        %v1402 = vunpack.c.l.b16 %v790
        %v1403 = vunpack.c.h.b16 %v790
        %v1404 = vunpack.c.l.b16 %v791
        %v1405 = vunpack.c.h.b16 %v791
        %v1406 = vunpack.c.l.b16 %v792
        %v1407 = vunpack.c.h.b16 %v792
        %v1408 = vunpack.c.l.b16 %v793
        %v1409 = vunpack.c.h.b16 %v793
        %v1410 = vunpack.c.l.b16 %v794
        %v1411 = vunpack.c.h.b16 %v794
        %v1412 = vunpack.c.l.b16 %v795
        %v1413 = vunpack.c.h.b16 %v795
        %v1414 = vunpack.c.l.b16 %v796
        %v1415 = vunpack.c.h.b16 %v796
        %v1416 = vunpack.c.l.b16 %v797
        %v1417 = vunpack.c.h.b16 %v797
        %v1418 = vunpack.c.l.b16 %v798
        %v1419 = vunpack.c.h.b16 %v798
        %v1420 = vunpack.c.l.b16 %v799
        %v1421 = vunpack.c.h.b16 %v799
        %v1422 = vunpack.c.l.b16 %v800
        %v1423 = vunpack.c.h.b16 %v800
        %v1424 = vunpack.c.l.b16 %v801
        %v1425 = vunpack.c.h.b16 %v801
        %v1426 = vunpack.c.l.b16 %v802
        %v1427 = vunpack.c.h.b16 %v802
        %v1428 = vunpack.c.l.b16 %v803
        %v1429 = vunpack.c.h.b16 %v803
        %v1430 = vunpack.c.l.b16 %v804
        %v1431 = vunpack.c.h.b16 %v804
        %v1432 = vunpack.c.l.b16 %v805
        %v1433 = vunpack.c.h.b16 %v805
        %v1434 = vunpack.c.l.b16 %v806
        %v1435 = vunpack.c.h.b16 %v806
        %v1436 = vunpack.c.l.b16 %v807
        %v1437 = vunpack.c.h.b16 %v807
        %v1438 = vunpack.c.l.b16 %v808
        %v1439 = vunpack.c.h.b16 %v808
        %v1440 = vunpack.c.l.b16 %v809
        %v1441 = vunpack.c.h.b16 %v809
        %v1442 = vunpack.c.l.b16 %v810
        %v1443 = vunpack.c.h.b16 %v810
        %v1444 = vunpack.c.l.b16 %v811
        %v1445 = vunpack.c.h.b16 %v811
        %v1446 = vunpack.c.l.b16 %v812
        %v1447 = vunpack.c.h.b16 %v812
        %v1448 = vunpack.c.l.b16 %v813
        %v1449 = vunpack.c.h.b16 %v813
        %v1450 = vunpack.c.l.b16 %v814
        %v1451 = vunpack.c.h.b16 %v814
        %v1452 = vunpack.c.l.b16 %v815
        %v1453 = vunpack.c.h.b16 %v815
        %v1454 = vunpack.c.l.b16 %v816
        %v1455 = vunpack.c.h.b16 %v816
        %v1456 = vunpack.c.l.b16 %v817
        %v1457 = vunpack.c.h.b16 %v817
        %v1458 = vunpack.c.l.b16 %v818
        %v1459 = vunpack.c.h.b16 %v818
        %v1460 = vunpack.c.l.b16 %v819
        %v1461 = vunpack.c.h.b16 %v819
        %v1462 = vunpack.c.l.b16 %v820
        %v1463 = vunpack.c.h.b16 %v820
        %v1464 = vunpack.c.l.b16 %v821
        %v1465 = vunpack.c.h.b16 %v821
        %v1466 = vunpack.c.l.b16 %v822
        %v1467 = vunpack.c.h.b16 %v822
        %v1468 = vunpack.c.l.b16 %v823
        %v1469 = vunpack.c.h.b16 %v823
        %v1470 = vunpack.c.l.b16 %v824
        %v1471 = vunpack.c.h.b16 %v824
        %v1472 = vunpack.c.l.b16 %v825
        %v1473 = vunpack.c.h.b16 %v825
        %v1474 = vunpack.c.l.b16 %v826
        %v1475 = vunpack.c.h.b16 %v826
        %v1476 = vunpack.c.l.b16 %v827
        %v1477 = vunpack.c.h.b16 %v827
        %v1478 = vunpack.c.l.b16 %v828
        %v1479 = vunpack.c.h.b16 %v828
        %v1480 = vunpack.c.l.b16 %v829
        %v1481 = vunpack.c.h.b16 %v829
        %v1482 = vpack.c.b16 %v1066, %v1062
        %v1483 = vpack.c.b16 %v1067, %v1063
        %v1484 = vpack.c.b16 %v1068, %v1064
        %v1485 = vpack.c.b16 %v1069, %v1065
        %v1486 = vpack.c.b16 %v1074, %v1070
        %v1487 = vpack.c.b16 %v1075, %v1071
        %v1488 = vpack.c.b16 %v1076, %v1072
        %v1489 = vpack.c.b16 %v1077, %v1073
        %v1490 = vpack.c.b16 %v1082, %v1078
        %v1491 = vpack.c.b16 %v1083, %v1079
        %v1492 = vpack.c.b16 %v1084, %v1080
        %v1493 = vpack.c.b16 %v1085, %v1081
        %v1494 = vpack.c.b16 %v1090, %v1086
        %v1495 = vpack.c.b16 %v1091, %v1087
        %v1496 = vpack.c.b16 %v1092, %v1088
        %v1497 = vpack.c.b16 %v1093, %v1089
        %v1498 = vpack.c.b16 %v1098, %v1094
        %v1499 = vpack.c.b16 %v1099, %v1095
        %v1500 = vpack.c.b16 %v1100, %v1096
        %v1501 = vpack.c.b16 %v1101, %v1097
        %v1502 = vpack.c.b16 %v1106, %v1102
        %v1503 = vpack.c.b16 %v1107, %v1103
        %v1504 = vpack.c.b16 %v1108, %v1104
        %v1505 = vpack.c.b16 %v1109, %v1105
        %v1506 = vpack.c.b16 %v1114, %v1110
        %v1507 = vpack.c.b16 %v1115, %v1111
        %v1508 = vpack.c.b16 %v1116, %v1112
        %v1509 = vpack.c.b16 %v1117, %v1113
        %v1510 = vpack.c.b16 %v1122, %v1118
        %v1511 = vpack.c.b16 %v1123, %v1119
        %v1512 = vpack.c.b16 %v1124, %v1120
        %v1513 = vpack.c.b16 %v1125, %v1121
        %v1514 = vpack.c.b16 %v1130, %v1126
        %v1515 = vpack.c.b16 %v1131, %v1127
        %v1516 = vpack.c.b16 %v1132, %v1128
        %v1517 = vpack.c.b16 %v1133, %v1129
        %v1518 = vpack.c.b16 %v1138, %v1134
        %v1519 = vpack.c.b16 %v1139, %v1135
        %v1520 = vpack.c.b16 %v1140, %v1136
        %v1521 = vpack.c.b16 %v1141, %v1137
        %v1522 = vpack.c.b16 %v1146, %v1142
        %v1523 = vpack.c.b16 %v1147, %v1143
        %v1524 = vpack.c.b16 %v1148, %v1144
        %v1525 = vpack.c.b16 %v1149, %v1145
        %v1526 = vpack.c.b16 %v1154, %v1150
        %v1527 = vpack.c.b16 %v1155, %v1151
        %v1528 = vpack.c.b16 %v1156, %v1152
        %v1529 = vpack.c.b16 %v1157, %v1153
        %v1530 = vpack.c.b16 %v1162, %v1158
        %v1531 = vpack.c.b16 %v1163, %v1159
        %v1532 = vpack.c.b16 %v1164, %v1160
        %v1533 = vpack.c.b16 %v1165, %v1161
        %v1534 = vpack.c.b16 %v1170, %v1166
        %v1535 = vpack.c.b16 %v1171, %v1167
        %v1536 = vpack.c.b16 %v1172, %v1168
        %v1537 = vpack.c.b16 %v1173, %v1169
        %v1538 = vpack.c.b16 %v1178, %v1174
        %v1539 = vpack.c.b16 %v1179, %v1175
        %v1540 = vpack.c.b16 %v1180, %v1176
        %v1541 = vpack.c.b16 %v1181, %v1177
        %v1542 = vpack.c.b16 %v1186, %v1182
        %v1543 = vpack.c.b16 %v1187, %v1183
        %v1544 = vpack.c.b16 %v1188, %v1184
        %v1545 = vpack.c.b16 %v1189, %v1185
        %v1546 = vpack.c.b16 %v1194, %v1190
        %v1547 = vpack.c.b16 %v1195, %v1191
        %v1548 = vpack.c.b16 %v1196, %v1192
        %v1549 = vpack.c.b16 %v1197, %v1193
        %v1550 = vpack.c.b16 %v1202, %v1198
        %v1551 = vpack.c.b16 %v1203, %v1199
        %v1552 = vpack.c.b16 %v1204, %v1200
        %v1553 = vpack.c.b16 %v1205, %v1201
        %v1554 = vpack.c.b16 %v1210, %v1206
        %v1555 = vpack.c.b16 %v1211, %v1207
        %v1556 = vpack.c.b16 %v1212, %v1208
        %v1557 = vpack.c.b16 %v1213, %v1209
        %v1558 = vpack.c.b16 %v1218, %v1214
        %v1559 = vpack.c.b16 %v1219, %v1215
        %v1560 = vpack.c.b16 %v1220, %v1216
        %v1561 = vpack.c.b16 %v1221, %v1217
        %v1562 = vpack.c.b16 %v1226, %v1222
        %v1563 = vpack.c.b16 %v1227, %v1223
        %v1564 = vpack.c.b16 %v1228, %v1224
        %v1565 = vpack.c.b16 %v1229, %v1225
        %v1566 = vpack.c.b16 %v1234, %v1230
        %v1567 = vpack.c.b16 %v1235, %v1231
        %v1568 = vpack.c.b16 %v1236, %v1232
        %v1569 = vpack.c.b16 %v1237, %v1233
        %v1570 = vpack.c.b16 %v1242, %v1238
        %v1571 = vpack.c.b16 %v1243, %v1239
        %v1572 = vpack.c.b16 %v1244, %v1240
        %v1573 = vpack.c.b16 %v1245, %v1241
        %v1574 = vpack.c.b16 %v1250, %v1246
        %v1575 = vpack.c.b16 %v1251, %v1247
        %v1576 = vpack.c.b16 %v1252, %v1248
        %v1577 = vpack.c.b16 %v1253, %v1249
        %v1578 = vpack.c.b16 %v1258, %v1254
        %v1579 = vpack.c.b16 %v1259, %v1255
        %v1580 = vpack.c.b16 %v1260, %v1256
        %v1581 = vpack.c.b16 %v1261, %v1257
        %v1582 = vpack.c.b16 %v1266, %v1262
        %v1583 = vpack.c.b16 %v1267, %v1263
        %v1584 = vpack.c.b16 %v1268, %v1264
        %v1585 = vpack.c.b16 %v1269, %v1265
        %v1586 = vpack.c.b16 %v1274, %v1270
        %v1587 = vpack.c.b16 %v1275, %v1271
        %v1588 = vpack.c.b16 %v1276, %v1272
        %v1589 = vpack.c.b16 %v1277, %v1273
        %v1590 = vpack.c.b16 %v1282, %v1278
        %v1591 = vpack.c.b16 %v1283, %v1279
        %v1592 = vpack.c.b16 %v1284, %v1280
        %v1593 = vpack.c.b16 %v1285, %v1281
        %v1594 = vpack.c.b16 %v1290, %v1286
        %v1595 = vpack.c.b16 %v1291, %v1287
        %v1596 = vpack.c.b16 %v1292, %v1288
        %v1597 = vpack.c.b16 %v1293, %v1289
        %v1598 = vpack.c.b16 %v1298, %v1294
        %v1599 = vpack.c.b16 %v1299, %v1295
        %v1600 = vpack.c.b16 %v1300, %v1296
        %v1601 = vpack.c.b16 %v1301, %v1297
        %v1602 = vpack.c.b16 %v1306, %v1302
        %v1603 = vpack.c.b16 %v1307, %v1303
        %v1604 = vpack.c.b16 %v1308, %v1304
        %v1605 = vpack.c.b16 %v1309, %v1305
        %v1606 = vpack.c.b16 %v1314, %v1310
        %v1607 = vpack.c.b16 %v1315, %v1311
        %v1608 = vpack.c.b16 %v1316, %v1312
        %v1609 = vpack.c.b16 %v1317, %v1313
        %v1610 = vpack.c.b16 %v1322, %v1318
        %v1611 = vpack.c.b16 %v1323, %v1319
        %v1612 = vpack.c.b16 %v1324, %v1320
        %v1613 = vpack.c.b16 %v1325, %v1321
        %v1614 = vpack.c.b16 %v1330, %v1326
        %v1615 = vpack.c.b16 %v1331, %v1327
        %v1616 = vpack.c.b16 %v1332, %v1328
        %v1617 = vpack.c.b16 %v1333, %v1329
        %v1618 = vpack.c.b16 %v1338, %v1334
        %v1619 = vpack.c.b16 %v1339, %v1335
        %v1620 = vpack.c.b16 %v1340, %v1336
        %v1621 = vpack.c.b16 %v1341, %v1337
        %v1622 = vpack.c.b16 %v1346, %v1342
        %v1623 = vpack.c.b16 %v1347, %v1343
        %v1624 = vpack.c.b16 %v1348, %v1344
        %v1625 = vpack.c.b16 %v1349, %v1345
        %v1626 = vpack.c.b16 %v1354, %v1350
        %v1627 = vpack.c.b16 %v1355, %v1351
        %v1628 = vpack.c.b16 %v1356, %v1352
        %v1629 = vpack.c.b16 %v1357, %v1353
        %v1630 = vpack.c.b16 %v1362, %v1358
        %v1631 = vpack.c.b16 %v1363, %v1359
        %v1632 = vpack.c.b16 %v1364, %v1360
        %v1633 = vpack.c.b16 %v1365, %v1361
        %v1634 = vpack.c.b16 %v1370, %v1366
        %v1635 = vpack.c.b16 %v1371, %v1367
        %v1636 = vpack.c.b16 %v1372, %v1368
        %v1637 = vpack.c.b16 %v1373, %v1369
        %v1638 = vpack.c.b16 %v1378, %v1374
        %v1639 = vpack.c.b16 %v1379, %v1375
        %v1640 = vpack.c.b16 %v1380, %v1376
        %v1641 = vpack.c.b16 %v1381, %v1377
        %v1642 = vpack.c.b16 %v1386, %v1382
        %v1643 = vpack.c.b16 %v1387, %v1383
        %v1644 = vpack.c.b16 %v1388, %v1384
        %v1645 = vpack.c.b16 %v1389, %v1385
        %v1646 = vpack.c.b16 %v1394, %v1390
        %v1647 = vpack.c.b16 %v1395, %v1391
        %v1648 = vpack.c.b16 %v1396, %v1392
        %v1649 = vpack.c.b16 %v1397, %v1393
        %v1650 = vpack.c.b16 %v1402, %v1398
        %v1651 = vpack.c.b16 %v1403, %v1399
        %v1652 = vpack.c.b16 %v1404, %v1400
        %v1653 = vpack.c.b16 %v1405, %v1401
        %v1654 = vpack.c.b16 %v1410, %v1406
        %v1655 = vpack.c.b16 %v1411, %v1407
        %v1656 = vpack.c.b16 %v1412, %v1408
        %v1657 = vpack.c.b16 %v1413, %v1409
        %v1658 = vpack.c.b16 %v1418, %v1414
        %v1659 = vpack.c.b16 %v1419, %v1415
        %v1660 = vpack.c.b16 %v1420, %v1416
        %v1661 = vpack.c.b16 %v1421, %v1417
        %v1662 = vpack.c.b16 %v1426, %v1422
        %v1663 = vpack.c.b16 %v1427, %v1423
        %v1664 = vpack.c.b16 %v1428, %v1424
        %v1665 = vpack.c.b16 %v1429, %v1425
        %v1666 = vpack.c.b16 %v1434, %v1430
        %v1667 = vpack.c.b16 %v1435, %v1431
        %v1668 = vpack.c.b16 %v1436, %v1432
        %v1669 = vpack.c.b16 %v1437, %v1433
        %v1670 = vpack.c.b16 %v1442, %v1438
        %v1671 = vpack.c.b16 %v1443, %v1439
        %v1672 = vpack.c.b16 %v1444, %v1440
        %v1673 = vpack.c.b16 %v1445, %v1441
        %v1674 = vpack.c.b16 %v1450, %v1446
        %v1675 = vpack.c.b16 %v1451, %v1447
        %v1676 = vpack.c.b16 %v1452, %v1448
        %v1677 = vpack.c.b16 %v1453, %v1449
        %v1678 = vpack.c.b16 %v1458, %v1454
        %v1679 = vpack.c.b16 %v1459, %v1455
        %v1680 = vpack.c.b16 %v1460, %v1456
        %v1681 = vpack.c.b16 %v1461, %v1457
        %v1682 = vpack.c.b16 %v1466, %v1462
        %v1683 = vpack.c.b16 %v1467, %v1463
        %v1684 = vpack.c.b16 %v1468, %v1464
        %v1685 = vpack.c.b16 %v1469, %v1465
        %v1686 = vpack.c.b16 %v1474, %v1470
        %v1687 = vpack.c.b16 %v1475, %v1471
        %v1688 = vpack.c.b16 %v1476, %v1472
        %v1689 = vpack.c.b16 %v1477, %v1473
        %v1690 = vpack.c.b16 %v1478, %v1478
        %v1691 = vpack.c.b16 %v1479, %v1479
        %v1692 = vpack.c.b16 %v1480, %v1480
        %v1693 = vpack.c.b16 %v1481, %v1481
        %vm1902 = vcmask 556032
        %v1904 = vsel %vm1902, %v619, 0
        %vm1906 = vcmask 1041408
        %v1908 = vsel %vm1906, %v1690, 0
        %v1911 = vsel %vm1906, %v1691, 0
        %v1914 = vsel %vm1906, %v1692, 0
        %v1917 = vsel %vm1906, %v1693, 0
        %1919 = vmatprep.subr.bf16.mxu0 %v1483
        %1920 = vmatpush1.bf16.msra.mxu0 %v1482
        %1921 = vmatprep.subr.bf16.mxu0 %v1487
        %1922 = vmatpush1.bf16.msra.mxu0 %v1486
        %1923 = vmatprep.subr.bf16.mxu0 %v1491
        %1924 = vmatpush1.bf16.msra.mxu0 %v1490
        %1925 = vmatprep.subr.bf16.mxu0 %v1495
        %1926 = vmatpush1.bf16.msra.mxu0 %v1494
        %1927 = vmatprep.subr.bf16.mxu0 %v1499
        %1928 = vmatpush1.bf16.msra.mxu0 %v1498
        %1929 = vmatprep.subr.bf16.mxu0 %v1503
        %1930 = vmatpush1.bf16.msra.mxu0 %v1502
        %1931 = vmatprep.subr.bf16.mxu0 %v1507
        %1932 = vmatpush1.bf16.msra.mxu0 %v1506
        %1933 = vmatprep.subr.bf16.mxu0 %v1511
        %1934 = vmatpush1.bf16.msra.mxu0 %v1510
        %1935 = vmatprep.subr.bf16.mxu0 %v1515
        %1936 = vmatpush1.bf16.msra.mxu0 %v1514
        %1937 = vmatprep.subr.bf16.mxu0 %v1519
        %1938 = vmatpush1.bf16.msra.mxu0 %v1518
        %1939 = vmatprep.subr.bf16.mxu0 %v1523
        %1940 = vmatpush1.bf16.msra.mxu0 %v1522
        %1941 = vmatprep.subr.bf16.mxu0 %v1527
        %1942 = vmatpush1.bf16.msra.mxu0 %v1526
        %1943 = vmatprep.subr.bf16.mxu0 %v1531
        %1944 = vmatpush1.bf16.msra.mxu0 %v1530
        %1945 = vmatprep.subr.bf16.mxu0 %v1535
        %1946 = vmatpush1.bf16.msra.mxu0 %v1534
        %1947 = vmatprep.subr.bf16.mxu0 %v1539
        %1948 = vmatpush1.bf16.msra.mxu0 %v1538
        %1949 = vmatprep.subr.bf16.mxu0 %v1543
        %1950 = vmatpush1.bf16.msra.mxu0 %v1542
        %1951 = vmatprep.mubr.bf16.mxu0 %v614
        %1952 = vmatmul.mubr.bf16.gmra.mrb[0].mxu0 %v613
        %v1953 = vpop.f32.mrb[0].mxu0
        %v1954 = vadd.f32 %v835, %v1953
        %v1955 = vpop.f32.mrb[0].mxu0
        %v1956 = vadd.f32 %v839, %v1955
        %v1957 = vpop.f32.mrb[0].mxu0
        %v1958 = vadd.f32 %v835, %v1957
        %v1959 = vpop.f32.mrb[0].mxu0
        %v1960 = vadd.f32 %v839, %v1959
        %1961 = vdwg.mxu0
        %1962 = vmatprep.subr.bf16.mxu0 %v1547
        %1963 = vmatpush1.bf16.msra.mxu0 %v1546
        %1964 = vmatprep.subr.bf16.mxu0 %v1551
        %1965 = vmatpush1.bf16.msra.mxu0 %v1550
        %1966 = vmatprep.subr.bf16.mxu0 %v1555
        %1967 = vmatpush1.bf16.msra.mxu0 %v1554
        %1968 = vmatprep.subr.bf16.mxu0 %v1559
        %1969 = vmatpush1.bf16.msra.mxu0 %v1558
        %1970 = vmatprep.subr.bf16.mxu0 %v1563
        %1971 = vmatpush1.bf16.msra.mxu0 %v1562
        %1972 = vmatprep.subr.bf16.mxu0 %v1567
        %1973 = vmatpush1.bf16.msra.mxu0 %v1566
        %1974 = vmatprep.subr.bf16.mxu0 %v1571
        %1975 = vmatpush1.bf16.msra.mxu0 %v1570
        %1976 = vmatprep.subr.bf16.mxu0 %v1575
        %1977 = vmatpush1.bf16.msra.mxu0 %v1574
        %1978 = vmatprep.subr.bf16.mxu0 %v1579
        %1979 = vmatpush1.bf16.msra.mxu0 %v1578
        %1980 = vmatprep.subr.bf16.mxu0 %v1583
        %1981 = vmatpush1.bf16.msra.mxu0 %v1582
        %1982 = vmatprep.subr.bf16.mxu0 %v1587
        %1983 = vmatpush1.bf16.msra.mxu0 %v1586
        %1984 = vmatprep.subr.bf16.mxu0 %v1591
        %1985 = vmatpush1.bf16.msra.mxu0 %v1590
        %1986 = vmatprep.subr.bf16.mxu0 %v1595
        %1987 = vmatpush1.bf16.msra.mxu0 %v1594
        %1988 = vmatprep.subr.bf16.mxu0 %v1599
        %1989 = vmatpush1.bf16.msra.mxu0 %v1598
        %1990 = vmatprep.subr.bf16.mxu0 %v1603
        %1991 = vmatpush1.bf16.msra.mxu0 %v1602
        %1992 = vmatprep.subr.bf16.mxu0 %v1607
        %1993 = vmatpush1.bf16.msra.mxu0 %v1606
        %1994 = vmatprep.mubr.bf16.mxu0 %v616
        %1995 = vmatmul.mubr.bf16.gmra.mrb[0].mxu0 %v615
        %v1996 = vpop.f32.mrb[0].mxu0
        %v1997 = vadd.f32 %v1954, %v1996
        %v1998 = vpop.f32.mrb[0].mxu0
        %v1999 = vadd.f32 %v1956, %v1998
        %v2000 = vpop.f32.mrb[0].mxu0
        %v2001 = vadd.f32 %v1958, %v2000
        %v2002 = vpop.f32.mrb[0].mxu0
        %v2003 = vadd.f32 %v1960, %v2002
        %2004 = vdwg.mxu0
        %2005 = vmatprep.subr.bf16.mxu0 %v1611
        %2006 = vmatpush1.bf16.msra.mxu0 %v1610
        %2007 = vmatprep.subr.bf16.mxu0 %v1615
        %2008 = vmatpush1.bf16.msra.mxu0 %v1614
        %2009 = vmatprep.subr.bf16.mxu0 %v1619
        %2010 = vmatpush1.bf16.msra.mxu0 %v1618
        %2011 = vmatprep.subr.bf16.mxu0 %v1623
        %2012 = vmatpush1.bf16.msra.mxu0 %v1622
        %2013 = vmatprep.subr.bf16.mxu0 %v1627
        %2014 = vmatpush1.bf16.msra.mxu0 %v1626
        %2015 = vmatprep.subr.bf16.mxu0 %v1631
        %2016 = vmatpush1.bf16.msra.mxu0 %v1630
        %2017 = vmatprep.subr.bf16.mxu0 %v1635
        %2018 = vmatpush1.bf16.msra.mxu0 %v1634
        %2019 = vmatprep.subr.bf16.mxu0 %v1639
        %2020 = vmatpush1.bf16.msra.mxu0 %v1638
        %2021 = vmatprep.subr.bf16.mxu0 %v1643
        %2022 = vmatpush1.bf16.msra.mxu0 %v1642
        %2023 = vmatprep.subr.bf16.mxu0 %v1647
        %2024 = vmatpush1.bf16.msra.mxu0 %v1646
        %2025 = vmatprep.subr.bf16.mxu0 %v1651
        %2026 = vmatpush1.bf16.msra.mxu0 %v1650
        %2027 = vmatprep.subr.bf16.mxu0 %v1655
        %2028 = vmatpush1.bf16.msra.mxu0 %v1654
        %2029 = vmatprep.subr.bf16.mxu0 %v1659
        %2030 = vmatpush1.bf16.msra.mxu0 %v1658
        %2031 = vmatprep.subr.bf16.mxu0 %v1663
        %2032 = vmatpush1.bf16.msra.mxu0 %v1662
        %2033 = vmatprep.subr.bf16.mxu0 %v1667
        %2034 = vmatpush1.bf16.msra.mxu0 %v1666
        %2035 = vmatprep.subr.bf16.mxu0 %v1671
        %2036 = vmatpush1.bf16.msra.mxu0 %v1670
        %2037 = vmatprep.mubr.bf16.mxu0 %v618
        %2038 = vmatmul.mubr.bf16.gmra.mrb[0].mxu0 %v617
        %v2039 = vpop.f32.mrb[0].mxu0
        %v2040 = vadd.f32 %v1997, %v2039
        %v2041 = vpop.f32.mrb[0].mxu0
        %v2042 = vadd.f32 %v1999, %v2041
        %v2043 = vpop.f32.mrb[0].mxu0
        %v2044 = vadd.f32 %v2001, %v2043
        %v2045 = vpop.f32.mrb[0].mxu0
        %v2046 = vadd.f32 %v2003, %v2045
        %2047 = vdwg.mxu0
        %2048 = vmatprep.subr.bf16.mxu0 %v1675
        %2049 = vmatpush1.bf16.msra.mxu0 %v1674
        %2050 = vmatprep.subr.bf16.mxu0 %v1679
        %2051 = vmatpush1.bf16.msra.mxu0 %v1678
        %2052 = vmatprep.subr.bf16.mxu0 %v1683
        %2053 = vmatpush1.bf16.msra.mxu0 %v1682
        %2054 = vmatprep.subr.bf16.mxu0 %v1687
        %2055 = vmatpush1.bf16.msra.mxu0 %v1686
        %2056 = vmatprep.subr.bf16.mxu0 %v1911
        %2057 = vmatpush1.bf16.msra.mxu0 %v1908
        %2058 = vmatprep.subr.bf16.mxu0 0
        %2059 = vmatpush1.bf16.msra.mxu0 0
        %2060 = vmatprep.subr.bf16.mxu0 0
        %2061 = vmatpush1.bf16.msra.mxu0 0
        %2062 = vmatprep.subr.bf16.mxu0 0
        %2063 = vmatpush1.bf16.msra.mxu0 0
        %2064 = vmatprep.subr.bf16.mxu0 0
        %2065 = vmatpush1.bf16.msra.mxu0 0
        %2066 = vmatprep.subr.bf16.mxu0 0
        %2067 = vmatpush1.bf16.msra.mxu0 0
        %2068 = vmatprep.subr.bf16.mxu0 0
        %2069 = vmatpush1.bf16.msra.mxu0 0
        %2070 = vmatprep.subr.bf16.mxu0 0
        %2071 = vmatpush1.bf16.msra.mxu0 0
        %2072 = vmatprep.subr.bf16.mxu0 0
        %2073 = vmatpush1.bf16.msra.mxu0 0
        %2074 = vmatprep.subr.bf16.mxu0 0
        %2075 = vmatpush1.bf16.msra.mxu0 0
        %2076 = vmatprep.subr.bf16.mxu0 0
        %2077 = vmatpush1.bf16.msra.mxu0 0
        %2078 = vmatprep.subr.bf16.mxu0 0
        %2079 = vmatpush1.bf16.msra.mxu0 0
        %2080 = vmatprep.mubr.bf16.mxu0 0
        %2081 = vmatmul.mubr.bf16.gmra.mrb[0].mxu0 %v1904
        %v2082 = vpop.f32.mrb[0].mxu0
        %v2083 = vadd.f32 %v2040, %v2082
        %v2084 = vpop.f32.mrb[0].mxu0
        %v2085 = vadd.f32 %v2042, %v2084
        %v2086 = vpop.f32.mrb[0].mxu0
        %v2087 = vadd.f32 %v2044, %v2086
        %v2088 = vpop.f32.mrb[0].mxu0
        %v2089 = vadd.f32 %v2046, %v2088
        %2090 = vdwg.mxu0
        %2091 = vmatprep.subr.bf16.mxu0 %v1485
        %2092 = vmatpush1.bf16.msra.mxu0 %v1484
        %2093 = vmatprep.subr.bf16.mxu0 %v1489
        %2094 = vmatpush1.bf16.msra.mxu0 %v1488
        %2095 = vmatprep.subr.bf16.mxu0 %v1493
        %2096 = vmatpush1.bf16.msra.mxu0 %v1492
        %2097 = vmatprep.subr.bf16.mxu0 %v1497
        %2098 = vmatpush1.bf16.msra.mxu0 %v1496
        %2099 = vmatprep.subr.bf16.mxu0 %v1501
        %2100 = vmatpush1.bf16.msra.mxu0 %v1500
        %2101 = vmatprep.subr.bf16.mxu0 %v1505
        %2102 = vmatpush1.bf16.msra.mxu0 %v1504
        %2103 = vmatprep.subr.bf16.mxu0 %v1509
        %2104 = vmatpush1.bf16.msra.mxu0 %v1508
        %2105 = vmatprep.subr.bf16.mxu0 %v1513
        %2106 = vmatpush1.bf16.msra.mxu0 %v1512
        %2107 = vmatprep.subr.bf16.mxu0 %v1517
        %2108 = vmatpush1.bf16.msra.mxu0 %v1516
        %2109 = vmatprep.subr.bf16.mxu0 %v1521
        %2110 = vmatpush1.bf16.msra.mxu0 %v1520
        %2111 = vmatprep.subr.bf16.mxu0 %v1525
        %2112 = vmatpush1.bf16.msra.mxu0 %v1524
        %2113 = vmatprep.subr.bf16.mxu0 %v1529
        %2114 = vmatpush1.bf16.msra.mxu0 %v1528
        %2115 = vmatprep.subr.bf16.mxu0 %v1533
        %2116 = vmatpush1.bf16.msra.mxu0 %v1532
        %2117 = vmatprep.subr.bf16.mxu0 %v1537
        %2118 = vmatpush1.bf16.msra.mxu0 %v1536
        %2119 = vmatprep.subr.bf16.mxu0 %v1541
        %2120 = vmatpush1.bf16.msra.mxu0 %v1540
        %2121 = vmatprep.subr.bf16.mxu0 %v1545
        %2122 = vmatpush1.bf16.msra.mxu0 %v1544
        %2123 = vmatprep.mubr.bf16.mxu0 %v614
        %2124 = vmatmul.mubr.bf16.gmra.mrb[0].mxu0 %v613
        %v2125 = vpop.f32.mrb[0].mxu0
        %v2126 = vadd.f32 %v843, %v2125
        %v2127 = vpop.f32.mrb[0].mxu0
        %v2128 = vadd.f32 %v847, %v2127
        %v2129 = vpop.f32.mrb[0].mxu0
        %v2130 = vadd.f32 %v843, %v2129
        %v2131 = vpop.f32.mrb[0].mxu0
        %v2132 = vadd.f32 %v847, %v2131
        %2133 = vdwg.mxu0
        %2134 = vmatprep.subr.bf16.mxu0 %v1549
        %2135 = vmatpush1.bf16.msra.mxu0 %v1548
        %2136 = vmatprep.subr.bf16.mxu0 %v1553
        %2137 = vmatpush1.bf16.msra.mxu0 %v1552
        %2138 = vmatprep.subr.bf16.mxu0 %v1557
        %2139 = vmatpush1.bf16.msra.mxu0 %v1556
        %2140 = vmatprep.subr.bf16.mxu0 %v1561
        %2141 = vmatpush1.bf16.msra.mxu0 %v1560
        %2142 = vmatprep.subr.bf16.mxu0 %v1565
        %2143 = vmatpush1.bf16.msra.mxu0 %v1564
        %2144 = vmatprep.subr.bf16.mxu0 %v1569
        %2145 = vmatpush1.bf16.msra.mxu0 %v1568
        %2146 = vmatprep.subr.bf16.mxu0 %v1573
        %2147 = vmatpush1.bf16.msra.mxu0 %v1572
        %2148 = vmatprep.subr.bf16.mxu0 %v1577
        %2149 = vmatpush1.bf16.msra.mxu0 %v1576
        %2150 = vmatprep.subr.bf16.mxu0 %v1581
        %2151 = vmatpush1.bf16.msra.mxu0 %v1580
        %2152 = vmatprep.subr.bf16.mxu0 %v1585
        %2153 = vmatpush1.bf16.msra.mxu0 %v1584
        %2154 = vmatprep.subr.bf16.mxu0 %v1589
        %2155 = vmatpush1.bf16.msra.mxu0 %v1588
        %2156 = vmatprep.subr.bf16.mxu0 %v1593
        %2157 = vmatpush1.bf16.msra.mxu0 %v1592
        %2158 = vmatprep.subr.bf16.mxu0 %v1597
        %2159 = vmatpush1.bf16.msra.mxu0 %v1596
        %2160 = vmatprep.subr.bf16.mxu0 %v1601
        %2161 = vmatpush1.bf16.msra.mxu0 %v1600
        %2162 = vmatprep.subr.bf16.mxu0 %v1605
        %2163 = vmatpush1.bf16.msra.mxu0 %v1604
        %2164 = vmatprep.subr.bf16.mxu0 %v1609
        %2165 = vmatpush1.bf16.msra.mxu0 %v1608
        %2166 = vmatprep.mubr.bf16.mxu0 %v616
        %2167 = vmatmul.mubr.bf16.gmra.mrb[0].mxu0 %v615
        %v2168 = vpop.f32.mrb[0].mxu0
        %v2169 = vadd.f32 %v2126, %v2168
        %v2170 = vpop.f32.mrb[0].mxu0
        %v2171 = vadd.f32 %v2128, %v2170
        %v2172 = vpop.f32.mrb[0].mxu0
        %v2173 = vadd.f32 %v2130, %v2172
        %v2174 = vpop.f32.mrb[0].mxu0
        %v2175 = vadd.f32 %v2132, %v2174
        %2176 = vdwg.mxu0
        %2177 = vmatprep.subr.bf16.mxu0 %v1613
        %2178 = vmatpush1.bf16.msra.mxu0 %v1612
        %2179 = vmatprep.subr.bf16.mxu0 %v1617
        %2180 = vmatpush1.bf16.msra.mxu0 %v1616
        %2181 = vmatprep.subr.bf16.mxu0 %v1621
        %2182 = vmatpush1.bf16.msra.mxu0 %v1620
        %2183 = vmatprep.subr.bf16.mxu0 %v1625
        %2184 = vmatpush1.bf16.msra.mxu0 %v1624
        %2185 = vmatprep.subr.bf16.mxu0 %v1629
        %2186 = vmatpush1.bf16.msra.mxu0 %v1628
        %2187 = vmatprep.subr.bf16.mxu0 %v1633
        %2188 = vmatpush1.bf16.msra.mxu0 %v1632
        %2189 = vmatprep.subr.bf16.mxu0 %v1637
        %2190 = vmatpush1.bf16.msra.mxu0 %v1636
        %2191 = vmatprep.subr.bf16.mxu0 %v1641
        %2192 = vmatpush1.bf16.msra.mxu0 %v1640
        %2193 = vmatprep.subr.bf16.mxu0 %v1645
        %2194 = vmatpush1.bf16.msra.mxu0 %v1644
        %2195 = vmatprep.subr.bf16.mxu0 %v1649
        %2196 = vmatpush1.bf16.msra.mxu0 %v1648
        %2197 = vmatprep.subr.bf16.mxu0 %v1653
        %2198 = vmatpush1.bf16.msra.mxu0 %v1652
        %2199 = vmatprep.subr.bf16.mxu0 %v1657
        %2200 = vmatpush1.bf16.msra.mxu0 %v1656
        %2201 = vmatprep.subr.bf16.mxu0 %v1661
        %2202 = vmatpush1.bf16.msra.mxu0 %v1660
        %2203 = vmatprep.subr.bf16.mxu0 %v1665
        %2204 = vmatpush1.bf16.msra.mxu0 %v1664
        %2205 = vmatprep.subr.bf16.mxu0 %v1669
        %2206 = vmatpush1.bf16.msra.mxu0 %v1668
        %2207 = vmatprep.subr.bf16.mxu0 %v1673
        %2208 = vmatpush1.bf16.msra.mxu0 %v1672
        %2209 = vmatprep.mubr.bf16.mxu0 %v618
        %2210 = vmatmul.mubr.bf16.gmra.mrb[0].mxu0 %v617
        %v2211 = vpop.f32.mrb[0].mxu0
        %v2212 = vadd.f32 %v2169, %v2211
        %v2213 = vpop.f32.mrb[0].mxu0
        %v2214 = vadd.f32 %v2171, %v2213
        %v2215 = vpop.f32.mrb[0].mxu0
        %v2216 = vadd.f32 %v2173, %v2215
        %v2217 = vpop.f32.mrb[0].mxu0
        %v2218 = vadd.f32 %v2175, %v2217
        %2219 = vdwg.mxu0
        %2220 = vmatprep.subr.bf16.mxu0 %v1677
        %2221 = vmatpush1.bf16.msra.mxu0 %v1676
        %2222 = vmatprep.subr.bf16.mxu0 %v1681
        %2223 = vmatpush1.bf16.msra.mxu0 %v1680
        %2224 = vmatprep.subr.bf16.mxu0 %v1685
        %2225 = vmatpush1.bf16.msra.mxu0 %v1684
        %2226 = vmatprep.subr.bf16.mxu0 %v1689
        %2227 = vmatpush1.bf16.msra.mxu0 %v1688
        %2228 = vmatprep.subr.bf16.mxu0 %v1917
        %2229 = vmatpush1.bf16.msra.mxu0 %v1914
        %2230 = vmatprep.subr.bf16.mxu0 0
        %2231 = vmatpush1.bf16.msra.mxu0 0
        %2232 = vmatprep.subr.bf16.mxu0 0
        %2233 = vmatpush1.bf16.msra.mxu0 0
        %2234 = vmatprep.subr.bf16.mxu0 0
        %2235 = vmatpush1.bf16.msra.mxu0 0
        %2236 = vmatprep.subr.bf16.mxu0 0
        %2237 = vmatpush1.bf16.msra.mxu0 0
        %2238 = vmatprep.subr.bf16.mxu0 0
        %2239 = vmatpush1.bf16.msra.mxu0 0
        %2240 = vmatprep.subr.bf16.mxu0 0
        %2241 = vmatpush1.bf16.msra.mxu0 0
        %2242 = vmatprep.subr.bf16.mxu0 0
        %2243 = vmatpush1.bf16.msra.mxu0 0
        %2244 = vmatprep.subr.bf16.mxu0 0
        %2245 = vmatpush1.bf16.msra.mxu0 0
        %2246 = vmatprep.subr.bf16.mxu0 0
        %2247 = vmatpush1.bf16.msra.mxu0 0
        %2248 = vmatprep.subr.bf16.mxu0 0
        %2249 = vmatpush1.bf16.msra.mxu0 0
        %2250 = vmatprep.subr.bf16.mxu0 0
        %2251 = vmatpush1.bf16.msra.mxu0 0
        %2252 = vmatprep.mubr.bf16.mxu0 0
        %2253 = vmatmul.mubr.bf16.gmra.mrb[0].mxu0 %v1904
        %v2254 = vpop.f32.mrb[0].mxu0
        %v2255 = vadd.f32 %v2212, %v2254
        %v2256 = vpop.f32.mrb[0].mxu0
        %v2257 = vadd.f32 %v2214, %v2256
        %v2258 = vpop.f32.mrb[0].mxu0
        %v2259 = vadd.f32 %v2216, %v2258
        %v2260 = vpop.f32.mrb[0].mxu0
        %v2261 = vadd.f32 %v2218, %v2260
        %2262 = vdwg.mxu0
        %v2263 = vmax.f32 %v2083, 0.0
        %v2264 = vmax.f32 %v2085, 0.0
        %v2265 = vmax.f32 %v2255, 0.0
        %v2266 = vmax.f32 %v2257, 0.0
        %v2267 = vmax.f32 %v2087, 0.0
        %v2268 = vmax.f32 %v2089, 0.0
        %v2269 = vmax.f32 %v2259, 0.0
        %v2270 = vmax.f32 %v2261, 0.0
        %v2271 = vpack.c.bf16 %v2267, %v2263
        %v2272 = vpack.c.bf16 %v2268, %v2264
        %v2273 = vpack.c.bf16 %v2269, %v2265
        %v2274 = vpack.c.bf16 %v2270, %v2266
        %v2275 = vld [vmem:[#allocation4] sm:$0xff]
        %v2276 = vld [vmem:[#allocation4 + $0x8] sm:$0xff]
        %v2277 = vld [vmem:[#allocation4 + $0x10] sm:$0xff]
        %v2278 = vld [vmem:[#allocation4 + $0x18] sm:$0xff]
        %v2279 = vld [vmem:[#allocation4 + $0x20] sm:$0xff]
        %v2280 = vld [vmem:[#allocation4 + $0x28] sm:$0xff]
        %v2281 = vld [vmem:[#allocation4 + $0x30] sm:$0xff]
        %v2282 = vld [vmem:[#allocation4 + $0x38] sm:$0xff]
        %v2283 = vld [vmem:[#allocation4 + $0x40] sm:$0xff]
        %v2284 = vld [vmem:[#allocation4 + $0x48] sm:$0xff]
        %v2285 = vld [vmem:[#allocation4 + $0x50] sm:$0xff]
        %v2286 = vld [vmem:[#allocation4 + $0x58] sm:$0xff]
        %v2287 = vld [vmem:[#allocation4 + $0x60] sm:$0xff]
        %v2288 = vld [vmem:[#allocation4 + $0x68] sm:$0xff]
        %v2289 = vld [vmem:[#allocation4 + $0x70] sm:$0xff]
        %v2290 = vld [vmem:[#allocation4 + $0x78] sm:$0xff]
        %v2291 = vld [vmem:[#allocation4 + $0x80] sm:$0xff]
        %v2292 = vld [vmem:[#allocation4 + $0x88] sm:$0xff]
        %v2293 = vld [vmem:[#allocation4 + $0x90] sm:$0xff]
        %v2294 = vld [vmem:[#allocation4 + $0x98] sm:$0xff]
        %v2295 = vld [vmem:[#allocation4 + $0xa0] sm:$0xff]
        %v2296 = vld [vmem:[#allocation4 + $0xa8] sm:$0xff]
        %v2297 = vld [vmem:[#allocation4 + $0xb0] sm:$0xff]
        %v2298 = vld [vmem:[#allocation4 + $0xb8] sm:$0xff]
        %v2299 = vld [vmem:[#allocation4 + $0xc0] sm:$0xff]
        %v2300 = vld [vmem:[#allocation4 + $0xc8] sm:$0xff]
        %v2301 = vld [vmem:[#allocation4 + $0xd0] sm:$0xff]
        %v2302 = vld [vmem:[#allocation4 + $0xd8] sm:$0xff]
        %v2303 = vld [vmem:[#allocation4 + $0xe0] sm:$0xff]
        %v2304 = vld [vmem:[#allocation4 + $0xe8] sm:$0xff]
        %v2305 = vld [vmem:[#allocation4 + $0xf0] sm:$0xff]
        %v2306 = vld [vmem:[#allocation4 + $0xf8] sm:$0xff]
        %v2307 = vld [vmem:[#allocation4 + $0x100] sm:$0xff]
        %v2308 = vld [vmem:[#allocation4 + $0x108] sm:$0xff]
        %v2309 = vld [vmem:[#allocation4 + $0x110] sm:$0xff]
        %v2310 = vld [vmem:[#allocation4 + $0x118] sm:$0xff]
        %v2311 = vld [vmem:[#allocation4 + $0x120] sm:$0xff]
        %v2312 = vld [vmem:[#allocation4 + $0x128] sm:$0xff]
        %v2313 = vld [vmem:[#allocation4 + $0x130] sm:$0xff]
        %v2314 = vld [vmem:[#allocation4 + $0x138] sm:$0xff]
        %v2315 = vld [vmem:[#allocation4 + $0x140] sm:$0xff]
        %v2316 = vld [vmem:[#allocation4 + $0x148] sm:$0xff]
        %v2317 = vld [vmem:[#allocation4 + $0x150] sm:$0xff]
        %v2318 = vld [vmem:[#allocation4 + $0x158] sm:$0xff]
        %v2319 = vld [vmem:[#allocation4 + $0x160] sm:$0xff]
        %v2320 = vld [vmem:[#allocation4 + $0x168] sm:$0xff]
        %v2321 = vld [vmem:[#allocation4 + $0x170] sm:$0xff]
        %v2322 = vld [vmem:[#allocation4 + $0x178] sm:$0xff]
        %v2323 = vld [vmem:[#allocation4 + $0x180] sm:$0xff]
        %v2324 = vld [vmem:[#allocation4 + $0x188] sm:$0xff]
        %v2325 = vld [vmem:[#allocation4 + $0x190] sm:$0xff]
        %v2326 = vld [vmem:[#allocation4 + $0x198] sm:$0xff]
        %v2327 = vld [vmem:[#allocation4 + $0x1a0] sm:$0xff]
        %v2328 = vld [vmem:[#allocation4 + $0x1a8] sm:$0xff]
        %v2329 = vld [vmem:[#allocation4 + $0x1b0] sm:$0xff]
        %v2330 = vld [vmem:[#allocation4 + $0x1b8] sm:$0xff]
        %v2331 = vld [vmem:[#allocation4 + $0x1c0] sm:$0xff]
        %v2332 = vld [vmem:[#allocation4 + $0x1c8] sm:$0xff]
        %v2333 = vld [vmem:[#allocation4 + $0x1d0] sm:$0xff]
        %v2334 = vld [vmem:[#allocation4 + $0x1d8] sm:$0xff]
        %v2335 = vld [vmem:[#allocation4 + $0x1e0] sm:$0xff]
        %v2336 = vld [vmem:[#allocation4 + $0x1e8] sm:$0xff]
        %v2337 = vld [vmem:[#allocation4 + $0x1f0] sm:$0xff]
        %v2338 = vld [vmem:[#allocation4 + $0x1f8] sm:$0xff]
        %v2339 = vld [vmem:[%s5] sm:$0x3]
        %v2341 = vlaneseq
        %v2342 = vshrl.u32 %v2341, 7
        %v2343 = vsub.s32 0, %v2342
        %v2344 = vrot.slane %v2339, %v2343
        %v2345 = vlaneseq
        %v2346 = vshrl.u32 %v2345, 7
        %v2347 = vsub.s32 1, %v2346
        %v2348 = vrot.slane %v2339, %v2347
        %v2415 = vunpack.c.l.b16 %v2275
        %v2416 = vunpack.c.h.b16 %v2275
        %v2417 = vunpack.c.l.b16 %v2276
        %v2418 = vunpack.c.h.b16 %v2276
        %v2419 = vunpack.c.l.b16 %v2277
        %v2420 = vunpack.c.h.b16 %v2277
        %v2421 = vunpack.c.l.b16 %v2278
        %v2422 = vunpack.c.h.b16 %v2278
        %v2423 = vunpack.c.l.b16 %v2279
        %v2424 = vunpack.c.h.b16 %v2279
        %v2425 = vunpack.c.l.b16 %v2280
        %v2426 = vunpack.c.h.b16 %v2280
        %v2427 = vunpack.c.l.b16 %v2281
        %v2428 = vunpack.c.h.b16 %v2281
        %v2429 = vunpack.c.l.b16 %v2282
        %v2430 = vunpack.c.h.b16 %v2282
        %v2431 = vunpack.c.l.b16 %v2283
        %v2432 = vunpack.c.h.b16 %v2283
        %v2433 = vunpack.c.l.b16 %v2284
        %v2434 = vunpack.c.h.b16 %v2284
        %v2435 = vunpack.c.l.b16 %v2285
        %v2436 = vunpack.c.h.b16 %v2285
        %v2437 = vunpack.c.l.b16 %v2286
        %v2438 = vunpack.c.h.b16 %v2286
        %v2439 = vunpack.c.l.b16 %v2287
        %v2440 = vunpack.c.h.b16 %v2287
        %v2441 = vunpack.c.l.b16 %v2288
        %v2442 = vunpack.c.h.b16 %v2288
        %v2443 = vunpack.c.l.b16 %v2289
        %v2444 = vunpack.c.h.b16 %v2289
        %v2445 = vunpack.c.l.b16 %v2290
        %v2446 = vunpack.c.h.b16 %v2290
        %v2447 = vunpack.c.l.b16 %v2291
        %v2448 = vunpack.c.h.b16 %v2291
        %v2449 = vunpack.c.l.b16 %v2292
        %v2450 = vunpack.c.h.b16 %v2292
        %v2451 = vunpack.c.l.b16 %v2293
        %v2452 = vunpack.c.h.b16 %v2293
        %v2453 = vunpack.c.l.b16 %v2294
        %v2454 = vunpack.c.h.b16 %v2294
        %v2455 = vunpack.c.l.b16 %v2295
        %v2456 = vunpack.c.h.b16 %v2295
        %v2457 = vunpack.c.l.b16 %v2296
        %v2458 = vunpack.c.h.b16 %v2296
        %v2459 = vunpack.c.l.b16 %v2297
        %v2460 = vunpack.c.h.b16 %v2297
        %v2461 = vunpack.c.l.b16 %v2298
        %v2462 = vunpack.c.h.b16 %v2298
        %v2463 = vunpack.c.l.b16 %v2299
        %v2464 = vunpack.c.h.b16 %v2299
        %v2465 = vunpack.c.l.b16 %v2300
        %v2466 = vunpack.c.h.b16 %v2300
        %v2467 = vunpack.c.l.b16 %v2301
        %v2468 = vunpack.c.h.b16 %v2301
        %v2469 = vunpack.c.l.b16 %v2302
        %v2470 = vunpack.c.h.b16 %v2302
        %v2471 = vunpack.c.l.b16 %v2303
        %v2472 = vunpack.c.h.b16 %v2303
        %v2473 = vunpack.c.l.b16 %v2304
        %v2474 = vunpack.c.h.b16 %v2304
        %v2475 = vunpack.c.l.b16 %v2305
        %v2476 = vunpack.c.h.b16 %v2305
        %v2477 = vunpack.c.l.b16 %v2306
        %v2478 = vunpack.c.h.b16 %v2306
        %v2479 = vunpack.c.l.b16 %v2307
        %v2480 = vunpack.c.h.b16 %v2307
        %v2481 = vunpack.c.l.b16 %v2308
        %v2482 = vunpack.c.h.b16 %v2308
        %v2483 = vunpack.c.l.b16 %v2309
        %v2484 = vunpack.c.h.b16 %v2309
        %v2485 = vunpack.c.l.b16 %v2310
        %v2486 = vunpack.c.h.b16 %v2310
        %v2487 = vunpack.c.l.b16 %v2311
        %v2488 = vunpack.c.h.b16 %v2311
        %v2489 = vunpack.c.l.b16 %v2312
        %v2490 = vunpack.c.h.b16 %v2312
        %v2491 = vunpack.c.l.b16 %v2313
        %v2492 = vunpack.c.h.b16 %v2313
        %v2493 = vunpack.c.l.b16 %v2314
        %v2494 = vunpack.c.h.b16 %v2314
        %v2495 = vunpack.c.l.b16 %v2315
        %v2496 = vunpack.c.h.b16 %v2315
        %v2497 = vunpack.c.l.b16 %v2316
        %v2498 = vunpack.c.h.b16 %v2316
        %v2499 = vunpack.c.l.b16 %v2317
        %v2500 = vunpack.c.h.b16 %v2317
        %v2501 = vunpack.c.l.b16 %v2318
        %v2502 = vunpack.c.h.b16 %v2318
        %v2503 = vunpack.c.l.b16 %v2319
        %v2504 = vunpack.c.h.b16 %v2319
        %v2505 = vunpack.c.l.b16 %v2320
        %v2506 = vunpack.c.h.b16 %v2320
        %v2507 = vunpack.c.l.b16 %v2321
        %v2508 = vunpack.c.h.b16 %v2321
        %v2509 = vunpack.c.l.b16 %v2322
        %v2510 = vunpack.c.h.b16 %v2322
        %v2511 = vunpack.c.l.b16 %v2323
        %v2512 = vunpack.c.h.b16 %v2323
        %v2513 = vunpack.c.l.b16 %v2324
        %v2514 = vunpack.c.h.b16 %v2324
        %v2515 = vunpack.c.l.b16 %v2325
        %v2516 = vunpack.c.h.b16 %v2325
        %v2517 = vunpack.c.l.b16 %v2326
        %v2518 = vunpack.c.h.b16 %v2326
        %v2519 = vunpack.c.l.b16 %v2327
        %v2520 = vunpack.c.h.b16 %v2327
        %v2521 = vunpack.c.l.b16 %v2328
        %v2522 = vunpack.c.h.b16 %v2328
        %v2523 = vunpack.c.l.b16 %v2329
        %v2524 = vunpack.c.h.b16 %v2329
        %v2525 = vunpack.c.l.b16 %v2330
        %v2526 = vunpack.c.h.b16 %v2330
        %v2527 = vunpack.c.l.b16 %v2331
        %v2528 = vunpack.c.h.b16 %v2331
        %v2529 = vunpack.c.l.b16 %v2332
        %v2530 = vunpack.c.h.b16 %v2332
        %v2531 = vunpack.c.l.b16 %v2333
        %v2532 = vunpack.c.h.b16 %v2333
        %v2533 = vunpack.c.l.b16 %v2334
        %v2534 = vunpack.c.h.b16 %v2334
        %v2535 = vunpack.c.l.b16 %v2335
        %v2536 = vunpack.c.h.b16 %v2335
        %v2537 = vunpack.c.l.b16 %v2336
        %v2538 = vunpack.c.h.b16 %v2336
        %v2539 = vunpack.c.l.b16 %v2337
        %v2540 = vunpack.c.h.b16 %v2337
        %v2541 = vunpack.c.l.b16 %v2338
        %v2542 = vunpack.c.h.b16 %v2338
        %v2543 = vpack.c.b16 %v2417, %v2415
        %v2544 = vpack.c.b16 %v2418, %v2416
        %v2545 = vpack.c.b16 %v2421, %v2419
        %v2546 = vpack.c.b16 %v2422, %v2420
        %v2547 = vpack.c.b16 %v2425, %v2423
        %v2548 = vpack.c.b16 %v2426, %v2424
        %v2549 = vpack.c.b16 %v2429, %v2427
        %v2550 = vpack.c.b16 %v2430, %v2428
        %v2551 = vpack.c.b16 %v2433, %v2431
        %v2552 = vpack.c.b16 %v2434, %v2432
        %v2553 = vpack.c.b16 %v2437, %v2435
        %v2554 = vpack.c.b16 %v2438, %v2436
        %v2555 = vpack.c.b16 %v2441, %v2439
        %v2556 = vpack.c.b16 %v2442, %v2440
        %v2557 = vpack.c.b16 %v2445, %v2443
        %v2558 = vpack.c.b16 %v2446, %v2444
        %v2559 = vpack.c.b16 %v2449, %v2447
        %v2560 = vpack.c.b16 %v2450, %v2448
        %v2561 = vpack.c.b16 %v2453, %v2451
        %v2562 = vpack.c.b16 %v2454, %v2452
        %v2563 = vpack.c.b16 %v2457, %v2455
        %v2564 = vpack.c.b16 %v2458, %v2456
        %v2565 = vpack.c.b16 %v2461, %v2459
        %v2566 = vpack.c.b16 %v2462, %v2460
        %v2567 = vpack.c.b16 %v2465, %v2463
        %v2568 = vpack.c.b16 %v2466, %v2464
        %v2569 = vpack.c.b16 %v2469, %v2467
        %v2570 = vpack.c.b16 %v2470, %v2468
        %v2571 = vpack.c.b16 %v2473, %v2471
        %v2572 = vpack.c.b16 %v2474, %v2472
        %v2573 = vpack.c.b16 %v2477, %v2475
        %v2574 = vpack.c.b16 %v2478, %v2476
        %v2575 = vpack.c.b16 %v2481, %v2479
        %v2576 = vpack.c.b16 %v2482, %v2480
        %v2577 = vpack.c.b16 %v2485, %v2483
        %v2578 = vpack.c.b16 %v2486, %v2484
        %v2579 = vpack.c.b16 %v2489, %v2487
        %v2580 = vpack.c.b16 %v2490, %v2488
        %v2581 = vpack.c.b16 %v2493, %v2491
        %v2582 = vpack.c.b16 %v2494, %v2492
        %v2583 = vpack.c.b16 %v2497, %v2495
        %v2584 = vpack.c.b16 %v2498, %v2496
        %v2585 = vpack.c.b16 %v2501, %v2499
        %v2586 = vpack.c.b16 %v2502, %v2500
        %v2587 = vpack.c.b16 %v2505, %v2503
        %v2588 = vpack.c.b16 %v2506, %v2504
        %v2589 = vpack.c.b16 %v2509, %v2507
        %v2590 = vpack.c.b16 %v2510, %v2508
        %v2591 = vpack.c.b16 %v2513, %v2511
        %v2592 = vpack.c.b16 %v2514, %v2512
        %v2593 = vpack.c.b16 %v2517, %v2515
        %v2594 = vpack.c.b16 %v2518, %v2516
        %v2595 = vpack.c.b16 %v2521, %v2519
        %v2596 = vpack.c.b16 %v2522, %v2520
        %v2597 = vpack.c.b16 %v2525, %v2523
        %v2598 = vpack.c.b16 %v2526, %v2524
        %v2599 = vpack.c.b16 %v2529, %v2527
        %v2600 = vpack.c.b16 %v2530, %v2528
        %v2601 = vpack.c.b16 %v2533, %v2531
        %v2602 = vpack.c.b16 %v2534, %v2532
        %v2603 = vpack.c.b16 %v2537, %v2535
        %v2604 = vpack.c.b16 %v2538, %v2536
        %v2605 = vpack.c.b16 %v2541, %v2539
        %v2606 = vpack.c.b16 %v2542, %v2540
        %2671 = vmatprep.subr.bf16.mxu0 %v2544
        %2672 = vmatpush1.bf16.msra.mxu0 %v2543
        %2673 = vmatprep.subr.bf16.mxu0 %v2546
        %2674 = vmatpush1.bf16.msra.mxu0 %v2545
        %2675 = vmatprep.subr.bf16.mxu0 %v2548
        %2676 = vmatpush1.bf16.msra.mxu0 %v2547
        %2677 = vmatprep.subr.bf16.mxu0 %v2550
        %2678 = vmatpush1.bf16.msra.mxu0 %v2549
        %2679 = vmatprep.subr.bf16.mxu0 %v2552
        %2680 = vmatpush1.bf16.msra.mxu0 %v2551
        %2681 = vmatprep.subr.bf16.mxu0 %v2554
        %2682 = vmatpush1.bf16.msra.mxu0 %v2553
        %2683 = vmatprep.subr.bf16.mxu0 %v2556
        %2684 = vmatpush1.bf16.msra.mxu0 %v2555
        %2685 = vmatprep.subr.bf16.mxu0 %v2558
        %2686 = vmatpush1.bf16.msra.mxu0 %v2557
        %2687 = vmatprep.subr.bf16.mxu0 %v2560
        %2688 = vmatpush1.bf16.msra.mxu0 %v2559
        %2689 = vmatprep.subr.bf16.mxu0 %v2562
        %2690 = vmatpush1.bf16.msra.mxu0 %v2561
        %2691 = vmatprep.subr.bf16.mxu0 %v2564
        %2692 = vmatpush1.bf16.msra.mxu0 %v2563
        %2693 = vmatprep.subr.bf16.mxu0 %v2566
        %2694 = vmatpush1.bf16.msra.mxu0 %v2565
        %2695 = vmatprep.subr.bf16.mxu0 %v2568
        %2696 = vmatpush1.bf16.msra.mxu0 %v2567
        %2697 = vmatprep.subr.bf16.mxu0 %v2570
        %2698 = vmatpush1.bf16.msra.mxu0 %v2569
        %2699 = vmatprep.subr.bf16.mxu0 %v2572
        %2700 = vmatpush1.bf16.msra.mxu0 %v2571
        %2701 = vmatprep.subr.bf16.mxu0 %v2574
        %2702 = vmatpush1.bf16.msra.mxu0 %v2573
        %2703 = vmatprep.mubr.bf16.mxu0 %v2272
        %2704 = vmatmul.mubr.bf16.gmra.mrb[0].mxu0 %v2271
        %v2705 = vpop.f32.mrb[0].mxu0
        %v2706 = vadd.f32 %v2344, %v2705
        %v2707 = vpop.f32.mrb[0].mxu0
        %v2708 = vadd.f32 %v2348, %v2707
        %v2709 = vpop.f32.mrb[0].mxu0
        %v2710 = vadd.f32 %v2344, %v2709
        %v2711 = vpop.f32.mrb[0].mxu0
        %v2712 = vadd.f32 %v2348, %v2711
        %2713 = vdwg.mxu0
        %2714 = vmatprep.subr.bf16.mxu0 %v2576
        %2715 = vmatpush1.bf16.msra.mxu0 %v2575
        %2716 = vmatprep.subr.bf16.mxu0 %v2578
        %2717 = vmatpush1.bf16.msra.mxu0 %v2577
        %2718 = vmatprep.subr.bf16.mxu0 %v2580
        %2719 = vmatpush1.bf16.msra.mxu0 %v2579
        %2720 = vmatprep.subr.bf16.mxu0 %v2582
        %2721 = vmatpush1.bf16.msra.mxu0 %v2581
        %2722 = vmatprep.subr.bf16.mxu0 %v2584
        %2723 = vmatpush1.bf16.msra.mxu0 %v2583
        %2724 = vmatprep.subr.bf16.mxu0 %v2586
        %2725 = vmatpush1.bf16.msra.mxu0 %v2585
        %2726 = vmatprep.subr.bf16.mxu0 %v2588
        %2727 = vmatpush1.bf16.msra.mxu0 %v2587
        %2728 = vmatprep.subr.bf16.mxu0 %v2590
        %2729 = vmatpush1.bf16.msra.mxu0 %v2589
        %2730 = vmatprep.subr.bf16.mxu0 %v2592
        %2731 = vmatpush1.bf16.msra.mxu0 %v2591
        %2732 = vmatprep.subr.bf16.mxu0 %v2594
        %2733 = vmatpush1.bf16.msra.mxu0 %v2593
        %2734 = vmatprep.subr.bf16.mxu0 %v2596
        %2735 = vmatpush1.bf16.msra.mxu0 %v2595
        %2736 = vmatprep.subr.bf16.mxu0 %v2598
        %2737 = vmatpush1.bf16.msra.mxu0 %v2597
        %2738 = vmatprep.subr.bf16.mxu0 %v2600
        %2739 = vmatpush1.bf16.msra.mxu0 %v2599
        %2740 = vmatprep.subr.bf16.mxu0 %v2602
        %2741 = vmatpush1.bf16.msra.mxu0 %v2601
        %2742 = vmatprep.subr.bf16.mxu0 %v2604
        %2743 = vmatpush1.bf16.msra.mxu0 %v2603
        %2744 = vmatprep.subr.bf16.mxu0 %v2606
        %2745 = vmatpush1.bf16.msra.mxu0 %v2605
        %2746 = vmatprep.mubr.bf16.mxu0 %v2274
        %2747 = vmatmul.mubr.bf16.gmra.mrb[0].mxu0 %v2273
        %v2748 = vpop.f32.mrb[0].mxu0
        %v2749 = vadd.f32 %v2706, %v2748
        %v2750 = vpop.f32.mrb[0].mxu0
        %v2751 = vadd.f32 %v2708, %v2750
        %v2752 = vpop.f32.mrb[0].mxu0
        %v2753 = vadd.f32 %v2710, %v2752
        %v2754 = vpop.f32.mrb[0].mxu0
        %v2755 = vadd.f32 %v2712, %v2754
        %2756 = vdwg.mxu0
        %v2757 = vmax.f32 %v2749, 0.0
        %v2758 = vmax.f32 %v2751, 0.0
        %v2759 = vmax.f32 %v2753, 0.0
        %v2760 = vmax.f32 %v2755, 0.0
        %v2761 = vpack.c.bf16 %v2759, %v2757
        %v2762 = vpack.c.bf16 %v2760, %v2758
        %v2763 = vld [vmem:[%s6] sm:$0xf]
        %v2764 = vld [vmem:[%s6 + $0x4] sm:$0xf]
        %v2765 = vld [vmem:[%s6 + $0x8] sm:$0xf]
        %v2766 = vld [vmem:[%s6 + $0xc] sm:$0xf]
        %v2767 = vld [vmem:[%s6 + $0x10] sm:$0xf]
        %v2768 = vld [vmem:[%s6 + $0x14] sm:$0xf]
        %v2769 = vld [vmem:[%s6 + $0x18] sm:$0xf]
        %v2770 = vld [vmem:[%s6 + $0x1c] sm:$0xf]
        %v2771 = vld [vmem:[%s6 + $0x20] sm:$0xf]
        %v2772 = vld [vmem:[%s6 + $0x24] sm:$0xf]
        %v2773 = vld [vmem:[%s6 + $0x28] sm:$0xf]
        %v2774 = vld [vmem:[%s6 + $0x2c] sm:$0xf]
        %v2775 = vld [vmem:[%s6 + $0x30] sm:$0xf]
        %v2776 = vld [vmem:[%s6 + $0x34] sm:$0xf]
        %v2777 = vld [vmem:[%s6 + $0x38] sm:$0xf]
        %v2778 = vld [vmem:[%s6 + $0x3c] sm:$0xf]
        %v2779 = vld [vmem:[%s6 + $0x40] sm:$0xf]
        %v2780 = vld [vmem:[%s6 + $0x44] sm:$0xf]
        %v2781 = vld [vmem:[%s6 + $0x48] sm:$0xf]
        %v2782 = vld [vmem:[%s6 + $0x4c] sm:$0xf]
        %v2783 = vld [vmem:[%s6 + $0x50] sm:$0xf]
        %v2784 = vld [vmem:[%s6 + $0x54] sm:$0xf]
        %v2785 = vld [vmem:[%s6 + $0x58] sm:$0xf]
        %v2786 = vld [vmem:[%s6 + $0x5c] sm:$0xf]
        %v2787 = vld [vmem:[%s6 + $0x60] sm:$0xf]
        %v2788 = vld [vmem:[%s6 + $0x64] sm:$0xf]
        %v2789 = vld [vmem:[%s6 + $0x68] sm:$0xf]
        %v2790 = vld [vmem:[%s6 + $0x6c] sm:$0xf]
        %v2791 = vld [vmem:[%s6 + $0x70] sm:$0xf]
        %v2792 = vld [vmem:[%s6 + $0x74] sm:$0xf]
        %v2793 = vld [vmem:[%s6 + $0x78] sm:$0xf]
        %v2794 = vld [vmem:[%s6 + $0x7c] sm:$0xf]
        %v2795 = vld [vmem:[%s7] sm:$0x1]
        %v2797 = vlaneseq
        %v2798 = vshrl.u32 %v2797, 7
        %v2799 = vsub.s32 0, %v2798
        %v2800 = vrot.slane %v2795, %v2799
        %v2834 = vunpack.c.l.b16 %v2763
        %v2835 = vunpack.c.l.b16 %v2764
        %v2836 = vunpack.c.l.b16 %v2765
        %v2837 = vunpack.c.l.b16 %v2766
        %v2838 = vunpack.c.l.b16 %v2767
        %v2839 = vunpack.c.l.b16 %v2768
        %v2840 = vunpack.c.l.b16 %v2769
        %v2841 = vunpack.c.l.b16 %v2770
        %v2842 = vunpack.c.l.b16 %v2771
        %v2843 = vunpack.c.l.b16 %v2772
        %v2844 = vunpack.c.l.b16 %v2773
        %v2845 = vunpack.c.l.b16 %v2774
        %v2846 = vunpack.c.l.b16 %v2775
        %v2847 = vunpack.c.l.b16 %v2776
        %v2848 = vunpack.c.l.b16 %v2777
        %v2849 = vunpack.c.l.b16 %v2778
        %v2850 = vunpack.c.l.b16 %v2779
        %v2851 = vunpack.c.l.b16 %v2780
        %v2852 = vunpack.c.l.b16 %v2781
        %v2853 = vunpack.c.l.b16 %v2782
        %v2854 = vunpack.c.l.b16 %v2783
        %v2855 = vunpack.c.l.b16 %v2784
        %v2856 = vunpack.c.l.b16 %v2785
        %v2857 = vunpack.c.l.b16 %v2786
        %v2858 = vunpack.c.l.b16 %v2787
        %v2859 = vunpack.c.l.b16 %v2788
        %v2860 = vunpack.c.l.b16 %v2789
        %v2861 = vunpack.c.l.b16 %v2790
        %v2862 = vunpack.c.l.b16 %v2791
        %v2863 = vunpack.c.l.b16 %v2792
        %v2864 = vunpack.c.l.b16 %v2793
        %v2865 = vunpack.c.l.b16 %v2794
        %v2866 = vpack.c.b16 %v2835, %v2834
        %v2867 = vpack.c.b16 %v2837, %v2836
        %v2868 = vpack.c.b16 %v2839, %v2838
        %v2869 = vpack.c.b16 %v2841, %v2840
        %v2870 = vpack.c.b16 %v2843, %v2842
        %v2871 = vpack.c.b16 %v2845, %v2844
        %v2872 = vpack.c.b16 %v2847, %v2846
        %v2873 = vpack.c.b16 %v2849, %v2848
        %v2874 = vpack.c.b16 %v2851, %v2850
        %v2875 = vpack.c.b16 %v2853, %v2852
        %v2876 = vpack.c.b16 %v2855, %v2854
        %v2877 = vpack.c.b16 %v2857, %v2856
        %v2878 = vpack.c.b16 %v2859, %v2858
        %v2879 = vpack.c.b16 %v2861, %v2860
        %v2880 = vpack.c.b16 %v2863, %v2862
        %v2881 = vpack.c.b16 %v2865, %v2864
        %2898 = vmatprep.subr.bf16.mxu0 0
        %2899 = vmatpush1.bf16.msra.mxu0 %v2866
        %2900 = vmatprep.subr.bf16.mxu0 0
        %2901 = vmatpush1.bf16.msra.mxu0 %v2867
        %2902 = vmatprep.subr.bf16.mxu0 0
        %2903 = vmatpush1.bf16.msra.mxu0 %v2868
        %2904 = vmatprep.subr.bf16.mxu0 0
        %2905 = vmatpush1.bf16.msra.mxu0 %v2869
        %2906 = vmatprep.subr.bf16.mxu0 0
        %2907 = vmatpush1.bf16.msra.mxu0 %v2870
        %2908 = vmatprep.subr.bf16.mxu0 0
        %2909 = vmatpush1.bf16.msra.mxu0 %v2871
        %2910 = vmatprep.subr.bf16.mxu0 0
        %2911 = vmatpush1.bf16.msra.mxu0 %v2872
        %2912 = vmatprep.subr.bf16.mxu0 0
        %2913 = vmatpush1.bf16.msra.mxu0 %v2873
        %2914 = vmatprep.subr.bf16.mxu0 0
        %2915 = vmatpush1.bf16.msra.mxu0 %v2874
        %2916 = vmatprep.subr.bf16.mxu0 0
        %2917 = vmatpush1.bf16.msra.mxu0 %v2875
        %2918 = vmatprep.subr.bf16.mxu0 0
        %2919 = vmatpush1.bf16.msra.mxu0 %v2876
        %2920 = vmatprep.subr.bf16.mxu0 0
        %2921 = vmatpush1.bf16.msra.mxu0 %v2877
        %2922 = vmatprep.subr.bf16.mxu0 0
        %2923 = vmatpush1.bf16.msra.mxu0 %v2878
        %2924 = vmatprep.subr.bf16.mxu0 0
        %2925 = vmatpush1.bf16.msra.mxu0 %v2879
        %2926 = vmatprep.subr.bf16.mxu0 0
        %2927 = vmatpush1.bf16.msra.mxu0 %v2880
        %2928 = vmatprep.subr.bf16.mxu0 0
        %2929 = vmatpush1.bf16.msra.mxu0 %v2881
        %2930 = vmatprep.mubr.bf16.mxu0 %v2762
        %2931 = vmatmul.mubr.bf16.gmra.mrb[0].mxu0 %v2761
        %v2932 = vpop.f32.mrb[0].mxu0
        %v2933 = vadd.f32 %v2800, %v2932
        %v2934 = vpop.f32.mrb[0].mxu0
        %v2935 = vpop.f32.mrb[0].mxu0
        %v2936 = vadd.f32 %v2800, %v2935
        %v2937 = vpop.f32.mrb[0].mxu0
        %2938 = vdwg.mxu0
        %2939 = vst [vmem:[%s596] sm:$0xff] %v2933
        %2940 = vst [vmem:[%s596 + $0x8] sm:$0xff] %v2936
        %v2941 = vmul.f32 %v2933, 0.5
        %v2942 = vmul.f32 %v2936, 0.5
        %v2943 = vmul.f32 %v2941, 1.442695
        %v2944 = vpow.pop %v2943
        %v2945 = vmul.f32 %v2942, 1.442695
        %v2946 = vpow.pop %v2945
        %v2947 = vld [vmem:[%s583] sm:$0xff]
        %v2948 = vld [vmem:[%s583 + $0x8] sm:$0xff]
        %2951 = vrot.lane.b32.xlu0 %v2944, 64
        %v2952 = vpop.permute.xlu0 %2951
        %2953 = vrot.lane.b32.xlu0 %v2946, 64
        %v2954 = vpop.permute.xlu0 %2953
        %v2957 = vmul.f32 %v2947, %v2952
        %v2958 = vmul.f32 %v2948, %v2954
        %v2959 = vadd.f32 %v2933, %v2957
        %v2960 = vadd.f32 %v2936, %v2958
        %v2961 = vpack.c.bf16 %v2960, %v2959
        %v2962 = vld [vmem:[%s8] sm:$0xff]
        %v2963 = vld [vmem:[%s8 + $0x8] sm:$0xff]
        %v2964 = vld [vmem:[%s8 + $0x10] sm:$0xff]
        %v2965 = vld [vmem:[%s8 + $0x18] sm:$0xff]
        %v2966 = vld [vmem:[%s8 + $0x20] sm:$0xff]
        %v2967 = vld [vmem:[%s8 + $0x28] sm:$0xff]
        %v2968 = vld [vmem:[%s8 + $0x30] sm:$0xff]
        %v2969 = vld [vmem:[%s8 + $0x38] sm:$0xff]
        %v2970 = vld [vmem:[%s9] sm:$0x3]
        %v2972 = vlaneseq
        %v2973 = vshrl.u32 %v2972, 7
        %v2974 = vsub.s32 0, %v2973
        %v2975 = vrot.slane %v2970, %v2974
        %v2976 = vlaneseq
        %v2977 = vshrl.u32 %v2976, 7
        %v2978 = vsub.s32 1, %v2977
        %v2979 = vrot.slane %v2970, %v2978
        %v2990 = vunpack.c.l.b16 %v2962
        %v2991 = vunpack.c.h.b16 %v2962
        %v2992 = vunpack.c.l.b16 %v2963
        %v2993 = vunpack.c.h.b16 %v2963
        %v2994 = vunpack.c.l.b16 %v2964
        %v2995 = vunpack.c.h.b16 %v2964
        %v2996 = vunpack.c.l.b16 %v2965
        %v2997 = vunpack.c.h.b16 %v2965
        %v2998 = vunpack.c.l.b16 %v2966
        %v2999 = vunpack.c.h.b16 %v2966
        %v3000 = vunpack.c.l.b16 %v2967
        %v3001 = vunpack.c.h.b16 %v2967
        %v3002 = vunpack.c.l.b16 %v2968
        %v3003 = vunpack.c.h.b16 %v2968
        %v3004 = vunpack.c.l.b16 %v2969
        %v3005 = vunpack.c.h.b16 %v2969
        %v3006 = vpack.c.b16 %v2992, %v2990
        %v3007 = vpack.c.b16 %v2993, %v2991
        %v3008 = vpack.c.b16 %v2996, %v2994
        %v3009 = vpack.c.b16 %v2997, %v2995
        %v3010 = vpack.c.b16 %v3000, %v2998
        %v3011 = vpack.c.b16 %v3001, %v2999
        %v3012 = vpack.c.b16 %v3004, %v3002
        %v3013 = vpack.c.b16 %v3005, %v3003
        %vm3022 = vcmask 523264
        %v3024 = vsel %vm3022, %v2961, 0
        %3026 = vmatprep.subr.bf16.mxu0 %v3007
        %3027 = vmatpush1.bf16.msra.mxu0 %v3006
        %3028 = vmatprep.subr.bf16.mxu0 %v3009
        %3029 = vmatpush1.bf16.msra.mxu0 %v3008
        %3030 = vmatprep.subr.bf16.mxu0 %v3011
        %3031 = vmatpush1.bf16.msra.mxu0 %v3010
        %3032 = vmatprep.subr.bf16.mxu0 %v3013
        %3033 = vmatpush1.bf16.msra.mxu0 %v3012
        %3034 = vmatprep.subr.bf16.mxu0 0
        %3035 = vmatpush1.bf16.msra.mxu0 0
        %3036 = vmatprep.subr.bf16.mxu0 0
        %3037 = vmatpush1.bf16.msra.mxu0 0
        %3038 = vmatprep.subr.bf16.mxu0 0
        %3039 = vmatpush1.bf16.msra.mxu0 0
        %3040 = vmatprep.subr.bf16.mxu0 0
        %3041 = vmatpush1.bf16.msra.mxu0 0
        %3042 = vmatprep.subr.bf16.mxu0 0
        %3043 = vmatpush1.bf16.msra.mxu0 0
        %3044 = vmatprep.subr.bf16.mxu0 0
        %3045 = vmatpush1.bf16.msra.mxu0 0
        %3046 = vmatprep.subr.bf16.mxu0 0
        %3047 = vmatpush1.bf16.msra.mxu0 0
        %3048 = vmatprep.subr.bf16.mxu0 0
        %3049 = vmatpush1.bf16.msra.mxu0 0
        %3050 = vmatprep.subr.bf16.mxu0 0
        %3051 = vmatpush1.bf16.msra.mxu0 0
        %3052 = vmatprep.subr.bf16.mxu0 0
        %3053 = vmatpush1.bf16.msra.mxu0 0
        %3054 = vmatprep.subr.bf16.mxu0 0
        %3055 = vmatpush1.bf16.msra.mxu0 0
        %3056 = vmatprep.subr.bf16.mxu0 0
        %3057 = vmatpush1.bf16.msra.mxu0 0
        %3058 = vmatprep.mubr.bf16.mxu0 0
        %3059 = vmatmul.mubr.bf16.gmra.mrb[0].mxu0 %v3024
        %v3060 = vpop.f32.mrb[0].mxu0
        %v3061 = vadd.f32 %v2975, %v3060
        %v3062 = vpop.f32.mrb[0].mxu0
        %v3063 = vadd.f32 %v2979, %v3062
        %v3064 = vpop.f32.mrb[0].mxu0
        %v3065 = vadd.f32 %v2975, %v3064
        %v3066 = vpop.f32.mrb[0].mxu0
        %v3067 = vadd.f32 %v2979, %v3066
        %3068 = vdwg.mxu0
        %v3069 = vmax.f32 %v3061, 0.0
        %v3070 = vmax.f32 %v3063, 0.0
        %v3071 = vmax.f32 %v3065, 0.0
        %v3072 = vmax.f32 %v3067, 0.0
        %v3073 = vpack.c.bf16 %v3071, %v3069
        %v3074 = vpack.c.bf16 %v3072, %v3070
        %v3075 = vld [vmem:[#allocation6] sm:$0xff]
        %v3076 = vld [vmem:[#allocation6 + $0x8] sm:$0xff]
        %v3077 = vld [vmem:[#allocation6 + $0x10] sm:$0xff]
        %v3078 = vld [vmem:[#allocation6 + $0x18] sm:$0xff]
        %v3079 = vld [vmem:[#allocation6 + $0x20] sm:$0xff]
        %v3080 = vld [vmem:[#allocation6 + $0x28] sm:$0xff]
        %v3081 = vld [vmem:[#allocation6 + $0x30] sm:$0xff]
        %v3082 = vld [vmem:[#allocation6 + $0x38] sm:$0xff]
        %v3083 = vld [vmem:[#allocation6 + $0x40] sm:$0xff]
        %v3084 = vld [vmem:[#allocation6 + $0x48] sm:$0xff]
        %v3085 = vld [vmem:[#allocation6 + $0x50] sm:$0xff]
        %v3086 = vld [vmem:[#allocation6 + $0x58] sm:$0xff]
        %v3087 = vld [vmem:[#allocation6 + $0x60] sm:$0xff]
        %v3088 = vld [vmem:[#allocation6 + $0x68] sm:$0xff]
        %v3089 = vld [vmem:[#allocation6 + $0x70] sm:$0xff]
        %v3090 = vld [vmem:[#allocation6 + $0x78] sm:$0xff]
        %v3091 = vld [vmem:[#allocation6 + $0x80] sm:$0xff]
        %v3092 = vld [vmem:[#allocation6 + $0x88] sm:$0xff]
        %v3093 = vld [vmem:[#allocation6 + $0x90] sm:$0xff]
        %v3094 = vld [vmem:[#allocation6 + $0x98] sm:$0xff]
        %v3095 = vld [vmem:[#allocation6 + $0xa0] sm:$0xff]
        %v3096 = vld [vmem:[#allocation6 + $0xa8] sm:$0xff]
        %v3097 = vld [vmem:[#allocation6 + $0xb0] sm:$0xff]
        %v3098 = vld [vmem:[#allocation6 + $0xb8] sm:$0xff]
        %v3099 = vld [vmem:[#allocation6 + $0xc0] sm:$0xff]
        %v3100 = vld [vmem:[#allocation6 + $0xc8] sm:$0xff]
        %v3101 = vld [vmem:[#allocation6 + $0xd0] sm:$0xff]
        %v3102 = vld [vmem:[#allocation6 + $0xd8] sm:$0xff]
        %v3103 = vld [vmem:[#allocation6 + $0xe0] sm:$0xff]
        %v3104 = vld [vmem:[#allocation6 + $0xe8] sm:$0xff]
        %v3105 = vld [vmem:[#allocation6 + $0xf0] sm:$0xff]
        %v3106 = vld [vmem:[#allocation6 + $0xf8] sm:$0xff]
        %v3107 = vld [vmem:[#allocation6 + $0x100] sm:$0xff]
        %v3108 = vld [vmem:[#allocation6 + $0x108] sm:$0xff]
        %v3109 = vld [vmem:[#allocation6 + $0x110] sm:$0xff]
        %v3110 = vld [vmem:[#allocation6 + $0x118] sm:$0xff]
        %v3111 = vld [vmem:[#allocation6 + $0x120] sm:$0xff]
        %v3112 = vld [vmem:[#allocation6 + $0x128] sm:$0xff]
        %v3113 = vld [vmem:[#allocation6 + $0x130] sm:$0xff]
        %v3114 = vld [vmem:[#allocation6 + $0x138] sm:$0xff]
        %v3115 = vld [vmem:[#allocation6 + $0x140] sm:$0xff]
        %v3116 = vld [vmem:[#allocation6 + $0x148] sm:$0xff]
        %v3117 = vld [vmem:[#allocation6 + $0x150] sm:$0xff]
        %v3118 = vld [vmem:[#allocation6 + $0x158] sm:$0xff]
        %v3119 = vld [vmem:[#allocation6 + $0x160] sm:$0xff]
        %v3120 = vld [vmem:[#allocation6 + $0x168] sm:$0xff]
        %v3121 = vld [vmem:[#allocation6 + $0x170] sm:$0xff]
        %v3122 = vld [vmem:[#allocation6 + $0x178] sm:$0xff]
        %v3123 = vld [vmem:[#allocation6 + $0x180] sm:$0xff]
        %v3124 = vld [vmem:[#allocation6 + $0x188] sm:$0xff]
        %v3125 = vld [vmem:[#allocation6 + $0x190] sm:$0xff]
        %v3126 = vld [vmem:[#allocation6 + $0x198] sm:$0xff]
        %v3127 = vld [vmem:[#allocation6 + $0x1a0] sm:$0xff]
        %v3128 = vld [vmem:[#allocation6 + $0x1a8] sm:$0xff]
        %v3129 = vld [vmem:[#allocation6 + $0x1b0] sm:$0xff]
        %v3130 = vld [vmem:[#allocation6 + $0x1b8] sm:$0xff]
        %v3131 = vld [vmem:[#allocation6 + $0x1c0] sm:$0xff]
        %v3132 = vld [vmem:[#allocation6 + $0x1c8] sm:$0xff]
        %v3133 = vld [vmem:[#allocation6 + $0x1d0] sm:$0xff]
        %v3134 = vld [vmem:[#allocation6 + $0x1d8] sm:$0xff]
        %v3135 = vld [vmem:[#allocation6 + $0x1e0] sm:$0xff]
        %v3136 = vld [vmem:[#allocation6 + $0x1e8] sm:$0xff]
        %v3137 = vld [vmem:[#allocation6 + $0x1f0] sm:$0xff]
        %v3138 = vld [vmem:[#allocation6 + $0x1f8] sm:$0xff]
        %v3139 = vld [vmem:[%s11] sm:$0xf]
        %v3141 = vlaneseq
        %v3142 = vshrl.u32 %v3141, 7
        %v3143 = vsub.s32 0, %v3142
        %v3144 = vrot.slane %v3139, %v3143
        %v3145 = vlaneseq
        %v3146 = vshrl.u32 %v3145, 7
        %v3147 = vsub.s32 1, %v3146
        %v3148 = vrot.slane %v3139, %v3147
        %v3149 = vlaneseq
        %v3150 = vshrl.u32 %v3149, 7
        %v3151 = vsub.s32 2, %v3150
        %v3152 = vrot.slane %v3139, %v3151
        %v3153 = vlaneseq
        %v3154 = vshrl.u32 %v3153, 7
        %v3155 = vsub.s32 3, %v3154
        %v3156 = vrot.slane %v3139, %v3155
        %v3225 = vunpack.c.l.b16 %v3075
        %v3226 = vunpack.c.h.b16 %v3075
        %v3227 = vunpack.c.l.b16 %v3076
        %v3228 = vunpack.c.h.b16 %v3076
        %v3229 = vunpack.c.l.b16 %v3077
        %v3230 = vunpack.c.h.b16 %v3077
        %v3231 = vunpack.c.l.b16 %v3078
        %v3232 = vunpack.c.h.b16 %v3078
        %v3233 = vunpack.c.l.b16 %v3079
        %v3234 = vunpack.c.h.b16 %v3079
        %v3235 = vunpack.c.l.b16 %v3080
        %v3236 = vunpack.c.h.b16 %v3080
        %v3237 = vunpack.c.l.b16 %v3081
        %v3238 = vunpack.c.h.b16 %v3081
        %v3239 = vunpack.c.l.b16 %v3082
        %v3240 = vunpack.c.h.b16 %v3082
        %v3241 = vunpack.c.l.b16 %v3083
        %v3242 = vunpack.c.h.b16 %v3083
        %v3243 = vunpack.c.l.b16 %v3084
        %v3244 = vunpack.c.h.b16 %v3084
        %v3245 = vunpack.c.l.b16 %v3085
        %v3246 = vunpack.c.h.b16 %v3085
        %v3247 = vunpack.c.l.b16 %v3086
        %v3248 = vunpack.c.h.b16 %v3086
        %v3249 = vunpack.c.l.b16 %v3087
        %v3250 = vunpack.c.h.b16 %v3087
        %v3251 = vunpack.c.l.b16 %v3088
        %v3252 = vunpack.c.h.b16 %v3088
        %v3253 = vunpack.c.l.b16 %v3089
        %v3254 = vunpack.c.h.b16 %v3089
        %v3255 = vunpack.c.l.b16 %v3090
        %v3256 = vunpack.c.h.b16 %v3090
        %v3257 = vunpack.c.l.b16 %v3091
        %v3258 = vunpack.c.h.b16 %v3091
        %v3259 = vunpack.c.l.b16 %v3092
        %v3260 = vunpack.c.h.b16 %v3092
        %v3261 = vunpack.c.l.b16 %v3093
        %v3262 = vunpack.c.h.b16 %v3093
        %v3263 = vunpack.c.l.b16 %v3094
        %v3264 = vunpack.c.h.b16 %v3094
        %v3265 = vunpack.c.l.b16 %v3095
        %v3266 = vunpack.c.h.b16 %v3095
        %v3267 = vunpack.c.l.b16 %v3096
        %v3268 = vunpack.c.h.b16 %v3096
        %v3269 = vunpack.c.l.b16 %v3097
        %v3270 = vunpack.c.h.b16 %v3097
        %v3271 = vunpack.c.l.b16 %v3098
        %v3272 = vunpack.c.h.b16 %v3098
        %v3273 = vunpack.c.l.b16 %v3099
        %v3274 = vunpack.c.h.b16 %v3099
        %v3275 = vunpack.c.l.b16 %v3100
        %v3276 = vunpack.c.h.b16 %v3100
        %v3277 = vunpack.c.l.b16 %v3101
        %v3278 = vunpack.c.h.b16 %v3101
        %v3279 = vunpack.c.l.b16 %v3102
        %v3280 = vunpack.c.h.b16 %v3102
        %v3281 = vunpack.c.l.b16 %v3103
        %v3282 = vunpack.c.h.b16 %v3103
        %v3283 = vunpack.c.l.b16 %v3104
        %v3284 = vunpack.c.h.b16 %v3104
        %v3285 = vunpack.c.l.b16 %v3105
        %v3286 = vunpack.c.h.b16 %v3105
        %v3287 = vunpack.c.l.b16 %v3106
        %v3288 = vunpack.c.h.b16 %v3106
        %v3289 = vunpack.c.l.b16 %v3107
        %v3290 = vunpack.c.h.b16 %v3107
        %v3291 = vunpack.c.l.b16 %v3108
        %v3292 = vunpack.c.h.b16 %v3108
        %v3293 = vunpack.c.l.b16 %v3109
        %v3294 = vunpack.c.h.b16 %v3109
        %v3295 = vunpack.c.l.b16 %v3110
        %v3296 = vunpack.c.h.b16 %v3110
        %v3297 = vunpack.c.l.b16 %v3111
        %v3298 = vunpack.c.h.b16 %v3111
        %v3299 = vunpack.c.l.b16 %v3112
        %v3300 = vunpack.c.h.b16 %v3112
        %v3301 = vunpack.c.l.b16 %v3113
        %v3302 = vunpack.c.h.b16 %v3113
        %v3303 = vunpack.c.l.b16 %v3114
        %v3304 = vunpack.c.h.b16 %v3114
        %v3305 = vunpack.c.l.b16 %v3115
        %v3306 = vunpack.c.h.b16 %v3115
        %v3307 = vunpack.c.l.b16 %v3116
        %v3308 = vunpack.c.h.b16 %v3116
        %v3309 = vunpack.c.l.b16 %v3117
        %v3310 = vunpack.c.h.b16 %v3117
        %v3311 = vunpack.c.l.b16 %v3118
        %v3312 = vunpack.c.h.b16 %v3118
        %v3313 = vunpack.c.l.b16 %v3119
        %v3314 = vunpack.c.h.b16 %v3119
        %v3315 = vunpack.c.l.b16 %v3120
        %v3316 = vunpack.c.h.b16 %v3120
        %v3317 = vunpack.c.l.b16 %v3121
        %v3318 = vunpack.c.h.b16 %v3121
        %v3319 = vunpack.c.l.b16 %v3122
        %v3320 = vunpack.c.h.b16 %v3122
        %v3321 = vunpack.c.l.b16 %v3123
        %v3322 = vunpack.c.h.b16 %v3123
        %v3323 = vunpack.c.l.b16 %v3124
        %v3324 = vunpack.c.h.b16 %v3124
        %v3325 = vunpack.c.l.b16 %v3125
        %v3326 = vunpack.c.h.b16 %v3125
        %v3327 = vunpack.c.l.b16 %v3126
        %v3328 = vunpack.c.h.b16 %v3126
        %v3329 = vunpack.c.l.b16 %v3127
        %v3330 = vunpack.c.h.b16 %v3127
        %v3331 = vunpack.c.l.b16 %v3128
        %v3332 = vunpack.c.h.b16 %v3128
        %v3333 = vunpack.c.l.b16 %v3129
        %v3334 = vunpack.c.h.b16 %v3129
        %v3335 = vunpack.c.l.b16 %v3130
        %v3336 = vunpack.c.h.b16 %v3130
        %v3337 = vunpack.c.l.b16 %v3131
        %v3338 = vunpack.c.h.b16 %v3131
        %v3339 = vunpack.c.l.b16 %v3132
        %v3340 = vunpack.c.h.b16 %v3132
        %v3341 = vunpack.c.l.b16 %v3133
        %v3342 = vunpack.c.h.b16 %v3133
        %v3343 = vunpack.c.l.b16 %v3134
        %v3344 = vunpack.c.h.b16 %v3134
        %v3345 = vunpack.c.l.b16 %v3135
        %v3346 = vunpack.c.h.b16 %v3135
        %v3347 = vunpack.c.l.b16 %v3136
        %v3348 = vunpack.c.h.b16 %v3136
        %v3349 = vunpack.c.l.b16 %v3137
        %v3350 = vunpack.c.h.b16 %v3137
        %v3351 = vunpack.c.l.b16 %v3138
        %v3352 = vunpack.c.h.b16 %v3138
        %v3353 = vpack.c.b16 %v3229, %v3225
        %v3354 = vpack.c.b16 %v3230, %v3226
        %v3355 = vpack.c.b16 %v3231, %v3227
        %v3356 = vpack.c.b16 %v3232, %v3228
        %v3357 = vpack.c.b16 %v3237, %v3233
        %v3358 = vpack.c.b16 %v3238, %v3234
        %v3359 = vpack.c.b16 %v3239, %v3235
        %v3360 = vpack.c.b16 %v3240, %v3236
        %v3361 = vpack.c.b16 %v3245, %v3241
        %v3362 = vpack.c.b16 %v3246, %v3242
        %v3363 = vpack.c.b16 %v3247, %v3243
        %v3364 = vpack.c.b16 %v3248, %v3244
        %v3365 = vpack.c.b16 %v3253, %v3249
        %v3366 = vpack.c.b16 %v3254, %v3250
        %v3367 = vpack.c.b16 %v3255, %v3251
        %v3368 = vpack.c.b16 %v3256, %v3252
        %v3369 = vpack.c.b16 %v3261, %v3257
        %v3370 = vpack.c.b16 %v3262, %v3258
        %v3371 = vpack.c.b16 %v3263, %v3259
        %v3372 = vpack.c.b16 %v3264, %v3260
        %v3373 = vpack.c.b16 %v3269, %v3265
        %v3374 = vpack.c.b16 %v3270, %v3266
        %v3375 = vpack.c.b16 %v3271, %v3267
        %v3376 = vpack.c.b16 %v3272, %v3268
        %v3377 = vpack.c.b16 %v3277, %v3273
        %v3378 = vpack.c.b16 %v3278, %v3274
        %v3379 = vpack.c.b16 %v3279, %v3275
        %v3380 = vpack.c.b16 %v3280, %v3276
        %v3381 = vpack.c.b16 %v3285, %v3281
        %v3382 = vpack.c.b16 %v3286, %v3282
        %v3383 = vpack.c.b16 %v3287, %v3283
        %v3384 = vpack.c.b16 %v3288, %v3284
        %v3385 = vpack.c.b16 %v3293, %v3289
        %v3386 = vpack.c.b16 %v3294, %v3290
        %v3387 = vpack.c.b16 %v3295, %v3291
        %v3388 = vpack.c.b16 %v3296, %v3292
        %v3389 = vpack.c.b16 %v3301, %v3297
        %v3390 = vpack.c.b16 %v3302, %v3298
        %v3391 = vpack.c.b16 %v3303, %v3299
        %v3392 = vpack.c.b16 %v3304, %v3300
        %v3393 = vpack.c.b16 %v3309, %v3305
        %v3394 = vpack.c.b16 %v3310, %v3306
        %v3395 = vpack.c.b16 %v3311, %v3307
        %v3396 = vpack.c.b16 %v3312, %v3308
        %v3397 = vpack.c.b16 %v3317, %v3313
        %v3398 = vpack.c.b16 %v3318, %v3314
        %v3399 = vpack.c.b16 %v3319, %v3315
        %v3400 = vpack.c.b16 %v3320, %v3316
        %v3401 = vpack.c.b16 %v3325, %v3321
        %v3402 = vpack.c.b16 %v3326, %v3322
        %v3403 = vpack.c.b16 %v3327, %v3323
        %v3404 = vpack.c.b16 %v3328, %v3324
        %v3405 = vpack.c.b16 %v3333, %v3329
        %v3406 = vpack.c.b16 %v3334, %v3330
        %v3407 = vpack.c.b16 %v3335, %v3331
        %v3408 = vpack.c.b16 %v3336, %v3332
        %v3409 = vpack.c.b16 %v3341, %v3337
        %v3410 = vpack.c.b16 %v3342, %v3338
        %v3411 = vpack.c.b16 %v3343, %v3339
        %v3412 = vpack.c.b16 %v3344, %v3340
        %v3413 = vpack.c.b16 %v3349, %v3345
        %v3414 = vpack.c.b16 %v3350, %v3346
        %v3415 = vpack.c.b16 %v3351, %v3347
        %v3416 = vpack.c.b16 %v3352, %v3348
        %3481 = vmatprep.subr.bf16.mxu0 %v3354
        %3482 = vmatpush1.bf16.msra.mxu0 %v3353
        %3483 = vmatprep.subr.bf16.mxu0 %v3358
        %3484 = vmatpush1.bf16.msra.mxu0 %v3357
        %3485 = vmatprep.subr.bf16.mxu0 %v3362
        %3486 = vmatpush1.bf16.msra.mxu0 %v3361
        %3487 = vmatprep.subr.bf16.mxu0 %v3366
        %3488 = vmatpush1.bf16.msra.mxu0 %v3365
        %3489 = vmatprep.subr.bf16.mxu0 %v3370
        %3490 = vmatpush1.bf16.msra.mxu0 %v3369
        %3491 = vmatprep.subr.bf16.mxu0 %v3374
        %3492 = vmatpush1.bf16.msra.mxu0 %v3373
        %3493 = vmatprep.subr.bf16.mxu0 %v3378
        %3494 = vmatpush1.bf16.msra.mxu0 %v3377
        %3495 = vmatprep.subr.bf16.mxu0 %v3382
        %3496 = vmatpush1.bf16.msra.mxu0 %v3381
        %3497 = vmatprep.subr.bf16.mxu0 %v3386
        %3498 = vmatpush1.bf16.msra.mxu0 %v3385
        %3499 = vmatprep.subr.bf16.mxu0 %v3390
        %3500 = vmatpush1.bf16.msra.mxu0 %v3389
        %3501 = vmatprep.subr.bf16.mxu0 %v3394
        %3502 = vmatpush1.bf16.msra.mxu0 %v3393
        %3503 = vmatprep.subr.bf16.mxu0 %v3398
        %3504 = vmatpush1.bf16.msra.mxu0 %v3397
        %3505 = vmatprep.subr.bf16.mxu0 %v3402
        %3506 = vmatpush1.bf16.msra.mxu0 %v3401
        %3507 = vmatprep.subr.bf16.mxu0 %v3406
        %3508 = vmatpush1.bf16.msra.mxu0 %v3405
        %3509 = vmatprep.subr.bf16.mxu0 %v3410
        %3510 = vmatpush1.bf16.msra.mxu0 %v3409
        %3511 = vmatprep.subr.bf16.mxu0 %v3414
        %3512 = vmatpush1.bf16.msra.mxu0 %v3413
        %3513 = vmatprep.mubr.bf16.mxu0 %v3074
        %3514 = vmatmul.mubr.bf16.gmra.mrb[0].mxu0 %v3073
        %v3515 = vpop.f32.mrb[0].mxu0
        %v3516 = vadd.f32 %v3144, %v3515
        %v3517 = vpop.f32.mrb[0].mxu0
        %v3518 = vadd.f32 %v3148, %v3517
        %v3519 = vpop.f32.mrb[0].mxu0
        %v3520 = vadd.f32 %v3144, %v3519
        %v3521 = vpop.f32.mrb[0].mxu0
        %v3522 = vadd.f32 %v3148, %v3521
        %3523 = vdwg.mxu0
        %3524 = vmatprep.subr.bf16.mxu0 %v3356
        %3525 = vmatpush1.bf16.msra.mxu0 %v3355
        %3526 = vmatprep.subr.bf16.mxu0 %v3360
        %3527 = vmatpush1.bf16.msra.mxu0 %v3359
        %3528 = vmatprep.subr.bf16.mxu0 %v3364
        %3529 = vmatpush1.bf16.msra.mxu0 %v3363
        %3530 = vmatprep.subr.bf16.mxu0 %v3368
        %3531 = vmatpush1.bf16.msra.mxu0 %v3367
        %3532 = vmatprep.subr.bf16.mxu0 %v3372
        %3533 = vmatpush1.bf16.msra.mxu0 %v3371
        %3534 = vmatprep.subr.bf16.mxu0 %v3376
        %3535 = vmatpush1.bf16.msra.mxu0 %v3375
        %3536 = vmatprep.subr.bf16.mxu0 %v3380
        %3537 = vmatpush1.bf16.msra.mxu0 %v3379
        %3538 = vmatprep.subr.bf16.mxu0 %v3384
        %3539 = vmatpush1.bf16.msra.mxu0 %v3383
        %3540 = vmatprep.subr.bf16.mxu0 %v3388
        %3541 = vmatpush1.bf16.msra.mxu0 %v3387
        %3542 = vmatprep.subr.bf16.mxu0 %v3392
        %3543 = vmatpush1.bf16.msra.mxu0 %v3391
        %3544 = vmatprep.subr.bf16.mxu0 %v3396
        %3545 = vmatpush1.bf16.msra.mxu0 %v3395
        %3546 = vmatprep.subr.bf16.mxu0 %v3400
        %3547 = vmatpush1.bf16.msra.mxu0 %v3399
        %3548 = vmatprep.subr.bf16.mxu0 %v3404
        %3549 = vmatpush1.bf16.msra.mxu0 %v3403
        %3550 = vmatprep.subr.bf16.mxu0 %v3408
        %3551 = vmatpush1.bf16.msra.mxu0 %v3407
        %3552 = vmatprep.subr.bf16.mxu0 %v3412
        %3553 = vmatpush1.bf16.msra.mxu0 %v3411
        %3554 = vmatprep.subr.bf16.mxu0 %v3416
        %3555 = vmatpush1.bf16.msra.mxu0 %v3415
        %3556 = vmatprep.mubr.bf16.mxu0 %v3074
        %3557 = vmatmul.mubr.bf16.gmra.mrb[0].mxu0 %v3073
        %v3558 = vpop.f32.mrb[0].mxu0
        %v3559 = vadd.f32 %v3152, %v3558
        %v3560 = vpop.f32.mrb[0].mxu0
        %v3561 = vadd.f32 %v3156, %v3560
        %v3562 = vpop.f32.mrb[0].mxu0
        %v3563 = vadd.f32 %v3152, %v3562
        %v3564 = vpop.f32.mrb[0].mxu0
        %v3565 = vadd.f32 %v3156, %v3564
        %3566 = vdwg.mxu0
        %v3567 = vmax.f32 %v3516, 0.0
        %v3568 = vmax.f32 %v3518, 0.0
        %v3569 = vmax.f32 %v3559, 0.0
        %v3570 = vmax.f32 %v3561, 0.0
        %v3571 = vmax.f32 %v3520, 0.0
        %v3572 = vmax.f32 %v3522, 0.0
        %v3573 = vmax.f32 %v3563, 0.0
        %v3574 = vmax.f32 %v3565, 0.0
        %v3575 = vpack.c.bf16 %v3571, %v3567
        %v3576 = vpack.c.bf16 %v3572, %v3568
        %v3577 = vpack.c.bf16 %v3573, %v3569
        %v3578 = vpack.c.bf16 %v3574, %v3570
        %v3579 = vld [vmem:[#allocation7] sm:$0xff]
        %v3580 = vld [vmem:[#allocation7 + $0x8] sm:$0xff]
        %v3581 = vld [vmem:[#allocation7 + $0x10] sm:$0xff]
        %v3582 = vld [vmem:[#allocation7 + $0x18] sm:$0xf]
        %v3583 = vld [vmem:[#allocation7 + $0x1c] sm:$0xff]
        %v3584 = vld [vmem:[#allocation7 + $0x24] sm:$0xff]
        %v3585 = vld [vmem:[#allocation7 + $0x2c] sm:$0xff]
        %v3586 = vld [vmem:[#allocation7 + $0x34] sm:$0xf]
        %v3587 = vld [vmem:[#allocation7 + $0x38] sm:$0xff]
        %v3588 = vld [vmem:[#allocation7 + $0x40] sm:$0xff]
        %v3589 = vld [vmem:[#allocation7 + $0x48] sm:$0xff]
        %v3590 = vld [vmem:[#allocation7 + $0x50] sm:$0xf]
        %v3591 = vld [vmem:[#allocation7 + $0x54] sm:$0xff]
        %v3592 = vld [vmem:[#allocation7 + $0x5c] sm:$0xff]
        %v3593 = vld [vmem:[#allocation7 + $0x64] sm:$0xff]
        %v3594 = vld [vmem:[#allocation7 + $0x6c] sm:$0xf]
        %v3595 = vld [vmem:[#allocation7 + $0x70] sm:$0xff]
        %v3596 = vld [vmem:[#allocation7 + $0x78] sm:$0xff]
        %v3597 = vld [vmem:[#allocation7 + $0x80] sm:$0xff]
        %v3598 = vld [vmem:[#allocation7 + $0x88] sm:$0xf]
        %v3599 = vld [vmem:[#allocation7 + $0x8c] sm:$0xff]
        %v3600 = vld [vmem:[#allocation7 + $0x94] sm:$0xff]
        %v3601 = vld [vmem:[#allocation7 + $0x9c] sm:$0xff]
        %v3602 = vld [vmem:[#allocation7 + $0xa4] sm:$0xf]
        %v3603 = vld [vmem:[#allocation7 + $0xa8] sm:$0xff]
        %v3604 = vld [vmem:[#allocation7 + $0xb0] sm:$0xff]
        %v3605 = vld [vmem:[#allocation7 + $0xb8] sm:$0xff]
        %v3606 = vld [vmem:[#allocation7 + $0xc0] sm:$0xf]
        %v3607 = vld [vmem:[#allocation7 + $0xc4] sm:$0xff]
        %v3608 = vld [vmem:[#allocation7 + $0xcc] sm:$0xff]
        %v3609 = vld [vmem:[#allocation7 + $0xd4] sm:$0xff]
        %v3610 = vld [vmem:[#allocation7 + $0xdc] sm:$0xf]
        %v3611 = vld [vmem:[#allocation7 + $0xe0] sm:$0xff]
        %v3612 = vld [vmem:[#allocation7 + $0xe8] sm:$0xff]
        %v3613 = vld [vmem:[#allocation7 + $0xf0] sm:$0xff]
        %v3614 = vld [vmem:[#allocation7 + $0xf8] sm:$0xf]
        %v3615 = vld [vmem:[#allocation7 + $0xfc] sm:$0xff]
        %v3616 = vld [vmem:[#allocation7 + $0x104] sm:$0xff]
        %v3617 = vld [vmem:[#allocation7 + $0x10c] sm:$0xff]
        %v3618 = vld [vmem:[#allocation7 + $0x114] sm:$0xf]
        %v3619 = vld [vmem:[#allocation7 + $0x118] sm:$0xff]
        %v3620 = vld [vmem:[#allocation7 + $0x120] sm:$0xff]
        %v3621 = vld [vmem:[#allocation7 + $0x128] sm:$0xff]
        %v3622 = vld [vmem:[#allocation7 + $0x130] sm:$0xf]
        %v3623 = vld [vmem:[#allocation7 + $0x134] sm:$0xff]
        %v3624 = vld [vmem:[#allocation7 + $0x13c] sm:$0xff]
        %v3625 = vld [vmem:[#allocation7 + $0x144] sm:$0xff]
        %v3626 = vld [vmem:[#allocation7 + $0x14c] sm:$0xf]
        %v3627 = vld [vmem:[#allocation7 + $0x150] sm:$0xff]
        %v3628 = vld [vmem:[#allocation7 + $0x158] sm:$0xff]
        %v3629 = vld [vmem:[#allocation7 + $0x160] sm:$0xff]
        %v3630 = vld [vmem:[#allocation7 + $0x168] sm:$0xf]
        %v3631 = vld [vmem:[#allocation7 + $0x16c] sm:$0xff]
        %v3632 = vld [vmem:[#allocation7 + $0x174] sm:$0xff]
        %v3633 = vld [vmem:[#allocation7 + $0x17c] sm:$0xff]
        %v3634 = vld [vmem:[#allocation7 + $0x184] sm:$0xf]
        %v3635 = vld [vmem:[#allocation7 + $0x188] sm:$0xff]
        %v3636 = vld [vmem:[#allocation7 + $0x190] sm:$0xff]
        %v3637 = vld [vmem:[#allocation7 + $0x198] sm:$0xff]
        %v3638 = vld [vmem:[#allocation7 + $0x1a0] sm:$0xf]
        %v3639 = vld [vmem:[#allocation7 + $0x1a4] sm:$0xff]
        %v3640 = vld [vmem:[#allocation7 + $0x1ac] sm:$0xff]
        %v3641 = vld [vmem:[#allocation7 + $0x1b4] sm:$0xff]
        %v3642 = vld [vmem:[#allocation7 + $0x1bc] sm:$0xf]
        %v3643 = vld [vmem:[#allocation7 + $0x1c0] sm:$0xff]
        %v3644 = vld [vmem:[#allocation7 + $0x1c8] sm:$0xff]
        %v3645 = vld [vmem:[#allocation7 + $0x1d0] sm:$0xff]
        %v3646 = vld [vmem:[#allocation7 + $0x1d8] sm:$0xf]
        %v3647 = vld [vmem:[#allocation7 + $0x1dc] sm:$0xff]
        %v3648 = vld [vmem:[#allocation7 + $0x1e4] sm:$0xff]
        %v3649 = vld [vmem:[#allocation7 + $0x1ec] sm:$0xff]
        %v3650 = vld [vmem:[#allocation7 + $0x1f4] sm:$0xf]
        %v3651 = vld [vmem:[#allocation7 + $0x1f8] sm:$0xff]
        %v3652 = vld [vmem:[#allocation7 + $0x200] sm:$0xff]
        %v3653 = vld [vmem:[#allocation7 + $0x208] sm:$0xff]
        %v3654 = vld [vmem:[#allocation7 + $0x210] sm:$0xf]
        %v3655 = vld [vmem:[#allocation7 + $0x214] sm:$0xff]
        %v3656 = vld [vmem:[#allocation7 + $0x21c] sm:$0xff]
        %v3657 = vld [vmem:[#allocation7 + $0x224] sm:$0xff]
        %v3658 = vld [vmem:[#allocation7 + $0x22c] sm:$0xf]
        %v3659 = vld [vmem:[#allocation7 + $0x230] sm:$0xff]
        %v3660 = vld [vmem:[#allocation7 + $0x238] sm:$0xff]
        %v3661 = vld [vmem:[#allocation7 + $0x240] sm:$0xff]
        %v3662 = vld [vmem:[#allocation7 + $0x248] sm:$0xf]
        %v3663 = vld [vmem:[#allocation7 + $0x24c] sm:$0xff]
        %v3664 = vld [vmem:[#allocation7 + $0x254] sm:$0xff]
        %v3665 = vld [vmem:[#allocation7 + $0x25c] sm:$0xff]
        %v3666 = vld [vmem:[#allocation7 + $0x264] sm:$0xf]
        %v3667 = vld [vmem:[#allocation7 + $0x268] sm:$0xff]
        %v3668 = vld [vmem:[#allocation7 + $0x270] sm:$0xff]
        %v3669 = vld [vmem:[#allocation7 + $0x278] sm:$0xff]
        %v3670 = vld [vmem:[#allocation7 + $0x280] sm:$0xf]
        %v3671 = vld [vmem:[#allocation7 + $0x284] sm:$0xff]
        %v3672 = vld [vmem:[#allocation7 + $0x28c] sm:$0xff]
        %v3673 = vld [vmem:[#allocation7 + $0x294] sm:$0xff]
        %v3674 = vld [vmem:[#allocation7 + $0x29c] sm:$0xf]
        %v3675 = vld [vmem:[#allocation7 + $0x2a0] sm:$0xff]
        %v3676 = vld [vmem:[#allocation7 + $0x2a8] sm:$0xff]
        %v3677 = vld [vmem:[#allocation7 + $0x2b0] sm:$0xff]
        %v3678 = vld [vmem:[#allocation7 + $0x2b8] sm:$0xf]
        %v3679 = vld [vmem:[#allocation7 + $0x2bc] sm:$0xff]
        %v3680 = vld [vmem:[#allocation7 + $0x2c4] sm:$0xff]
        %v3681 = vld [vmem:[#allocation7 + $0x2cc] sm:$0xff]
        %v3682 = vld [vmem:[#allocation7 + $0x2d4] sm:$0xf]
        %v3683 = vld [vmem:[#allocation7 + $0x2d8] sm:$0xff]
        %v3684 = vld [vmem:[#allocation7 + $0x2e0] sm:$0xff]
        %v3685 = vld [vmem:[#allocation7 + $0x2e8] sm:$0xff]
        %v3686 = vld [vmem:[#allocation7 + $0x2f0] sm:$0xf]
        %v3687 = vld [vmem:[#allocation7 + $0x2f4] sm:$0xff]
        %v3688 = vld [vmem:[#allocation7 + $0x2fc] sm:$0xff]
        %v3689 = vld [vmem:[#allocation7 + $0x304] sm:$0xff]
        %v3690 = vld [vmem:[#allocation7 + $0x30c] sm:$0xf]
        %v3691 = vld [vmem:[#allocation7 + $0x310] sm:$0xff]
        %v3692 = vld [vmem:[#allocation7 + $0x318] sm:$0xff]
        %v3693 = vld [vmem:[#allocation7 + $0x320] sm:$0xff]
        %v3694 = vld [vmem:[#allocation7 + $0x328] sm:$0xf]
        %v3695 = vld [vmem:[#allocation7 + $0x32c] sm:$0xff]
        %v3696 = vld [vmem:[#allocation7 + $0x334] sm:$0xff]
        %v3697 = vld [vmem:[#allocation7 + $0x33c] sm:$0xff]
        %v3698 = vld [vmem:[#allocation7 + $0x344] sm:$0xf]
        %v3699 = vld [vmem:[#allocation7 + $0x348] sm:$0xff]
        %v3700 = vld [vmem:[#allocation7 + $0x350] sm:$0xff]
        %v3701 = vld [vmem:[#allocation7 + $0x358] sm:$0xff]
        %v3702 = vld [vmem:[#allocation7 + $0x360] sm:$0xf]
        %v3703 = vld [vmem:[#allocation7 + $0x364] sm:$0xff]
        %v3704 = vld [vmem:[#allocation7 + $0x36c] sm:$0xff]
        %v3705 = vld [vmem:[#allocation7 + $0x374] sm:$0xff]
        %v3706 = vld [vmem:[#allocation7 + $0x37c] sm:$0xf]
        %v3707 = vld [vmem:[#allocation7 + $0x380] sm:$0xff]
        %v3708 = vld [vmem:[#allocation7 + $0x388] sm:$0xff]
        %v3709 = vld [vmem:[#allocation7 + $0x390] sm:$0xff]
        %v3710 = vld [vmem:[#allocation7 + $0x398] sm:$0xf]
        %v3711 = vld [vmem:[#allocation7 + $0x39c] sm:$0xff]
        %v3712 = vld [vmem:[#allocation7 + $0x3a4] sm:$0xff]
        %v3713 = vld [vmem:[#allocation7 + $0x3ac] sm:$0xff]
        %v3714 = vld [vmem:[#allocation7 + $0x3b4] sm:$0xf]
        %v3715 = vld [vmem:[#allocation7 + $0x3b8] sm:$0xff]
        %v3716 = vld [vmem:[#allocation7 + $0x3c0] sm:$0xff]
        %v3717 = vld [vmem:[#allocation7 + $0x3c8] sm:$0xff]
        %v3718 = vld [vmem:[#allocation7 + $0x3d0] sm:$0xf]
        %v3719 = vld [vmem:[#allocation7 + $0x3d4] sm:$0xff]
        %v3720 = vld [vmem:[#allocation7 + $0x3dc] sm:$0xff]
        %v3721 = vld [vmem:[#allocation7 + $0x3e4] sm:$0xff]
        %v3722 = vld [vmem:[#allocation7 + $0x3ec] sm:$0xf]
        %v3723 = vld [vmem:[#allocation7 + $0x3f0] sm:$0xff]
        %v3724 = vld [vmem:[#allocation7 + $0x3f8] sm:$0xff]
        %v3725 = vld [vmem:[#allocation7 + $0x400] sm:$0xff]
        %v3726 = vld [vmem:[#allocation7 + $0x408] sm:$0xf]
        %v3727 = vld [vmem:[#allocation7 + $0x40c] sm:$0xff]
        %v3728 = vld [vmem:[#allocation7 + $0x414] sm:$0xff]
        %v3729 = vld [vmem:[#allocation7 + $0x41c] sm:$0xff]
        %v3730 = vld [vmem:[#allocation7 + $0x424] sm:$0xf]
        %v3731 = vld [vmem:[#allocation7 + $0x428] sm:$0xff]
        %v3732 = vld [vmem:[#allocation7 + $0x430] sm:$0xff]
        %v3733 = vld [vmem:[#allocation7 + $0x438] sm:$0xff]
        %v3734 = vld [vmem:[#allocation7 + $0x440] sm:$0xf]
        %v3735 = vld [vmem:[#allocation7 + $0x444] sm:$0xff]
        %v3736 = vld [vmem:[#allocation7 + $0x44c] sm:$0xff]
        %v3737 = vld [vmem:[#allocation7 + $0x454] sm:$0xff]
        %v3738 = vld [vmem:[#allocation7 + $0x45c] sm:$0xf]
        %v3739 = vld [vmem:[#allocation7 + $0x460] sm:$0xff]
        %v3740 = vld [vmem:[#allocation7 + $0x468] sm:$0xff]
        %v3741 = vld [vmem:[#allocation7 + $0x470] sm:$0xff]
        %v3742 = vld [vmem:[#allocation7 + $0x478] sm:$0xf]
        %v3743 = vld [vmem:[#allocation7 + $0x47c] sm:$0xff]
        %v3744 = vld [vmem:[#allocation7 + $0x484] sm:$0xff]
        %v3745 = vld [vmem:[#allocation7 + $0x48c] sm:$0xff]
        %v3746 = vld [vmem:[#allocation7 + $0x494] sm:$0xf]
        %v3747 = vld [vmem:[#allocation7 + $0x498] sm:$0xff]
        %v3748 = vld [vmem:[#allocation7 + $0x4a0] sm:$0xff]
        %v3749 = vld [vmem:[#allocation7 + $0x4a8] sm:$0xff]
        %v3750 = vld [vmem:[#allocation7 + $0x4b0] sm:$0xf]
        %v3751 = vld [vmem:[#allocation7 + $0x4b4] sm:$0xff]
        %v3752 = vld [vmem:[#allocation7 + $0x4bc] sm:$0xff]
        %v3753 = vld [vmem:[#allocation7 + $0x4c4] sm:$0xff]
        %v3754 = vld [vmem:[#allocation7 + $0x4cc] sm:$0xf]
        %v3755 = vld [vmem:[#allocation7 + $0x4d0] sm:$0xff]
        %v3756 = vld [vmem:[#allocation7 + $0x4d8] sm:$0xff]
        %v3757 = vld [vmem:[#allocation7 + $0x4e0] sm:$0xff]
        %v3758 = vld [vmem:[#allocation7 + $0x4e8] sm:$0xf]
        %v3759 = vld [vmem:[#allocation7 + $0x4ec] sm:$0xff]
        %v3760 = vld [vmem:[#allocation7 + $0x4f4] sm:$0xff]
        %v3761 = vld [vmem:[#allocation7 + $0x4fc] sm:$0xff]
        %v3762 = vld [vmem:[#allocation7 + $0x504] sm:$0xf]
        %v3763 = vld [vmem:[#allocation7 + $0x508] sm:$0xff]
        %v3764 = vld [vmem:[#allocation7 + $0x510] sm:$0xff]
        %v3765 = vld [vmem:[#allocation7 + $0x518] sm:$0xff]
        %v3766 = vld [vmem:[#allocation7 + $0x520] sm:$0xf]
        %v3767 = vld [vmem:[#allocation7 + $0x524] sm:$0xff]
        %v3768 = vld [vmem:[#allocation7 + $0x52c] sm:$0xff]
        %v3769 = vld [vmem:[#allocation7 + $0x534] sm:$0xff]
        %v3770 = vld [vmem:[#allocation7 + $0x53c] sm:$0xf]
        %v3771 = vld [vmem:[#allocation7 + $0x540] sm:$0xff]
        %v3772 = vld [vmem:[#allocation7 + $0x548] sm:$0xff]
        %v3773 = vld [vmem:[#allocation7 + $0x550] sm:$0xff]
        %v3774 = vld [vmem:[#allocation7 + $0x558] sm:$0xf]
        %v3775 = vld [vmem:[#allocation7 + $0x55c] sm:$0xff]
        %v3776 = vld [vmem:[#allocation7 + $0x564] sm:$0xff]
        %v3777 = vld [vmem:[#allocation7 + $0x56c] sm:$0xff]
        %v3778 = vld [vmem:[#allocation7 + $0x574] sm:$0xf]
        %v3779 = vld [vmem:[#allocation7 + $0x578] sm:$0xff]
        %v3780 = vld [vmem:[#allocation7 + $0x580] sm:$0xff]
        %v3781 = vld [vmem:[#allocation7 + $0x588] sm:$0xff]
        %v3782 = vld [vmem:[#allocation7 + $0x590] sm:$0xf]
        %v3783 = vld [vmem:[#allocation7 + $0x594] sm:$0xff]
        %v3784 = vld [vmem:[#allocation7 + $0x59c] sm:$0xff]
        %v3785 = vld [vmem:[#allocation7 + $0x5a4] sm:$0xff]
        %v3786 = vld [vmem:[#allocation7 + $0x5ac] sm:$0xf]
        %v3787 = vld [vmem:[#allocation7 + $0x5b0] sm:$0xff]
        %v3788 = vld [vmem:[#allocation7 + $0x5b8] sm:$0xff]
        %v3789 = vld [vmem:[#allocation7 + $0x5c0] sm:$0xff]
        %v3790 = vld [vmem:[#allocation7 + $0x5c8] sm:$0xf]
        %v3791 = vld [vmem:[#allocation7 + $0x5cc] sm:$0xff]
        %v3792 = vld [vmem:[#allocation7 + $0x5d4] sm:$0xff]
        %v3793 = vld [vmem:[#allocation7 + $0x5dc] sm:$0xff]
        %v3794 = vld [vmem:[#allocation7 + $0x5e4] sm:$0xf]
        %v3795 = vld [vmem:[#allocation7 + $0x5e8] sm:$0xff]
        %v3796 = vld [vmem:[#allocation7 + $0x5f0] sm:$0xff]
        %v3797 = vld [vmem:[#allocation7 + $0x5f8] sm:$0xff]
        %v3798 = vld [vmem:[#allocation7 + $0x600] sm:$0xf]
        %v3799 = vld [vmem:[#allocation7 + $0x604] sm:$0xff]
        %v3800 = vld [vmem:[#allocation7 + $0x60c] sm:$0xff]
        %v3801 = vld [vmem:[#allocation7 + $0x614] sm:$0xff]
        %v3802 = vld [vmem:[#allocation7 + $0x61c] sm:$0xf]
        %v3803 = vld [vmem:[#allocation7 + $0x620] sm:$0xff]
        %v3804 = vld [vmem:[#allocation7 + $0x628] sm:$0xff]
        %v3805 = vld [vmem:[#allocation7 + $0x630] sm:$0xff]
        %v3806 = vld [vmem:[#allocation7 + $0x638] sm:$0xf]
        %v3807 = vld [vmem:[#allocation7 + $0x63c] sm:$0xff]
        %v3808 = vld [vmem:[#allocation7 + $0x644] sm:$0xff]
        %v3809 = vld [vmem:[#allocation7 + $0x64c] sm:$0xff]
        %v3810 = vld [vmem:[#allocation7 + $0x654] sm:$0xf]
        %v3811 = vld [vmem:[#allocation7 + $0x658] sm:$0xff]
        %v3812 = vld [vmem:[#allocation7 + $0x660] sm:$0xff]
        %v3813 = vld [vmem:[#allocation7 + $0x668] sm:$0xff]
        %v3814 = vld [vmem:[#allocation7 + $0x670] sm:$0xf]
        %v3815 = vld [vmem:[#allocation7 + $0x674] sm:$0xff]
        %v3816 = vld [vmem:[#allocation7 + $0x67c] sm:$0xff]
        %v3817 = vld [vmem:[#allocation7 + $0x684] sm:$0xff]
        %v3818 = vld [vmem:[#allocation7 + $0x68c] sm:$0xf]
        %v3819 = vld [vmem:[#allocation7 + $0x690] sm:$0xff]
        %v3820 = vld [vmem:[#allocation7 + $0x698] sm:$0xff]
        %v3821 = vld [vmem:[#allocation7 + $0x6a0] sm:$0xff]
        %v3822 = vld [vmem:[#allocation7 + $0x6a8] sm:$0xf]
        %v3823 = vld [vmem:[#allocation7 + $0x6ac] sm:$0xff]
        %v3824 = vld [vmem:[#allocation7 + $0x6b4] sm:$0xff]
        %v3825 = vld [vmem:[#allocation7 + $0x6bc] sm:$0xff]
        %v3826 = vld [vmem:[#allocation7 + $0x6c4] sm:$0xf]
        %v3827 = vld [vmem:[#allocation7 + $0x6c8] sm:$0xff]
        %v3828 = vld [vmem:[#allocation7 + $0x6d0] sm:$0xff]
        %v3829 = vld [vmem:[#allocation7 + $0x6d8] sm:$0xff]
        %v3830 = vld [vmem:[#allocation7 + $0x6e0] sm:$0xf]
        %v3831 = vld [vmem:[#allocation7 + $0x6e4] sm:$0xff]
        %v3832 = vld [vmem:[#allocation7 + $0x6ec] sm:$0xff]
        %v3833 = vld [vmem:[#allocation7 + $0x6f4] sm:$0xff]
        %v3834 = vld [vmem:[#allocation7 + $0x6fc] sm:$0xf]
        %v3835 = vld [vmem:[%s13] sm:$0xff]
        %v3837 = vlaneseq
        %v3838 = vshrl.u32 %v3837, 7
        %v3839 = vsub.s32 0, %v3838
        %v3840 = vrot.slane %v3835, %v3839
        %v3841 = vlaneseq
        %v3842 = vshrl.u32 %v3841, 7
        %v3843 = vsub.s32 1, %v3842
        %v3844 = vrot.slane %v3835, %v3843
        %v3845 = vlaneseq
        %v3846 = vshrl.u32 %v3845, 7
        %v3847 = vsub.s32 2, %v3846
        %v3848 = vrot.slane %v3835, %v3847
        %v3849 = vlaneseq
        %v3850 = vshrl.u32 %v3849, 7
        %v3851 = vsub.s32 3, %v3850
        %v3852 = vrot.slane %v3835, %v3851
        %v3853 = vlaneseq
        %v3854 = vshrl.u32 %v3853, 7
        %v3855 = vsub.s32 4, %v3854
        %v3856 = vrot.slane %v3835, %v3855
        %v3857 = vlaneseq
        %v3858 = vshrl.u32 %v3857, 7
        %v3859 = vsub.s32 5, %v3858
        %v3860 = vrot.slane %v3835, %v3859
        %v3861 = vlaneseq
        %v3862 = vshrl.u32 %v3861, 7
        %v3863 = vsub.s32 6, %v3862
        %v3864 = vrot.slane %v3835, %v3863
        %v4128 = vunpack.c.l.b16 %v3579
        %v4129 = vunpack.c.h.b16 %v3579
        %v4130 = vunpack.c.l.b16 %v3580
        %v4131 = vunpack.c.h.b16 %v3580
        %v4132 = vunpack.c.l.b16 %v3581
        %v4133 = vunpack.c.h.b16 %v3581
        %v4134 = vunpack.c.l.b16 %v3582
        %v4135 = vunpack.c.l.b16 %v3583
        %v4136 = vunpack.c.h.b16 %v3583
        %v4137 = vunpack.c.l.b16 %v3584
        %v4138 = vunpack.c.h.b16 %v3584
        %v4139 = vunpack.c.l.b16 %v3585
        %v4140 = vunpack.c.h.b16 %v3585
        %v4141 = vunpack.c.l.b16 %v3586
        %v4142 = vunpack.c.l.b16 %v3587
        %v4143 = vunpack.c.h.b16 %v3587
        %v4144 = vunpack.c.l.b16 %v3588
        %v4145 = vunpack.c.h.b16 %v3588
        %v4146 = vunpack.c.l.b16 %v3589
        %v4147 = vunpack.c.h.b16 %v3589
        %v4148 = vunpack.c.l.b16 %v3590
        %v4149 = vunpack.c.l.b16 %v3591
        %v4150 = vunpack.c.h.b16 %v3591
        %v4151 = vunpack.c.l.b16 %v3592
        %v4152 = vunpack.c.h.b16 %v3592
        %v4153 = vunpack.c.l.b16 %v3593
        %v4154 = vunpack.c.h.b16 %v3593
        %v4155 = vunpack.c.l.b16 %v3594
        %v4156 = vunpack.c.l.b16 %v3595
        %v4157 = vunpack.c.h.b16 %v3595
        %v4158 = vunpack.c.l.b16 %v3596
        %v4159 = vunpack.c.h.b16 %v3596
        %v4160 = vunpack.c.l.b16 %v3597
        %v4161 = vunpack.c.h.b16 %v3597
        %v4162 = vunpack.c.l.b16 %v3598
        %v4163 = vunpack.c.l.b16 %v3599
        %v4164 = vunpack.c.h.b16 %v3599
        %v4165 = vunpack.c.l.b16 %v3600
        %v4166 = vunpack.c.h.b16 %v3600
        %v4167 = vunpack.c.l.b16 %v3601
        %v4168 = vunpack.c.h.b16 %v3601
        %v4169 = vunpack.c.l.b16 %v3602
        %v4170 = vunpack.c.l.b16 %v3603
        %v4171 = vunpack.c.h.b16 %v3603
        %v4172 = vunpack.c.l.b16 %v3604
        %v4173 = vunpack.c.h.b16 %v3604
        %v4174 = vunpack.c.l.b16 %v3605
        %v4175 = vunpack.c.h.b16 %v3605
        %v4176 = vunpack.c.l.b16 %v3606
        %v4177 = vunpack.c.l.b16 %v3607
        %v4178 = vunpack.c.h.b16 %v3607
        %v4179 = vunpack.c.l.b16 %v3608
        %v4180 = vunpack.c.h.b16 %v3608
        %v4181 = vunpack.c.l.b16 %v3609
        %v4182 = vunpack.c.h.b16 %v3609
        %v4183 = vunpack.c.l.b16 %v3610
        %v4184 = vunpack.c.l.b16 %v3611
        %v4185 = vunpack.c.h.b16 %v3611
        %v4186 = vunpack.c.l.b16 %v3612
        %v4187 = vunpack.c.h.b16 %v3612
        %v4188 = vunpack.c.l.b16 %v3613
        %v4189 = vunpack.c.h.b16 %v3613
        %v4190 = vunpack.c.l.b16 %v3614
        %v4191 = vunpack.c.l.b16 %v3615
        %v4192 = vunpack.c.h.b16 %v3615
        %v4193 = vunpack.c.l.b16 %v3616
        %v4194 = vunpack.c.h.b16 %v3616
        %v4195 = vunpack.c.l.b16 %v3617
        %v4196 = vunpack.c.h.b16 %v3617
        %v4197 = vunpack.c.l.b16 %v3618
        %v4198 = vunpack.c.l.b16 %v3619
        %v4199 = vunpack.c.h.b16 %v3619
        %v4200 = vunpack.c.l.b16 %v3620
        %v4201 = vunpack.c.h.b16 %v3620
        %v4202 = vunpack.c.l.b16 %v3621
        %v4203 = vunpack.c.h.b16 %v3621
        %v4204 = vunpack.c.l.b16 %v3622
        %v4205 = vunpack.c.l.b16 %v3623
        %v4206 = vunpack.c.h.b16 %v3623
        %v4207 = vunpack.c.l.b16 %v3624
        %v4208 = vunpack.c.h.b16 %v3624
        %v4209 = vunpack.c.l.b16 %v3625
        %v4210 = vunpack.c.h.b16 %v3625
        %v4211 = vunpack.c.l.b16 %v3626
        %v4212 = vunpack.c.l.b16 %v3627
        %v4213 = vunpack.c.h.b16 %v3627
        %v4214 = vunpack.c.l.b16 %v3628
        %v4215 = vunpack.c.h.b16 %v3628
        %v4216 = vunpack.c.l.b16 %v3629
        %v4217 = vunpack.c.h.b16 %v3629
        %v4218 = vunpack.c.l.b16 %v3630
        %v4219 = vunpack.c.l.b16 %v3631
        %v4220 = vunpack.c.h.b16 %v3631
        %v4221 = vunpack.c.l.b16 %v3632
        %v4222 = vunpack.c.h.b16 %v3632
        %v4223 = vunpack.c.l.b16 %v3633
        %v4224 = vunpack.c.h.b16 %v3633
        %v4225 = vunpack.c.l.b16 %v3634
        %v4226 = vunpack.c.l.b16 %v3635
        %v4227 = vunpack.c.h.b16 %v3635
        %v4228 = vunpack.c.l.b16 %v3636
        %v4229 = vunpack.c.h.b16 %v3636
        %v4230 = vunpack.c.l.b16 %v3637
        %v4231 = vunpack.c.h.b16 %v3637
        %v4232 = vunpack.c.l.b16 %v3638
        %v4233 = vunpack.c.l.b16 %v3639
        %v4234 = vunpack.c.h.b16 %v3639
        %v4235 = vunpack.c.l.b16 %v3640
        %v4236 = vunpack.c.h.b16 %v3640
        %v4237 = vunpack.c.l.b16 %v3641
        %v4238 = vunpack.c.h.b16 %v3641
        %v4239 = vunpack.c.l.b16 %v3642
        %v4240 = vunpack.c.l.b16 %v3643
        %v4241 = vunpack.c.h.b16 %v3643
        %v4242 = vunpack.c.l.b16 %v3644
        %v4243 = vunpack.c.h.b16 %v3644
        %v4244 = vunpack.c.l.b16 %v3645
        %v4245 = vunpack.c.h.b16 %v3645
        %v4246 = vunpack.c.l.b16 %v3646
        %v4247 = vunpack.c.l.b16 %v3647
        %v4248 = vunpack.c.h.b16 %v3647
        %v4249 = vunpack.c.l.b16 %v3648
        %v4250 = vunpack.c.h.b16 %v3648
        %v4251 = vunpack.c.l.b16 %v3649
        %v4252 = vunpack.c.h.b16 %v3649
        %v4253 = vunpack.c.l.b16 %v3650
        %v4254 = vunpack.c.l.b16 %v3651
        %v4255 = vunpack.c.h.b16 %v3651
        %v4256 = vunpack.c.l.b16 %v3652
        %v4257 = vunpack.c.h.b16 %v3652
        %v4258 = vunpack.c.l.b16 %v3653
        %v4259 = vunpack.c.h.b16 %v3653
        %v4260 = vunpack.c.l.b16 %v3654
        %v4261 = vunpack.c.l.b16 %v3655
        %v4262 = vunpack.c.h.b16 %v3655
        %v4263 = vunpack.c.l.b16 %v3656
        %v4264 = vunpack.c.h.b16 %v3656
        %v4265 = vunpack.c.l.b16 %v3657
        %v4266 = vunpack.c.h.b16 %v3657
        %v4267 = vunpack.c.l.b16 %v3658
        %v4268 = vunpack.c.l.b16 %v3659
        %v4269 = vunpack.c.h.b16 %v3659
        %v4270 = vunpack.c.l.b16 %v3660
        %v4271 = vunpack.c.h.b16 %v3660
        %v4272 = vunpack.c.l.b16 %v3661
        %v4273 = vunpack.c.h.b16 %v3661
        %v4274 = vunpack.c.l.b16 %v3662
        %v4275 = vunpack.c.l.b16 %v3663
        %v4276 = vunpack.c.h.b16 %v3663
        %v4277 = vunpack.c.l.b16 %v3664
        %v4278 = vunpack.c.h.b16 %v3664
        %v4279 = vunpack.c.l.b16 %v3665
        %v4280 = vunpack.c.h.b16 %v3665
        %v4281 = vunpack.c.l.b16 %v3666
        %v4282 = vunpack.c.l.b16 %v3667
        %v4283 = vunpack.c.h.b16 %v3667
        %v4284 = vunpack.c.l.b16 %v3668
        %v4285 = vunpack.c.h.b16 %v3668
        %v4286 = vunpack.c.l.b16 %v3669
        %v4287 = vunpack.c.h.b16 %v3669
        %v4288 = vunpack.c.l.b16 %v3670
        %v4289 = vunpack.c.l.b16 %v3671
        %v4290 = vunpack.c.h.b16 %v3671
        %v4291 = vunpack.c.l.b16 %v3672
        %v4292 = vunpack.c.h.b16 %v3672
        %v4293 = vunpack.c.l.b16 %v3673
        %v4294 = vunpack.c.h.b16 %v3673
        %v4295 = vunpack.c.l.b16 %v3674
        %v4296 = vunpack.c.l.b16 %v3675
        %v4297 = vunpack.c.h.b16 %v3675
        %v4298 = vunpack.c.l.b16 %v3676
        %v4299 = vunpack.c.h.b16 %v3676
        %v4300 = vunpack.c.l.b16 %v3677
        %v4301 = vunpack.c.h.b16 %v3677
        %v4302 = vunpack.c.l.b16 %v3678
        %v4303 = vunpack.c.l.b16 %v3679
        %v4304 = vunpack.c.h.b16 %v3679
        %v4305 = vunpack.c.l.b16 %v3680
        %v4306 = vunpack.c.h.b16 %v3680
        %v4307 = vunpack.c.l.b16 %v3681
        %v4308 = vunpack.c.h.b16 %v3681
        %v4309 = vunpack.c.l.b16 %v3682
        %v4310 = vunpack.c.l.b16 %v3683
        %v4311 = vunpack.c.h.b16 %v3683
        %v4312 = vunpack.c.l.b16 %v3684
        %v4313 = vunpack.c.h.b16 %v3684
        %v4314 = vunpack.c.l.b16 %v3685
        %v4315 = vunpack.c.h.b16 %v3685
        %v4316 = vunpack.c.l.b16 %v3686
        %v4317 = vunpack.c.l.b16 %v3687
        %v4318 = vunpack.c.h.b16 %v3687
        %v4319 = vunpack.c.l.b16 %v3688
        %v4320 = vunpack.c.h.b16 %v3688
        %v4321 = vunpack.c.l.b16 %v3689
        %v4322 = vunpack.c.h.b16 %v3689
        %v4323 = vunpack.c.l.b16 %v3690
        %v4324 = vunpack.c.l.b16 %v3691
        %v4325 = vunpack.c.h.b16 %v3691
        %v4326 = vunpack.c.l.b16 %v3692
        %v4327 = vunpack.c.h.b16 %v3692
        %v4328 = vunpack.c.l.b16 %v3693
        %v4329 = vunpack.c.h.b16 %v3693
        %v4330 = vunpack.c.l.b16 %v3694
        %v4331 = vunpack.c.l.b16 %v3695
        %v4332 = vunpack.c.h.b16 %v3695
        %v4333 = vunpack.c.l.b16 %v3696
        %v4334 = vunpack.c.h.b16 %v3696
        %v4335 = vunpack.c.l.b16 %v3697
        %v4336 = vunpack.c.h.b16 %v3697
        %v4337 = vunpack.c.l.b16 %v3698
        %v4338 = vunpack.c.l.b16 %v3699
        %v4339 = vunpack.c.h.b16 %v3699
        %v4340 = vunpack.c.l.b16 %v3700
        %v4341 = vunpack.c.h.b16 %v3700
        %v4342 = vunpack.c.l.b16 %v3701
        %v4343 = vunpack.c.h.b16 %v3701
        %v4344 = vunpack.c.l.b16 %v3702
        %v4345 = vunpack.c.l.b16 %v3703
        %v4346 = vunpack.c.h.b16 %v3703
        %v4347 = vunpack.c.l.b16 %v3704
        %v4348 = vunpack.c.h.b16 %v3704
        %v4349 = vunpack.c.l.b16 %v3705
        %v4350 = vunpack.c.h.b16 %v3705
        %v4351 = vunpack.c.l.b16 %v3706
        %v4352 = vunpack.c.l.b16 %v3707
        %v4353 = vunpack.c.h.b16 %v3707
        %v4354 = vunpack.c.l.b16 %v3708
        %v4355 = vunpack.c.h.b16 %v3708
        %v4356 = vunpack.c.l.b16 %v3709
        %v4357 = vunpack.c.h.b16 %v3709
        %v4358 = vunpack.c.l.b16 %v3710
        %v4359 = vunpack.c.l.b16 %v3711
        %v4360 = vunpack.c.h.b16 %v3711
        %v4361 = vunpack.c.l.b16 %v3712
        %v4362 = vunpack.c.h.b16 %v3712
        %v4363 = vunpack.c.l.b16 %v3713
        %v4364 = vunpack.c.h.b16 %v3713
        %v4365 = vunpack.c.l.b16 %v3714
        %v4366 = vunpack.c.l.b16 %v3715
        %v4367 = vunpack.c.h.b16 %v3715
        %v4368 = vunpack.c.l.b16 %v3716
        %v4369 = vunpack.c.h.b16 %v3716
        %v4370 = vunpack.c.l.b16 %v3717
        %v4371 = vunpack.c.h.b16 %v3717
        %v4372 = vunpack.c.l.b16 %v3718
        %v4373 = vunpack.c.l.b16 %v3719
        %v4374 = vunpack.c.h.b16 %v3719
        %v4375 = vunpack.c.l.b16 %v3720
        %v4376 = vunpack.c.h.b16 %v3720
        %v4377 = vunpack.c.l.b16 %v3721
        %v4378 = vunpack.c.h.b16 %v3721
        %v4379 = vunpack.c.l.b16 %v3722
        %v4380 = vunpack.c.l.b16 %v3723
        %v4381 = vunpack.c.h.b16 %v3723
        %v4382 = vunpack.c.l.b16 %v3724
        %v4383 = vunpack.c.h.b16 %v3724
        %v4384 = vunpack.c.l.b16 %v3725
        %v4385 = vunpack.c.h.b16 %v3725
        %v4386 = vunpack.c.l.b16 %v3726
        %v4387 = vunpack.c.l.b16 %v3727
        %v4388 = vunpack.c.h.b16 %v3727
        %v4389 = vunpack.c.l.b16 %v3728
        %v4390 = vunpack.c.h.b16 %v3728
        %v4391 = vunpack.c.l.b16 %v3729
        %v4392 = vunpack.c.h.b16 %v3729
        %v4393 = vunpack.c.l.b16 %v3730
        %v4394 = vunpack.c.l.b16 %v3731
        %v4395 = vunpack.c.h.b16 %v3731
        %v4396 = vunpack.c.l.b16 %v3732
        %v4397 = vunpack.c.h.b16 %v3732
        %v4398 = vunpack.c.l.b16 %v3733
        %v4399 = vunpack.c.h.b16 %v3733
        %v4400 = vunpack.c.l.b16 %v3734
        %v4401 = vunpack.c.l.b16 %v3735
        %v4402 = vunpack.c.h.b16 %v3735
        %v4403 = vunpack.c.l.b16 %v3736
        %v4404 = vunpack.c.h.b16 %v3736
        %v4405 = vunpack.c.l.b16 %v3737
        %v4406 = vunpack.c.h.b16 %v3737
        %v4407 = vunpack.c.l.b16 %v3738
        %v4408 = vunpack.c.l.b16 %v3739
        %v4409 = vunpack.c.h.b16 %v3739
        %v4410 = vunpack.c.l.b16 %v3740
        %v4411 = vunpack.c.h.b16 %v3740
        %v4412 = vunpack.c.l.b16 %v3741
        %v4413 = vunpack.c.h.b16 %v3741
        %v4414 = vunpack.c.l.b16 %v3742
        %v4415 = vunpack.c.l.b16 %v3743
        %v4416 = vunpack.c.h.b16 %v3743
        %v4417 = vunpack.c.l.b16 %v3744
        %v4418 = vunpack.c.h.b16 %v3744
        %v4419 = vunpack.c.l.b16 %v3745
        %v4420 = vunpack.c.h.b16 %v3745
        %v4421 = vunpack.c.l.b16 %v3746
        %v4422 = vunpack.c.l.b16 %v3747
        %v4423 = vunpack.c.h.b16 %v3747
        %v4424 = vunpack.c.l.b16 %v3748
        %v4425 = vunpack.c.h.b16 %v3748
        %v4426 = vunpack.c.l.b16 %v3749
        %v4427 = vunpack.c.h.b16 %v3749
        %v4428 = vunpack.c.l.b16 %v3750
        %v4429 = vunpack.c.l.b16 %v3751
        %v4430 = vunpack.c.h.b16 %v3751
        %v4431 = vunpack.c.l.b16 %v3752
        %v4432 = vunpack.c.h.b16 %v3752
        %v4433 = vunpack.c.l.b16 %v3753
        %v4434 = vunpack.c.h.b16 %v3753
        %v4435 = vunpack.c.l.b16 %v3754
        %v4436 = vunpack.c.l.b16 %v3755
        %v4437 = vunpack.c.h.b16 %v3755
        %v4438 = vunpack.c.l.b16 %v3756
        %v4439 = vunpack.c.h.b16 %v3756
        %v4440 = vunpack.c.l.b16 %v3757
        %v4441 = vunpack.c.h.b16 %v3757
        %v4442 = vunpack.c.l.b16 %v3758
        %v4443 = vunpack.c.l.b16 %v3759
        %v4444 = vunpack.c.h.b16 %v3759
        %v4445 = vunpack.c.l.b16 %v3760
        %v4446 = vunpack.c.h.b16 %v3760
        %v4447 = vunpack.c.l.b16 %v3761
        %v4448 = vunpack.c.h.b16 %v3761
        %v4449 = vunpack.c.l.b16 %v3762
        %v4450 = vunpack.c.l.b16 %v3763
        %v4451 = vunpack.c.h.b16 %v3763
        %v4452 = vunpack.c.l.b16 %v3764
        %v4453 = vunpack.c.h.b16 %v3764
        %v4454 = vunpack.c.l.b16 %v3765
        %v4455 = vunpack.c.h.b16 %v3765
        %v4456 = vunpack.c.l.b16 %v3766
        %v4457 = vunpack.c.l.b16 %v3767
        %v4458 = vunpack.c.h.b16 %v3767
        %v4459 = vunpack.c.l.b16 %v3768
        %v4460 = vunpack.c.h.b16 %v3768
        %v4461 = vunpack.c.l.b16 %v3769
        %v4462 = vunpack.c.h.b16 %v3769
        %v4463 = vunpack.c.l.b16 %v3770
        %v4464 = vunpack.c.l.b16 %v3771
        %v4465 = vunpack.c.h.b16 %v3771
        %v4466 = vunpack.c.l.b16 %v3772
        %v4467 = vunpack.c.h.b16 %v3772
        %v4468 = vunpack.c.l.b16 %v3773
        %v4469 = vunpack.c.h.b16 %v3773
        %v4470 = vunpack.c.l.b16 %v3774
        %v4471 = vunpack.c.l.b16 %v3775
        %v4472 = vunpack.c.h.b16 %v3775
        %v4473 = vunpack.c.l.b16 %v3776
        %v4474 = vunpack.c.h.b16 %v3776
        %v4475 = vunpack.c.l.b16 %v3777
        %v4476 = vunpack.c.h.b16 %v3777
        %v4477 = vunpack.c.l.b16 %v3778
        %v4478 = vunpack.c.l.b16 %v3779
        %v4479 = vunpack.c.h.b16 %v3779
        %v4480 = vunpack.c.l.b16 %v3780
        %v4481 = vunpack.c.h.b16 %v3780
        %v4482 = vunpack.c.l.b16 %v3781
        %v4483 = vunpack.c.h.b16 %v3781
        %v4484 = vunpack.c.l.b16 %v3782
        %v4485 = vunpack.c.l.b16 %v3783
        %v4486 = vunpack.c.h.b16 %v3783
        %v4487 = vunpack.c.l.b16 %v3784
        %v4488 = vunpack.c.h.b16 %v3784
        %v4489 = vunpack.c.l.b16 %v3785
        %v4490 = vunpack.c.h.b16 %v3785
        %v4491 = vunpack.c.l.b16 %v3786
        %v4492 = vunpack.c.l.b16 %v3787
        %v4493 = vunpack.c.h.b16 %v3787
        %v4494 = vunpack.c.l.b16 %v3788
        %v4495 = vunpack.c.h.b16 %v3788
        %v4496 = vunpack.c.l.b16 %v3789
        %v4497 = vunpack.c.h.b16 %v3789
        %v4498 = vunpack.c.l.b16 %v3790
        %v4499 = vunpack.c.l.b16 %v3791
        %v4500 = vunpack.c.h.b16 %v3791
        %v4501 = vunpack.c.l.b16 %v3792
        %v4502 = vunpack.c.h.b16 %v3792
        %v4503 = vunpack.c.l.b16 %v3793
        %v4504 = vunpack.c.h.b16 %v3793
        %v4505 = vunpack.c.l.b16 %v3794
        %v4506 = vunpack.c.l.b16 %v3795
        %v4507 = vunpack.c.h.b16 %v3795
        %v4508 = vunpack.c.l.b16 %v3796
        %v4509 = vunpack.c.h.b16 %v3796
        %v4510 = vunpack.c.l.b16 %v3797
        %v4511 = vunpack.c.h.b16 %v3797
        %v4512 = vunpack.c.l.b16 %v3798
        %v4513 = vunpack.c.l.b16 %v3799
        %v4514 = vunpack.c.h.b16 %v3799
        %v4515 = vunpack.c.l.b16 %v3800
        %v4516 = vunpack.c.h.b16 %v3800
        %v4517 = vunpack.c.l.b16 %v3801
        %v4518 = vunpack.c.h.b16 %v3801
        %v4519 = vunpack.c.l.b16 %v3802
        %v4520 = vunpack.c.l.b16 %v3803
        %v4521 = vunpack.c.h.b16 %v3803
        %v4522 = vunpack.c.l.b16 %v3804
        %v4523 = vunpack.c.h.b16 %v3804
        %v4524 = vunpack.c.l.b16 %v3805
        %v4525 = vunpack.c.h.b16 %v3805
        %v4526 = vunpack.c.l.b16 %v3806
        %v4527 = vunpack.c.l.b16 %v3807
        %v4528 = vunpack.c.h.b16 %v3807
        %v4529 = vunpack.c.l.b16 %v3808
        %v4530 = vunpack.c.h.b16 %v3808
        %v4531 = vunpack.c.l.b16 %v3809
        %v4532 = vunpack.c.h.b16 %v3809
        %v4533 = vunpack.c.l.b16 %v3810
        %v4534 = vunpack.c.l.b16 %v3811
        %v4535 = vunpack.c.h.b16 %v3811
        %v4536 = vunpack.c.l.b16 %v3812
        %v4537 = vunpack.c.h.b16 %v3812
        %v4538 = vunpack.c.l.b16 %v3813
        %v4539 = vunpack.c.h.b16 %v3813
        %v4540 = vunpack.c.l.b16 %v3814
        %v4541 = vunpack.c.l.b16 %v3815
        %v4542 = vunpack.c.h.b16 %v3815
        %v4543 = vunpack.c.l.b16 %v3816
        %v4544 = vunpack.c.h.b16 %v3816
        %v4545 = vunpack.c.l.b16 %v3817
        %v4546 = vunpack.c.h.b16 %v3817
        %v4547 = vunpack.c.l.b16 %v3818
        %v4548 = vunpack.c.l.b16 %v3819
        %v4549 = vunpack.c.h.b16 %v3819
        %v4550 = vunpack.c.l.b16 %v3820
        %v4551 = vunpack.c.h.b16 %v3820
        %v4552 = vunpack.c.l.b16 %v3821
        %v4553 = vunpack.c.h.b16 %v3821
        %v4554 = vunpack.c.l.b16 %v3822
        %v4555 = vunpack.c.l.b16 %v3823
        %v4556 = vunpack.c.h.b16 %v3823
        %v4557 = vunpack.c.l.b16 %v3824
        %v4558 = vunpack.c.h.b16 %v3824
        %v4559 = vunpack.c.l.b16 %v3825
        %v4560 = vunpack.c.h.b16 %v3825
        %v4561 = vunpack.c.l.b16 %v3826
        %v4562 = vunpack.c.l.b16 %v3827
        %v4563 = vunpack.c.h.b16 %v3827
        %v4564 = vunpack.c.l.b16 %v3828
        %v4565 = vunpack.c.h.b16 %v3828
        %v4566 = vunpack.c.l.b16 %v3829
        %v4567 = vunpack.c.h.b16 %v3829
        %v4568 = vunpack.c.l.b16 %v3830
        %v4569 = vunpack.c.l.b16 %v3831
        %v4570 = vunpack.c.h.b16 %v3831
        %v4571 = vunpack.c.l.b16 %v3832
        %v4572 = vunpack.c.h.b16 %v3832
        %v4573 = vunpack.c.l.b16 %v3833
        %v4574 = vunpack.c.h.b16 %v3833
        %v4575 = vunpack.c.l.b16 %v3834
        %v4576 = vpack.c.b16 %v4135, %v4128
        %v4577 = vpack.c.b16 %v4136, %v4129
        %v4578 = vpack.c.b16 %v4137, %v4130
        %v4579 = vpack.c.b16 %v4138, %v4131
        %v4580 = vpack.c.b16 %v4139, %v4132
        %v4581 = vpack.c.b16 %v4140, %v4133
        %v4582 = vpack.c.b16 %v4141, %v4134
        %v4583 = vpack.c.b16 %v4149, %v4142
        %v4584 = vpack.c.b16 %v4150, %v4143
        %v4585 = vpack.c.b16 %v4151, %v4144
        %v4586 = vpack.c.b16 %v4152, %v4145
        %v4587 = vpack.c.b16 %v4153, %v4146
        %v4588 = vpack.c.b16 %v4154, %v4147
        %v4589 = vpack.c.b16 %v4155, %v4148
        %v4590 = vpack.c.b16 %v4163, %v4156
        %v4591 = vpack.c.b16 %v4164, %v4157
        %v4592 = vpack.c.b16 %v4165, %v4158
        %v4593 = vpack.c.b16 %v4166, %v4159
        %v4594 = vpack.c.b16 %v4167, %v4160
        %v4595 = vpack.c.b16 %v4168, %v4161
        %v4596 = vpack.c.b16 %v4169, %v4162
        %v4597 = vpack.c.b16 %v4177, %v4170
        %v4598 = vpack.c.b16 %v4178, %v4171
        %v4599 = vpack.c.b16 %v4179, %v4172
        %v4600 = vpack.c.b16 %v4180, %v4173
        %v4601 = vpack.c.b16 %v4181, %v4174
        %v4602 = vpack.c.b16 %v4182, %v4175
        %v4603 = vpack.c.b16 %v4183, %v4176
        %v4604 = vpack.c.b16 %v4191, %v4184
        %v4605 = vpack.c.b16 %v4192, %v4185
        %v4606 = vpack.c.b16 %v4193, %v4186
        %v4607 = vpack.c.b16 %v4194, %v4187
        %v4608 = vpack.c.b16 %v4195, %v4188
        %v4609 = vpack.c.b16 %v4196, %v4189
        %v4610 = vpack.c.b16 %v4197, %v4190
        %v4611 = vpack.c.b16 %v4205, %v4198
        %v4612 = vpack.c.b16 %v4206, %v4199
        %v4613 = vpack.c.b16 %v4207, %v4200
        %v4614 = vpack.c.b16 %v4208, %v4201
        %v4615 = vpack.c.b16 %v4209, %v4202
        %v4616 = vpack.c.b16 %v4210, %v4203
        %v4617 = vpack.c.b16 %v4211, %v4204
        %v4618 = vpack.c.b16 %v4219, %v4212
        %v4619 = vpack.c.b16 %v4220, %v4213
        %v4620 = vpack.c.b16 %v4221, %v4214
        %v4621 = vpack.c.b16 %v4222, %v4215
        %v4622 = vpack.c.b16 %v4223, %v4216
        %v4623 = vpack.c.b16 %v4224, %v4217
        %v4624 = vpack.c.b16 %v4225, %v4218
        %v4625 = vpack.c.b16 %v4233, %v4226
        %v4626 = vpack.c.b16 %v4234, %v4227
        %v4627 = vpack.c.b16 %v4235, %v4228
        %v4628 = vpack.c.b16 %v4236, %v4229
        %v4629 = vpack.c.b16 %v4237, %v4230
        %v4630 = vpack.c.b16 %v4238, %v4231
        %v4631 = vpack.c.b16 %v4239, %v4232
        %v4632 = vpack.c.b16 %v4247, %v4240
        %v4633 = vpack.c.b16 %v4248, %v4241
        %v4634 = vpack.c.b16 %v4249, %v4242
        %v4635 = vpack.c.b16 %v4250, %v4243
        %v4636 = vpack.c.b16 %v4251, %v4244
        %v4637 = vpack.c.b16 %v4252, %v4245
        %v4638 = vpack.c.b16 %v4253, %v4246
        %v4639 = vpack.c.b16 %v4261, %v4254
        %v4640 = vpack.c.b16 %v4262, %v4255
        %v4641 = vpack.c.b16 %v4263, %v4256
        %v4642 = vpack.c.b16 %v4264, %v4257
        %v4643 = vpack.c.b16 %v4265, %v4258
        %v4644 = vpack.c.b16 %v4266, %v4259
        %v4645 = vpack.c.b16 %v4267, %v4260
        %v4646 = vpack.c.b16 %v4275, %v4268
        %v4647 = vpack.c.b16 %v4276, %v4269
        %v4648 = vpack.c.b16 %v4277, %v4270
        %v4649 = vpack.c.b16 %v4278, %v4271
        %v4650 = vpack.c.b16 %v4279, %v4272
        %v4651 = vpack.c.b16 %v4280, %v4273
        %v4652 = vpack.c.b16 %v4281, %v4274
        %v4653 = vpack.c.b16 %v4289, %v4282
        %v4654 = vpack.c.b16 %v4290, %v4283
        %v4655 = vpack.c.b16 %v4291, %v4284
        %v4656 = vpack.c.b16 %v4292, %v4285
        %v4657 = vpack.c.b16 %v4293, %v4286
        %v4658 = vpack.c.b16 %v4294, %v4287
        %v4659 = vpack.c.b16 %v4295, %v4288
        %v4660 = vpack.c.b16 %v4303, %v4296
        %v4661 = vpack.c.b16 %v4304, %v4297
        %v4662 = vpack.c.b16 %v4305, %v4298
        %v4663 = vpack.c.b16 %v4306, %v4299
        %v4664 = vpack.c.b16 %v4307, %v4300
        %v4665 = vpack.c.b16 %v4308, %v4301
        %v4666 = vpack.c.b16 %v4309, %v4302
        %v4667 = vpack.c.b16 %v4317, %v4310
        %v4668 = vpack.c.b16 %v4318, %v4311
        %v4669 = vpack.c.b16 %v4319, %v4312
        %v4670 = vpack.c.b16 %v4320, %v4313
        %v4671 = vpack.c.b16 %v4321, %v4314
        %v4672 = vpack.c.b16 %v4322, %v4315
        %v4673 = vpack.c.b16 %v4323, %v4316
        %v4674 = vpack.c.b16 %v4331, %v4324
        %v4675 = vpack.c.b16 %v4332, %v4325
        %v4676 = vpack.c.b16 %v4333, %v4326
        %v4677 = vpack.c.b16 %v4334, %v4327
        %v4678 = vpack.c.b16 %v4335, %v4328
        %v4679 = vpack.c.b16 %v4336, %v4329
        %v4680 = vpack.c.b16 %v4337, %v4330
        %v4681 = vpack.c.b16 %v4345, %v4338
        %v4682 = vpack.c.b16 %v4346, %v4339
        %v4683 = vpack.c.b16 %v4347, %v4340
        %v4684 = vpack.c.b16 %v4348, %v4341
        %v4685 = vpack.c.b16 %v4349, %v4342
        %v4686 = vpack.c.b16 %v4350, %v4343
        %v4687 = vpack.c.b16 %v4351, %v4344
        %v4688 = vpack.c.b16 %v4359, %v4352
        %v4689 = vpack.c.b16 %v4360, %v4353
        %v4690 = vpack.c.b16 %v4361, %v4354
        %v4691 = vpack.c.b16 %v4362, %v4355
        %v4692 = vpack.c.b16 %v4363, %v4356
        %v4693 = vpack.c.b16 %v4364, %v4357
        %v4694 = vpack.c.b16 %v4365, %v4358
        %v4695 = vpack.c.b16 %v4373, %v4366
        %v4696 = vpack.c.b16 %v4374, %v4367
        %v4697 = vpack.c.b16 %v4375, %v4368
        %v4698 = vpack.c.b16 %v4376, %v4369
        %v4699 = vpack.c.b16 %v4377, %v4370
        %v4700 = vpack.c.b16 %v4378, %v4371
        %v4701 = vpack.c.b16 %v4379, %v4372
        %v4702 = vpack.c.b16 %v4387, %v4380
        %v4703 = vpack.c.b16 %v4388, %v4381
        %v4704 = vpack.c.b16 %v4389, %v4382
        %v4705 = vpack.c.b16 %v4390, %v4383
        %v4706 = vpack.c.b16 %v4391, %v4384
        %v4707 = vpack.c.b16 %v4392, %v4385
        %v4708 = vpack.c.b16 %v4393, %v4386
        %v4709 = vpack.c.b16 %v4401, %v4394
        %v4710 = vpack.c.b16 %v4402, %v4395
        %v4711 = vpack.c.b16 %v4403, %v4396
        %v4712 = vpack.c.b16 %v4404, %v4397
        %v4713 = vpack.c.b16 %v4405, %v4398
        %v4714 = vpack.c.b16 %v4406, %v4399
        %v4715 = vpack.c.b16 %v4407, %v4400
        %v4716 = vpack.c.b16 %v4415, %v4408
        %v4717 = vpack.c.b16 %v4416, %v4409
        %v4718 = vpack.c.b16 %v4417, %v4410
        %v4719 = vpack.c.b16 %v4418, %v4411
        %v4720 = vpack.c.b16 %v4419, %v4412
        %v4721 = vpack.c.b16 %v4420, %v4413
        %v4722 = vpack.c.b16 %v4421, %v4414
        %v4723 = vpack.c.b16 %v4429, %v4422
        %v4724 = vpack.c.b16 %v4430, %v4423
        %v4725 = vpack.c.b16 %v4431, %v4424
        %v4726 = vpack.c.b16 %v4432, %v4425
        %v4727 = vpack.c.b16 %v4433, %v4426
        %v4728 = vpack.c.b16 %v4434, %v4427
        %v4729 = vpack.c.b16 %v4435, %v4428
        %v4730 = vpack.c.b16 %v4443, %v4436
        %v4731 = vpack.c.b16 %v4444, %v4437
        %v4732 = vpack.c.b16 %v4445, %v4438
        %v4733 = vpack.c.b16 %v4446, %v4439
        %v4734 = vpack.c.b16 %v4447, %v4440
        %v4735 = vpack.c.b16 %v4448, %v4441
        %v4736 = vpack.c.b16 %v4449, %v4442
        %v4737 = vpack.c.b16 %v4457, %v4450
        %v4738 = vpack.c.b16 %v4458, %v4451
        %v4739 = vpack.c.b16 %v4459, %v4452
        %v4740 = vpack.c.b16 %v4460, %v4453
        %v4741 = vpack.c.b16 %v4461, %v4454
        %v4742 = vpack.c.b16 %v4462, %v4455
        %v4743 = vpack.c.b16 %v4463, %v4456
        %v4744 = vpack.c.b16 %v4471, %v4464
        %v4745 = vpack.c.b16 %v4472, %v4465
        %v4746 = vpack.c.b16 %v4473, %v4466
        %v4747 = vpack.c.b16 %v4474, %v4467
        %v4748 = vpack.c.b16 %v4475, %v4468
        %v4749 = vpack.c.b16 %v4476, %v4469
        %v4750 = vpack.c.b16 %v4477, %v4470
        %v4751 = vpack.c.b16 %v4485, %v4478
        %v4752 = vpack.c.b16 %v4486, %v4479
        %v4753 = vpack.c.b16 %v4487, %v4480
        %v4754 = vpack.c.b16 %v4488, %v4481
        %v4755 = vpack.c.b16 %v4489, %v4482
        %v4756 = vpack.c.b16 %v4490, %v4483
        %v4757 = vpack.c.b16 %v4491, %v4484
        %v4758 = vpack.c.b16 %v4499, %v4492
        %v4759 = vpack.c.b16 %v4500, %v4493
        %v4760 = vpack.c.b16 %v4501, %v4494
        %v4761 = vpack.c.b16 %v4502, %v4495
        %v4762 = vpack.c.b16 %v4503, %v4496
        %v4763 = vpack.c.b16 %v4504, %v4497
        %v4764 = vpack.c.b16 %v4505, %v4498
        %v4765 = vpack.c.b16 %v4513, %v4506
        %v4766 = vpack.c.b16 %v4514, %v4507
        %v4767 = vpack.c.b16 %v4515, %v4508
        %v4768 = vpack.c.b16 %v4516, %v4509
        %v4769 = vpack.c.b16 %v4517, %v4510
        %v4770 = vpack.c.b16 %v4518, %v4511
        %v4771 = vpack.c.b16 %v4519, %v4512
        %v4772 = vpack.c.b16 %v4527, %v4520
        %v4773 = vpack.c.b16 %v4528, %v4521
        %v4774 = vpack.c.b16 %v4529, %v4522
        %v4775 = vpack.c.b16 %v4530, %v4523
        %v4776 = vpack.c.b16 %v4531, %v4524
        %v4777 = vpack.c.b16 %v4532, %v4525
        %v4778 = vpack.c.b16 %v4533, %v4526
        %v4779 = vpack.c.b16 %v4541, %v4534
        %v4780 = vpack.c.b16 %v4542, %v4535
        %v4781 = vpack.c.b16 %v4543, %v4536
        %v4782 = vpack.c.b16 %v4544, %v4537
        %v4783 = vpack.c.b16 %v4545, %v4538
        %v4784 = vpack.c.b16 %v4546, %v4539
        %v4785 = vpack.c.b16 %v4547, %v4540
        %v4786 = vpack.c.b16 %v4555, %v4548
        %v4787 = vpack.c.b16 %v4556, %v4549
        %v4788 = vpack.c.b16 %v4557, %v4550
        %v4789 = vpack.c.b16 %v4558, %v4551
        %v4790 = vpack.c.b16 %v4559, %v4552
        %v4791 = vpack.c.b16 %v4560, %v4553
        %v4792 = vpack.c.b16 %v4561, %v4554
        %v4793 = vpack.c.b16 %v4569, %v4562
        %v4794 = vpack.c.b16 %v4570, %v4563
        %v4795 = vpack.c.b16 %v4571, %v4564
        %v4796 = vpack.c.b16 %v4572, %v4565
        %v4797 = vpack.c.b16 %v4573, %v4566
        %v4798 = vpack.c.b16 %v4574, %v4567
        %v4799 = vpack.c.b16 %v4575, %v4568
        %5024 = vmatprep.subr.bf16.mxu0 %v4577
        %5025 = vmatpush1.bf16.msra.mxu0 %v4576
        %5026 = vmatprep.subr.bf16.mxu0 %v4584
        %5027 = vmatpush1.bf16.msra.mxu0 %v4583
        %5028 = vmatprep.subr.bf16.mxu0 %v4591
        %5029 = vmatpush1.bf16.msra.mxu0 %v4590
        %5030 = vmatprep.subr.bf16.mxu0 %v4598
        %5031 = vmatpush1.bf16.msra.mxu0 %v4597
        %5032 = vmatprep.subr.bf16.mxu0 %v4605
        %5033 = vmatpush1.bf16.msra.mxu0 %v4604
        %5034 = vmatprep.subr.bf16.mxu0 %v4612
        %5035 = vmatpush1.bf16.msra.mxu0 %v4611
        %5036 = vmatprep.subr.bf16.mxu0 %v4619
        %5037 = vmatpush1.bf16.msra.mxu0 %v4618
        %5038 = vmatprep.subr.bf16.mxu0 %v4626
        %5039 = vmatpush1.bf16.msra.mxu0 %v4625
        %5040 = vmatprep.subr.bf16.mxu0 %v4633
        %5041 = vmatpush1.bf16.msra.mxu0 %v4632
        %5042 = vmatprep.subr.bf16.mxu0 %v4640
        %5043 = vmatpush1.bf16.msra.mxu0 %v4639
        %5044 = vmatprep.subr.bf16.mxu0 %v4647
        %5045 = vmatpush1.bf16.msra.mxu0 %v4646
        %5046 = vmatprep.subr.bf16.mxu0 %v4654
        %5047 = vmatpush1.bf16.msra.mxu0 %v4653
        %5048 = vmatprep.subr.bf16.mxu0 %v4661
        %5049 = vmatpush1.bf16.msra.mxu0 %v4660
        %5050 = vmatprep.subr.bf16.mxu0 %v4668
        %5051 = vmatpush1.bf16.msra.mxu0 %v4667
        %5052 = vmatprep.subr.bf16.mxu0 %v4675
        %5053 = vmatpush1.bf16.msra.mxu0 %v4674
        %5054 = vmatprep.subr.bf16.mxu0 %v4682
        %5055 = vmatpush1.bf16.msra.mxu0 %v4681
        %5056 = vmatprep.mubr.bf16.mxu0 %v3576
        %5057 = vmatmul.mubr.bf16.gmra.mrb[0].mxu0 %v3575
        %v5058 = vpop.f32.mrb[0].mxu0
        %v5059 = vadd.f32 %v3840, %v5058
        %v5060 = vpop.f32.mrb[0].mxu0
        %v5061 = vadd.f32 %v3844, %v5060
        %v5062 = vpop.f32.mrb[0].mxu0
        %v5063 = vadd.f32 %v3840, %v5062
        %v5064 = vpop.f32.mrb[0].mxu0
        %v5065 = vadd.f32 %v3844, %v5064
        %5066 = vdwg.mxu0
        %5067 = vmatprep.subr.bf16.mxu0 %v4689
        %5068 = vmatpush1.bf16.msra.mxu0 %v4688
        %5069 = vmatprep.subr.bf16.mxu0 %v4696
        %5070 = vmatpush1.bf16.msra.mxu0 %v4695
        %5071 = vmatprep.subr.bf16.mxu0 %v4703
        %5072 = vmatpush1.bf16.msra.mxu0 %v4702
        %5073 = vmatprep.subr.bf16.mxu0 %v4710
        %5074 = vmatpush1.bf16.msra.mxu0 %v4709
        %5075 = vmatprep.subr.bf16.mxu0 %v4717
        %5076 = vmatpush1.bf16.msra.mxu0 %v4716
        %5077 = vmatprep.subr.bf16.mxu0 %v4724
        %5078 = vmatpush1.bf16.msra.mxu0 %v4723
        %5079 = vmatprep.subr.bf16.mxu0 %v4731
        %5080 = vmatpush1.bf16.msra.mxu0 %v4730
        %5081 = vmatprep.subr.bf16.mxu0 %v4738
        %5082 = vmatpush1.bf16.msra.mxu0 %v4737
        %5083 = vmatprep.subr.bf16.mxu0 %v4745
        %5084 = vmatpush1.bf16.msra.mxu0 %v4744
        %5085 = vmatprep.subr.bf16.mxu0 %v4752
        %5086 = vmatpush1.bf16.msra.mxu0 %v4751
        %5087 = vmatprep.subr.bf16.mxu0 %v4759
        %5088 = vmatpush1.bf16.msra.mxu0 %v4758
        %5089 = vmatprep.subr.bf16.mxu0 %v4766
        %5090 = vmatpush1.bf16.msra.mxu0 %v4765
        %5091 = vmatprep.subr.bf16.mxu0 %v4773
        %5092 = vmatpush1.bf16.msra.mxu0 %v4772
        %5093 = vmatprep.subr.bf16.mxu0 %v4780
        %5094 = vmatpush1.bf16.msra.mxu0 %v4779
        %5095 = vmatprep.subr.bf16.mxu0 %v4787
        %5096 = vmatpush1.bf16.msra.mxu0 %v4786
        %5097 = vmatprep.subr.bf16.mxu0 %v4794
        %5098 = vmatpush1.bf16.msra.mxu0 %v4793
        %5099 = vmatprep.mubr.bf16.mxu0 %v3578
        %5100 = vmatmul.mubr.bf16.gmra.mrb[0].mxu0 %v3577
        %v5101 = vpop.f32.mrb[0].mxu0
        %v5102 = vadd.f32 %v5059, %v5101
        %v5103 = vpop.f32.mrb[0].mxu0
        %v5104 = vadd.f32 %v5061, %v5103
        %v5105 = vpop.f32.mrb[0].mxu0
        %v5106 = vadd.f32 %v5063, %v5105
        %v5107 = vpop.f32.mrb[0].mxu0
        %v5108 = vadd.f32 %v5065, %v5107
        %5109 = vdwg.mxu0
        %5110 = vmatprep.subr.bf16.mxu0 %v4579
        %5111 = vmatpush1.bf16.msra.mxu0 %v4578
        %5112 = vmatprep.subr.bf16.mxu0 %v4586
        %5113 = vmatpush1.bf16.msra.mxu0 %v4585
        %5114 = vmatprep.subr.bf16.mxu0 %v4593
        %5115 = vmatpush1.bf16.msra.mxu0 %v4592
        %5116 = vmatprep.subr.bf16.mxu0 %v4600
        %5117 = vmatpush1.bf16.msra.mxu0 %v4599
        %5118 = vmatprep.subr.bf16.mxu0 %v4607
        %5119 = vmatpush1.bf16.msra.mxu0 %v4606
        %5120 = vmatprep.subr.bf16.mxu0 %v4614
        %5121 = vmatpush1.bf16.msra.mxu0 %v4613
        %5122 = vmatprep.subr.bf16.mxu0 %v4621
        %5123 = vmatpush1.bf16.msra.mxu0 %v4620
        %5124 = vmatprep.subr.bf16.mxu0 %v4628
        %5125 = vmatpush1.bf16.msra.mxu0 %v4627
        %5126 = vmatprep.subr.bf16.mxu0 %v4635
        %5127 = vmatpush1.bf16.msra.mxu0 %v4634
        %5128 = vmatprep.subr.bf16.mxu0 %v4642
        %5129 = vmatpush1.bf16.msra.mxu0 %v4641
        %5130 = vmatprep.subr.bf16.mxu0 %v4649
        %5131 = vmatpush1.bf16.msra.mxu0 %v4648
        %5132 = vmatprep.subr.bf16.mxu0 %v4656
        %5133 = vmatpush1.bf16.msra.mxu0 %v4655
        %5134 = vmatprep.subr.bf16.mxu0 %v4663
        %5135 = vmatpush1.bf16.msra.mxu0 %v4662
        %5136 = vmatprep.subr.bf16.mxu0 %v4670
        %5137 = vmatpush1.bf16.msra.mxu0 %v4669
        %5138 = vmatprep.subr.bf16.mxu0 %v4677
        %5139 = vmatpush1.bf16.msra.mxu0 %v4676
        %5140 = vmatprep.subr.bf16.mxu0 %v4684
        %5141 = vmatpush1.bf16.msra.mxu0 %v4683
        %5142 = vmatprep.mubr.bf16.mxu0 %v3576
        %5143 = vmatmul.mubr.bf16.gmra.mrb[0].mxu0 %v3575
        %v5144 = vpop.f32.mrb[0].mxu0
        %v5145 = vadd.f32 %v3848, %v5144
        %v5146 = vpop.f32.mrb[0].mxu0
        %v5147 = vadd.f32 %v3852, %v5146
        %v5148 = vpop.f32.mrb[0].mxu0
        %v5149 = vadd.f32 %v3848, %v5148
        %v5150 = vpop.f32.mrb[0].mxu0
        %v5151 = vadd.f32 %v3852, %v5150
        %5152 = vdwg.mxu0
        %5153 = vmatprep.subr.bf16.mxu0 %v4691
        %5154 = vmatpush1.bf16.msra.mxu0 %v4690
        %5155 = vmatprep.subr.bf16.mxu0 %v4698
        %5156 = vmatpush1.bf16.msra.mxu0 %v4697
        %5157 = vmatprep.subr.bf16.mxu0 %v4705
        %5158 = vmatpush1.bf16.msra.mxu0 %v4704
        %5159 = vmatprep.subr.bf16.mxu0 %v4712
        %5160 = vmatpush1.bf16.msra.mxu0 %v4711
        %5161 = vmatprep.subr.bf16.mxu0 %v4719
        %5162 = vmatpush1.bf16.msra.mxu0 %v4718
        %5163 = vmatprep.subr.bf16.mxu0 %v4726
        %5164 = vmatpush1.bf16.msra.mxu0 %v4725
        %5165 = vmatprep.subr.bf16.mxu0 %v4733
        %5166 = vmatpush1.bf16.msra.mxu0 %v4732
        %5167 = vmatprep.subr.bf16.mxu0 %v4740
        %5168 = vmatpush1.bf16.msra.mxu0 %v4739
        %5169 = vmatprep.subr.bf16.mxu0 %v4747
        %5170 = vmatpush1.bf16.msra.mxu0 %v4746
        %5171 = vmatprep.subr.bf16.mxu0 %v4754
        %5172 = vmatpush1.bf16.msra.mxu0 %v4753
        %5173 = vmatprep.subr.bf16.mxu0 %v4761
        %5174 = vmatpush1.bf16.msra.mxu0 %v4760
        %5175 = vmatprep.subr.bf16.mxu0 %v4768
        %5176 = vmatpush1.bf16.msra.mxu0 %v4767
        %5177 = vmatprep.subr.bf16.mxu0 %v4775
        %5178 = vmatpush1.bf16.msra.mxu0 %v4774
        %5179 = vmatprep.subr.bf16.mxu0 %v4782
        %5180 = vmatpush1.bf16.msra.mxu0 %v4781
        %5181 = vmatprep.subr.bf16.mxu0 %v4789
        %5182 = vmatpush1.bf16.msra.mxu0 %v4788
        %5183 = vmatprep.subr.bf16.mxu0 %v4796
        %5184 = vmatpush1.bf16.msra.mxu0 %v4795
        %5185 = vmatprep.mubr.bf16.mxu0 %v3578
        %5186 = vmatmul.mubr.bf16.gmra.mrb[0].mxu0 %v3577
        %v5187 = vpop.f32.mrb[0].mxu0
        %v5188 = vadd.f32 %v5145, %v5187
        %v5189 = vpop.f32.mrb[0].mxu0
        %v5190 = vadd.f32 %v5147, %v5189
        %v5191 = vpop.f32.mrb[0].mxu0
        %v5192 = vadd.f32 %v5149, %v5191
        %v5193 = vpop.f32.mrb[0].mxu0
        %v5194 = vadd.f32 %v5151, %v5193
        %5195 = vdwg.mxu0
        %5196 = vmatprep.subr.bf16.mxu0 %v4581
        %5197 = vmatpush1.bf16.msra.mxu0 %v4580
        %5198 = vmatprep.subr.bf16.mxu0 %v4588
        %5199 = vmatpush1.bf16.msra.mxu0 %v4587
        %5200 = vmatprep.subr.bf16.mxu0 %v4595
        %5201 = vmatpush1.bf16.msra.mxu0 %v4594
        %5202 = vmatprep.subr.bf16.mxu0 %v4602
        %5203 = vmatpush1.bf16.msra.mxu0 %v4601
        %5204 = vmatprep.subr.bf16.mxu0 %v4609
        %5205 = vmatpush1.bf16.msra.mxu0 %v4608
        %5206 = vmatprep.subr.bf16.mxu0 %v4616
        %5207 = vmatpush1.bf16.msra.mxu0 %v4615
        %5208 = vmatprep.subr.bf16.mxu0 %v4623
        %5209 = vmatpush1.bf16.msra.mxu0 %v4622
        %5210 = vmatprep.subr.bf16.mxu0 %v4630
        %5211 = vmatpush1.bf16.msra.mxu0 %v4629
        %5212 = vmatprep.subr.bf16.mxu0 %v4637
        %5213 = vmatpush1.bf16.msra.mxu0 %v4636
        %5214 = vmatprep.subr.bf16.mxu0 %v4644
        %5215 = vmatpush1.bf16.msra.mxu0 %v4643
        %5216 = vmatprep.subr.bf16.mxu0 %v4651
        %5217 = vmatpush1.bf16.msra.mxu0 %v4650
        %5218 = vmatprep.subr.bf16.mxu0 %v4658
        %5219 = vmatpush1.bf16.msra.mxu0 %v4657
        %5220 = vmatprep.subr.bf16.mxu0 %v4665
        %5221 = vmatpush1.bf16.msra.mxu0 %v4664
        %5222 = vmatprep.subr.bf16.mxu0 %v4672
        %5223 = vmatpush1.bf16.msra.mxu0 %v4671
        %5224 = vmatprep.subr.bf16.mxu0 %v4679
        %5225 = vmatpush1.bf16.msra.mxu0 %v4678
        %5226 = vmatprep.subr.bf16.mxu0 %v4686
        %5227 = vmatpush1.bf16.msra.mxu0 %v4685
        %5228 = vmatprep.mubr.bf16.mxu0 %v3576
        %5229 = vmatmul.mubr.bf16.gmra.mrb[0].mxu0 %v3575
        %v5230 = vpop.f32.mrb[0].mxu0
        %v5231 = vadd.f32 %v3856, %v5230
        %v5232 = vpop.f32.mrb[0].mxu0
        %v5233 = vadd.f32 %v3860, %v5232
        %v5234 = vpop.f32.mrb[0].mxu0
        %v5235 = vadd.f32 %v3856, %v5234
        %v5236 = vpop.f32.mrb[0].mxu0
        %v5237 = vadd.f32 %v3860, %v5236
        %5238 = vdwg.mxu0
        %5239 = vmatprep.subr.bf16.mxu0 %v4693
        %5240 = vmatpush1.bf16.msra.mxu0 %v4692
        %5241 = vmatprep.subr.bf16.mxu0 %v4700
        %5242 = vmatpush1.bf16.msra.mxu0 %v4699
        %5243 = vmatprep.subr.bf16.mxu0 %v4707
        %5244 = vmatpush1.bf16.msra.mxu0 %v4706
        %5245 = vmatprep.subr.bf16.mxu0 %v4714
        %5246 = vmatpush1.bf16.msra.mxu0 %v4713
        %5247 = vmatprep.subr.bf16.mxu0 %v4721
        %5248 = vmatpush1.bf16.msra.mxu0 %v4720
        %5249 = vmatprep.subr.bf16.mxu0 %v4728
        %5250 = vmatpush1.bf16.msra.mxu0 %v4727
        %5251 = vmatprep.subr.bf16.mxu0 %v4735
        %5252 = vmatpush1.bf16.msra.mxu0 %v4734
        %5253 = vmatprep.subr.bf16.mxu0 %v4742
        %5254 = vmatpush1.bf16.msra.mxu0 %v4741
        %5255 = vmatprep.subr.bf16.mxu0 %v4749
        %5256 = vmatpush1.bf16.msra.mxu0 %v4748
        %5257 = vmatprep.subr.bf16.mxu0 %v4756
        %5258 = vmatpush1.bf16.msra.mxu0 %v4755
        %5259 = vmatprep.subr.bf16.mxu0 %v4763
        %5260 = vmatpush1.bf16.msra.mxu0 %v4762
        %5261 = vmatprep.subr.bf16.mxu0 %v4770
        %5262 = vmatpush1.bf16.msra.mxu0 %v4769
        %5263 = vmatprep.subr.bf16.mxu0 %v4777
        %5264 = vmatpush1.bf16.msra.mxu0 %v4776
        %5265 = vmatprep.subr.bf16.mxu0 %v4784
        %5266 = vmatpush1.bf16.msra.mxu0 %v4783
        %5267 = vmatprep.subr.bf16.mxu0 %v4791
        %5268 = vmatpush1.bf16.msra.mxu0 %v4790
        %5269 = vmatprep.subr.bf16.mxu0 %v4798
        %5270 = vmatpush1.bf16.msra.mxu0 %v4797
        %5271 = vmatprep.mubr.bf16.mxu0 %v3578
        %5272 = vmatmul.mubr.bf16.gmra.mrb[0].mxu0 %v3577
        %v5273 = vpop.f32.mrb[0].mxu0
        %v5274 = vadd.f32 %v5231, %v5273
        %v5275 = vpop.f32.mrb[0].mxu0
        %v5276 = vadd.f32 %v5233, %v5275
        %v5277 = vpop.f32.mrb[0].mxu0
        %v5278 = vadd.f32 %v5235, %v5277
        %v5279 = vpop.f32.mrb[0].mxu0
        %v5280 = vadd.f32 %v5237, %v5279
        %5281 = vdwg.mxu0
        %5282 = vmatprep.subr.bf16.mxu0 0
        %5283 = vmatpush1.bf16.msra.mxu0 %v4582
        %5284 = vmatprep.subr.bf16.mxu0 0
        %5285 = vmatpush1.bf16.msra.mxu0 %v4589
        %5286 = vmatprep.subr.bf16.mxu0 0
        %5287 = vmatpush1.bf16.msra.mxu0 %v4596
        %5288 = vmatprep.subr.bf16.mxu0 0
        %5289 = vmatpush1.bf16.msra.mxu0 %v4603
        %5290 = vmatprep.subr.bf16.mxu0 0
        %5291 = vmatpush1.bf16.msra.mxu0 %v4610
        %5292 = vmatprep.subr.bf16.mxu0 0
        %5293 = vmatpush1.bf16.msra.mxu0 %v4617
        %5294 = vmatprep.subr.bf16.mxu0 0
        %5295 = vmatpush1.bf16.msra.mxu0 %v4624
        %5296 = vmatprep.subr.bf16.mxu0 0
        %5297 = vmatpush1.bf16.msra.mxu0 %v4631
        %5298 = vmatprep.subr.bf16.mxu0 0
        %5299 = vmatpush1.bf16.msra.mxu0 %v4638
        %5300 = vmatprep.subr.bf16.mxu0 0
        %5301 = vmatpush1.bf16.msra.mxu0 %v4645
        %5302 = vmatprep.subr.bf16.mxu0 0
        %5303 = vmatpush1.bf16.msra.mxu0 %v4652
        %5304 = vmatprep.subr.bf16.mxu0 0
        %5305 = vmatpush1.bf16.msra.mxu0 %v4659
        %5306 = vmatprep.subr.bf16.mxu0 0
        %5307 = vmatpush1.bf16.msra.mxu0 %v4666
        %5308 = vmatprep.subr.bf16.mxu0 0
        %5309 = vmatpush1.bf16.msra.mxu0 %v4673
        %5310 = vmatprep.subr.bf16.mxu0 0
        %5311 = vmatpush1.bf16.msra.mxu0 %v4680
        %5312 = vmatprep.subr.bf16.mxu0 0
        %5313 = vmatpush1.bf16.msra.mxu0 %v4687
        %5314 = vmatprep.mubr.bf16.mxu0 %v3576
        %5315 = vmatmul.mubr.bf16.gmra.mrb[0].mxu0 %v3575
        %v5316 = vpop.f32.mrb[0].mxu0
        %v5317 = vadd.f32 %v3864, %v5316
        %v5318 = vpop.f32.mrb[0].mxu0
        %v5319 = vpop.f32.mrb[0].mxu0
        %v5320 = vadd.f32 %v3864, %v5319
        %v5321 = vpop.f32.mrb[0].mxu0
        %5322 = vdwg.mxu0
        %5323 = vmatprep.subr.bf16.mxu0 0
        %5324 = vmatpush1.bf16.msra.mxu0 %v4694
        %5325 = vmatprep.subr.bf16.mxu0 0
        %5326 = vmatpush1.bf16.msra.mxu0 %v4701
        %5327 = vmatprep.subr.bf16.mxu0 0
        %5328 = vmatpush1.bf16.msra.mxu0 %v4708
        %5329 = vmatprep.subr.bf16.mxu0 0
        %5330 = vmatpush1.bf16.msra.mxu0 %v4715
        %5331 = vmatprep.subr.bf16.mxu0 0
        %5332 = vmatpush1.bf16.msra.mxu0 %v4722
        %5333 = vmatprep.subr.bf16.mxu0 0
        %5334 = vmatpush1.bf16.msra.mxu0 %v4729
        %5335 = vmatprep.subr.bf16.mxu0 0
        %5336 = vmatpush1.bf16.msra.mxu0 %v4736
        %5337 = vmatprep.subr.bf16.mxu0 0
        %5338 = vmatpush1.bf16.msra.mxu0 %v4743
        %5339 = vmatprep.subr.bf16.mxu0 0
        %5340 = vmatpush1.bf16.msra.mxu0 %v4750
        %5341 = vmatprep.subr.bf16.mxu0 0
        %5342 = vmatpush1.bf16.msra.mxu0 %v4757
        %5343 = vmatprep.subr.bf16.mxu0 0
        %5344 = vmatpush1.bf16.msra.mxu0 %v4764
        %5345 = vmatprep.subr.bf16.mxu0 0
        %5346 = vmatpush1.bf16.msra.mxu0 %v4771
        %5347 = vmatprep.subr.bf16.mxu0 0
        %5348 = vmatpush1.bf16.msra.mxu0 %v4778
        %5349 = vmatprep.subr.bf16.mxu0 0
        %5350 = vmatpush1.bf16.msra.mxu0 %v4785
        %5351 = vmatprep.subr.bf16.mxu0 0
        %5352 = vmatpush1.bf16.msra.mxu0 %v4792
        %5353 = vmatprep.subr.bf16.mxu0 0
        %5354 = vmatpush1.bf16.msra.mxu0 %v4799
        %5355 = vmatprep.mubr.bf16.mxu0 %v3578
        %5356 = vmatmul.mubr.bf16.gmra.mrb[0].mxu0 %v3577
        %v5357 = vpop.f32.mrb[0].mxu0
        %v5358 = vadd.f32 %v5317, %v5357
        %v5359 = vpop.f32.mrb[0].mxu0
        %v5360 = vpop.f32.mrb[0].mxu0
        %v5361 = vadd.f32 %v5320, %v5360
        %v5362 = vpop.f32.mrb[0].mxu0
        %5363 = vdwg.mxu0
        %v5364 = vmul.f32 %v5102, 0.5
        %v5365 = vmul.f32 %v5104, 0.5
        %v5366 = vmul.f32 %v5188, 0.5
        %v5367 = vmul.f32 %v5190, 0.5
        %v5368 = vmul.f32 %v5274, 0.5
        %v5369 = vmul.f32 %v5276, 0.5
        %v5370 = vmul.f32 %v5358, 0.5
        %v5371 = vmul.f32 %v5106, 0.5
        %v5372 = vmul.f32 %v5108, 0.5
        %v5373 = vmul.f32 %v5192, 0.5
        %v5374 = vmul.f32 %v5194, 0.5
        %v5375 = vmul.f32 %v5278, 0.5
        %v5376 = vmul.f32 %v5280, 0.5
        %v5377 = vmul.f32 %v5361, 0.5
        %v5378 = vtanh.pop %v5364
        %v5379 = vtanh.pop %v5365
        %v5380 = vtanh.pop %v5366
        %v5381 = vtanh.pop %v5367
        %v5382 = vtanh.pop %v5368
        %v5383 = vtanh.pop %v5369
        %v5384 = vtanh.pop %v5370
        %v5385 = vtanh.pop %v5371
        %v5386 = vtanh.pop %v5372
        %v5387 = vtanh.pop %v5373
        %v5388 = vtanh.pop %v5374
        %v5389 = vtanh.pop %v5375
        %v5390 = vtanh.pop %v5376
        %v5391 = vtanh.pop %v5377
        %v5392 = vmul.f32 %v5378, 0.5
        %v5393 = vmul.f32 %v5379, 0.5
        %v5394 = vmul.f32 %v5380, 0.5
        %v5395 = vmul.f32 %v5381, 0.5
        %v5396 = vmul.f32 %v5382, 0.5
        %v5397 = vmul.f32 %v5383, 0.5
        %v5398 = vmul.f32 %v5384, 0.5
        %v5399 = vmul.f32 %v5385, 0.5
        %v5400 = vmul.f32 %v5386, 0.5
        %v5401 = vmul.f32 %v5387, 0.5
        %v5402 = vmul.f32 %v5388, 0.5
        %v5403 = vmul.f32 %v5389, 0.5
        %v5404 = vmul.f32 %v5390, 0.5
        %v5405 = vmul.f32 %v5391, 0.5
        %v5406 = vadd.f32 %v5392, 0.5
        %v5407 = vadd.f32 %v5393, 0.5
        %v5408 = vadd.f32 %v5394, 0.5
        %v5409 = vadd.f32 %v5395, 0.5
        %v5410 = vadd.f32 %v5396, 0.5
        %v5411 = vadd.f32 %v5397, 0.5
        %v5412 = vadd.f32 %v5398, 0.5
        %v5413 = vadd.f32 %v5399, 0.5
        %v5414 = vadd.f32 %v5400, 0.5
        %v5415 = vadd.f32 %v5401, 0.5
        %v5416 = vadd.f32 %v5402, 0.5
        %v5417 = vadd.f32 %v5403, 0.5
        %v5418 = vadd.f32 %v5404, 0.5
        %v5419 = vadd.f32 %v5405, 0.5
        %v5420 = vpack.c.bf16 %v5413, %v5406
        %v5421 = vpack.c.bf16 %v5414, %v5407
        %v5422 = vpack.c.bf16 %v5415, %v5408
        %v5423 = vpack.c.bf16 %v5416, %v5409
        %v5424 = vpack.c.bf16 %v5417, %v5410
        %v5425 = vpack.c.bf16 %v5418, %v5411
        %v5426 = vpack.c.bf16 %v5419, %v5412
        %v5434 = vunpack.c.l.b16 %v5420
        %v5435 = vunpack.c.l.b16 %v5421
        %v5436 = vunpack.c.l.b16 %v5422
        %v5437 = vunpack.c.l.b16 %v5423
        %v5438 = vunpack.c.l.b16 %v5424
        %v5439 = vunpack.c.l.b16 %v5425
        %v5440 = vunpack.c.l.b16 %v5426
        %v5441 = vunpack.c.h.b16 %v5420
        %v5442 = vunpack.c.h.b16 %v5421
        %v5443 = vunpack.c.h.b16 %v5422
        %v5444 = vunpack.c.h.b16 %v5423
        %v5445 = vunpack.c.h.b16 %v5424
        %v5446 = vunpack.c.h.b16 %v5425
        %v5447 = vunpack.c.h.b16 %v5426
        %v5448 = vpack.c.b16 %v5435, %v5434
        %v5449 = vpack.c.b16 %v5437, %v5436
        %v5450 = vpack.c.b16 %v5439, %v5438
        %v5451 = vpack.c.b16 %v5440, %v5440
        %v5452 = vpack.c.b16 %v5442, %v5441
        %v5453 = vpack.c.b16 %v5444, %v5443
        %v5454 = vpack.c.b16 %v5446, %v5445
        %v5455 = vpack.c.b16 %v5447, %v5447
        %5464 = vst [vmem:[%s590] sm:$0xff] %v5448
        %5465 = vst [vmem:[%s590 + $0x8] sm:$0xff] %v5449
        %5466 = vst [vmem:[%s590 + $0x10] sm:$0xff] %v5450
        %5467 = vst [vmem:[%s590 + $0x18] sm:$0xf] %v5451
        %5468 = vst [vmem:[%s590 + $0x1c] sm:$0xff] %v5452
        %5469 = vst [vmem:[%s590 + $0x24] sm:$0xff] %v5453
        %5470 = vst [vmem:[%s590 + $0x2c] sm:$0xff] %v5454
        %5471 = vst [vmem:[%s590 + $0x34] sm:$0xf] %v5455
        %s5472 = smul.u32 2, %s30
        %p5473 = scmp.lt.s32.totalorder %s5472, 3
        %s5474 = scalar_select %p5473, %s5472, 3
        %s5475 = smul.addr %s5474, 7
        %s5476 = smul.addr %s5475, 4
        %s5477 = scalar_lea.vmem %s14, %s5476
        %s5478 = smul.u32 2, %s30
        %p5479 = scmp.lt.s32.totalorder %s5478, 3
        %s5480 = scalar_select %p5479, %s5478, 3
        %s5481 = smul.addr %s5480, 8
        %s5482 = scalar_lea.vmem %s15, %s5481
        // Predicated region
        $region93: #{vae_forward.1} parent=75 // pred_check
          %p5483 = pneg %p352
        $region94: #{vae_forward.1} parent=75 // pred_check_branch
          %5485 = sbr.rel (%p5483) target = $region96
        $region95: #{vae_forward.1} parent=75 // pred_region
          %s5486 = smul.u32 2, %s30
        $region96: #{vae_forward.1} parent=75 // pred_fallthru
          _
        // Predicated region
        $region97: #{vae_forward.1} parent=75 // pred_check
          %p5487 = pneg %p378
        $region98: #{vae_forward.1} parent=75 // pred_check_branch
          %5489 = sbr.rel (%p5487) target = $region100
        $region99: #{vae_forward.1} parent=75 // pred_region
          %s5490 = smul.u32 2, %s30
        $region100: #{vae_forward.1} parent=75 // pred_fallthru
          _
      $region76: #{vae_forward.1} parent=5 // pred_fallthru
        _
      %p5491 = scmp.le.s32.totalorder 2, %s25
      // Predicated region
      $region101: #{vae_forward.1} parent=5 // pred_check
        %p5492 = pneg %p5491
      $region102: #{vae_forward.1} parent=5 // pred_check_branch
        %5494 = sbr.rel (%p5492) target = $region104
      $region103: #{vae_forward.1} parent=5 // pred_region
        %s5495 = ssub.s32 %s25, 2
        // Predicated region
        $region105: #{vae_forward.1} parent=103 // pred_check
          %p5496 = pneg %p358
        $region106: #{vae_forward.1} parent=103 // pred_check_branch
          %5498 = sbr.rel (%p5496) target = $region108
        $region107: #{vae_forward.1} parent=103 // pred_region
          %s5499 = smul.u32 2, %s31
          %p5500 = scmp.lt.s32.totalorder %s5499, 3
          %s5501 = scalar_select %p5500, %s5499, 3
          %s5502 = smul.addr %s5501, 7
          %s5503 = smul.addr %s5502, 4
          %s5504 = scalar_lea.vmem %s14, %s5503
        $region108: #{vae_forward.1} parent=103 // pred_fallthru
          _
        // Predicated region
        $region109: #{vae_forward.1} parent=103 // pred_check
          %p5505 = pneg %p384
        $region110: #{vae_forward.1} parent=103 // pred_check_branch
          %5507 = sbr.rel (%p5505) target = $region112
        $region111: #{vae_forward.1} parent=103 // pred_region
          %s5508 = smul.u32 2, %s31
          %p5509 = scmp.lt.s32.totalorder %s5508, 3
          %s5510 = scalar_select %p5509, %s5508, 3
          %s5511 = smul.addr %s5510, 8
          %s5512 = scalar_lea.vmem %s15, %s5511
        $region112: #{vae_forward.1} parent=103 // pred_fallthru
          _
      $region104: #{vae_forward.1} parent=5 // pred_fallthru
        _
    $region6: #{vae_forward.1} parent=1 // loop_footer
      %s29 = sadd.s32 1, %s25
    $region7: #{vae_forward.1} parent=1 // loop_footer_branch
      %24 = sbr.rel target = $region3
    $region8: #{vae_forward.1} parent=1 // loop_exit
      _
    %5513 = vsyncpa [#allocation3], 1
    %s5514 = scalar_lea.sflag [#allocation3], 1
    %5515 = vsyncpa %s5514, 1
    %5516 = vsyncpa [#allocation5], 1
    %5517 = vsyncpa [#allocation8], 1

</llo_original>
